<compile_context>
chip_gen: v6e
topology: v6e:2x2x1
jax: 0.10.0
libtpu: 0.0.40
codegen_flags: <defaults>
</compile_context>

<pallas_src>
import jax
import jax.numpy as jnp
from jax.experimental import pallas as pl
from jax.experimental.pallas import tpu as pltpu


# ---------------------------------------------------------------------------
# Kernel (factory closes over static tile sizes)
# ---------------------------------------------------------------------------
def _make_kernel(t_chunk, b_tile, hp):
    def kernel(x_ref, h0_ref, w1_ref, wi_ref, wh_ref, b1_ref, bi_ref, bhn_ref,
               out_ref, h_scr):
        # Reset the VMEM hidden-state carry at the first time-chunk of this batch tile.
        @pl.when(pl.program_id(1) == 0)
        def _():
            h_scr[...] = h0_ref[...]

        cdt = w1_ref.dtype                      # bf16 (or f32) compute dtype for the MXU
        w1 = w1_ref[...]                        # (D_in, Hp)
        wi = wi_ref[...]                        # (Hp, 3*Hp)  packed [r|z|n]
        wh = wh_ref[...]                        # (Hp, 3*Hp)  packed [r|z|n]

        # Hoist loop-invariant bias broadcasts out of the time loop (no CSE in-loop).
        b1 = jnp.broadcast_to(b1_ref[...], (b_tile, hp))            # fc1 bias
        bi = jnp.broadcast_to(bi_ref[...], (b_tile, 3 * hp))        # [b_ir+b_hr|b_iz+b_hz|b_in]
        bhn = jnp.broadcast_to(bhn_ref[...], (b_tile, hp))          # b_hn (r-scaled)

        h = h_scr[...]                                              # (b_tile, Hp) f32
        for t in range(t_chunk):                                    # small static unroll
            x = x_ref[t].astype(cdt)                                # (b_tile, D_in)

            # fc1 + ReLU (f32 accumulate, bias fused with the max on the VPU).
            a = jnp.maximum(
                jnp.dot(x, w1, preferred_element_type=jnp.float32) + b1, 0.0)

            # GRUCell: two packed (.,Hp)x(Hp,3Hp) dots; lane-aligned gate slices.
            gi = jnp.dot(a.astype(cdt), wi, preferred_element_type=jnp.float32) + bi
            gh = jnp.dot(h.astype(cdt), wh, preferred_element_type=jnp.float32)

            r = jax.nn.sigmoid(gi[:, 0:hp] + gh[:, 0:hp])
            z = jax.nn.sigmoid(gi[:, hp:2 * hp] + gh[:, hp:2 * hp])
            n = jnp.tanh(gi[:, 2 * hp:3 * hp] + r * (gh[:, 2 * hp:3 * hp] + bhn))

            h = (1.0 - z) * n + z * h
            out_ref[t] = h.astype(out_ref.dtype)                    # lane-dense (Hp) store

        h_scr[...] = h                                              # carry to next chunk
    return kernel


# ---------------------------------------------------------------------------
# Wrappers
# ---------------------------------------------------------------------------
def _round_up(x, m):
    return (x + m - 1) // m * m


def _largest_divisor_leq(n, cap):
    for d in range(min(n, cap), 0, -1):
        if n % d == 0:
            return d
    return 1


def _pick_b_tile(batch):
    """Multiple of 8 when tiled; nb >= 2 whenever B >= 16 so v7x megacore gets work."""
    if batch < 16:
        return batch
    cap = min(256, batch // 2)
    cap -= cap % 8
    for bt in range(cap, 7, -8):
        if batch % bt == 0:
            return bt
    return batch


def ewm_agent_rollout(xs, h0, kp, *, b_tile=None, t_chunk=None):
    """fc1 -> ReLU -> GRUCell recurrence over a rollout.

    xs: (T, B, D_in) f32, h0: (B, H) f32  ->  hidden states (T, B, H) f32.
    Equivalent to calling EWMAgent.forward() T times, carrying the hidden state.
    """
    T, B, d_in = xs.shape
    H, Hp = kp["H"], kp["Hp"]
    assert h0.shape == (B, H)

    if b_tile is None:
        b_tile = _pick_b_tile(B)
    assert B % b_tile == 0, "batch must be divisible by the batch tile"
    assert b_tile == B or b_tile % 8 == 0, "tiled batch must be a multiple of 8"
    nb = B // b_tile

    if t_chunk is None:
        t_chunk = _largest_divisor_leq(T, 8)
    assert T % t_chunk == 0
    nt = T // t_chunk

    h0_p = jnp.pad(h0.astype(jnp.float32), ((0, 0), (0, Hp - H)))

    def resident(shape):
        # Constant block index => DMA'd into VMEM once, resident across all grid steps.
        return pl.BlockSpec(shape, lambda b, c, _s=shape: tuple(0 for _ in _s))

    grid_spec = pltpu.PrefetchScalarGridSpec(
        num_scalar_prefetch=0,
        # NOTE: time-chunk axis must stay innermost & "arbitrary" (hidden-state carry).
        grid=(nb, nt),
        in_specs=[
            pl.BlockSpec((t_chunk, b_tile, d_in), lambda b, c: (c, b, 0)),   # xs slab
            pl.BlockSpec((b_tile, Hp),            lambda b, c: (b, 0)),      # h0
            resident((d_in, Hp)),                                            # w1
            resident((Hp, 3 * Hp)),                                          # w_i packed
            resident((Hp, 3 * Hp)),                                          # w_h packed
            resident((1, Hp)),                                               # b1
            resident((1, 3 * Hp)),                                           # b_i packed
            resident((1, Hp)),                                               # b_hn
        ],
        out_specs=pl.BlockSpec((t_chunk, b_tile, Hp), lambda b, c: (c, b, 0)),
        scratch_shapes=[pltpu.VMEM((b_tile, Hp), jnp.float32)],              # hidden carry
    )

    # Explicit VMEM budget: double-buffered weights + io slabs + carry, clamped to
    # [32 MiB, 64 MiB] so it stays within v7x physical VMEM while covering larger H.
    w_itemsize = jnp.dtype(kp["w1"].dtype).itemsize
    weight_bytes = (d_in * Hp + 2 * Hp * 3 * Hp) * w_itemsize + 5 * Hp * 4
    io_bytes = (t_chunk * b_tile * (d_in + Hp) + b_tile * Hp) * 4
    vmem_limit = int(min(max(2 * (weight_bytes + io_bytes) + b_tile * Hp * 4 + (2 << 20),
                             32 << 20), 64 << 20))
    # TODO(synk): for very large H, mark the resident weight specs pipeline_mode=
    # pl.Buffered(1) to drop their second buffer (they never re-fetch).

    out = pl.pallas_call(
        _make_kernel(t_chunk, b_tile, Hp),
        out_shape=jax.ShapeDtypeStruct((T, B, Hp), jnp.float32),
        grid_spec=grid_spec,
        compiler_params=pltpu.CompilerParams(
            dimension_semantics=("parallel", "arbitrary"),
            vmem_limit_bytes=vmem_limit),
    )(xs.astype(jnp.float32), h0_p,
      kp["w1"], kp["w_i"], kp["w_h"], kp["b1"], kp["b_i"], kp["b_hn"])

    return out[..., :H]          # slice off padded lanes


def ewm_agent_forward(inputs, hidden, kp):
    """Single-step forward() matching the PyTorch module: (B,D_in),(B,H)->(B,H)."""
    return ewm_agent_rollout(inputs[None], hidden, kp)[0]


# ---------------------------------------------------------------------------
# Params (PyTorch-style init) + conversion to kernel layout
# ---------------------------------------------------------------------------
def torch_style_init(key, input_shape, hidden_dim):
    """nn.Linear / nn.GRUCell style: (out, in) weights, uniform(-1/sqrt(fan_in), +)."""
    ks = jax.random.split(key, 6)
    s1 = 1.0 / jnp.sqrt(float(input_shape))
    sh = 1.0 / jnp.sqrt(float(hidden_dim))
    u = lambda k, shape, s: jax.random.uniform(k, shape, jnp.float32, -s, s)
    return {
        "fc1_w": u(ks[0], (hidden_dim, input_shape), s1),
        "fc1_b": u(ks[1], (hidden_dim,), s1),
        "w_ih":  u(ks[2], (3 * hidden_dim, hidden_dim), sh),
        "w_hh":  u(ks[3], (3 * hidden_dim, hidden_dim), sh),
        "b_ih":  u(ks[4], (3 * hidden_dim,), sh),
        "b_hh":  u(ks[5], (3 * hidden_dim,), sh),
    }


def prepare_kernel_params(p, *, param_dtype=jnp.bfloat16, lane=128):
    """Transpose to (in,out), pad every output dim to a multiple of 128 (lane-dense),
    re-pack gates as (Hp, 3*Hp) [r|z|n], pre-fold r/z biases, cast weights to bf16."""
    H, d_in = p["fc1_w"].shape
    Hp = _round_up(H, lane)

    def pad_cols(w, out_dim):
        return jnp.pad(w, ((0, 0), (0, out_dim - w.shape[1])))

    def pad_vec(v):
        return jnp.pad(v, (0, Hp - H))

    w1 = pad_cols(p["fc1_w"].T, Hp)                           # (D_in, Hp)
    b1 = pad_vec(p["fc1_b"])[None, :]                         # (1, Hp)

    def pack_gates(w_t):                                       # (H, 3H) cols [r|z|n]
        gates = [pad_cols(w_t[:, g * H:(g + 1) * H], Hp) for g in range(3)]
        w = jnp.concatenate(gates, axis=1)                     # (H, 3*Hp)
        return jnp.pad(w, ((0, Hp - H), (0, 0)))               # (Hp, 3*Hp)

    w_i = pack_gates(p["w_ih"].T)
    w_h = pack_gates(p["w_hh"].T)

    b_i = jnp.concatenate([pad_vec(p["b_ih"][0:H] + p["b_hh"][0:H]),
                           pad_vec(p["b_ih"][H:2 * H] + p["b_hh"][H:2 * H]),
                           pad_vec(p["b_ih"][2 * H:3 * H])])[None, :]   # (1, 3*Hp)
    b_hn = pad_vec(p["b_hh"][2 * H:3 * H])[None, :]                     # (1, Hp)

    return {
        "w1": w1.astype(param_dtype),
        "w_i": w_i.astype(param_dtype),
        "w_h": w_h.astype(param_dtype),
        "b1": b1.astype(jnp.float32),
        "b_i": b_i.astype(jnp.float32),
        "b_hn": b_hn.astype(jnp.float32),
        "H": H, "Hp": Hp, "D_in": d_in,
    }


# ---------------------------------------------------------------------------
# Pure-JAX references (PyTorch layout).  compute_dtype=bf16 mirrors the kernel's
# mixed precision (bf16 operands, f32 accumulate) for a tight numerical check.
# ---------------------------------------------------------------------------
def gru_step_ref(x, h, p, compute_dtype=jnp.float32):
    H = h.shape[-1]
    cdt = compute_dtype
    a = jnp.maximum(
        jnp.dot(x.astype(cdt), p["fc1_w"].astype(cdt).T,
                preferred_element_type=jnp.float32) + p["fc1_b"], 0.0)
    gi = jnp.dot(a.astype(cdt), p["w_ih"].astype(cdt).T,
                 preferred_element_type=jnp.float32) + p["b_ih"]
    gh = jnp.dot(h.astype(cdt), p["w_hh"].astype(cdt).T,
                 preferred_element_type=jnp.float32) + p["b_hh"]
    r = jax.nn.sigmoid(gi[:, :H] + gh[:, :H])
    z = jax.nn.sigmoid(gi[:, H:2 * H] + gh[:, H:2 * H])
    n = jnp.tanh(gi[:, 2 * H:] + r * gh[:, 2 * H:])
    return (1.0 - z) * n + z * h


def ewm_rollout_ref(xs, h0, p, compute_dtype=jnp.float32):
    def step(h, x):
        h_new = gru_step_ref(x, h, p, compute_dtype)
        return h_new, h_new
    _, hs = jax.lax.scan(step, h0, xs)
    return hs


# ---------------------------------------------------------------------------
if __name__ == "__main__":
    # Small config consistent with EWMAgent.forward:
    #   input_shape = 32, rnn_hidden_dim = 32, batch = bs * n_agents = 2*4 = 8,
    #   rollout of T = 8 timesteps fused into a single pallas_call (one time chunk).
    input_shape, hidden_dim = 32, 32
    bs, n_agents = 2, 4
    B = bs * n_agents
    T = 8

    key = jax.random.PRNGKey(0)
    k_x, k_h, k_p = jax.random.split(key, 3)

    xs = jax.random.normal(k_x, (T, B, input_shape), jnp.float32)
    h0 = jnp.zeros((B, hidden_dim), jnp.float32)            # init_hidden() is zeros
    torch_params = torch_style_init(k_p, input_shape, hidden_dim)
    kparams = prepare_kernel_params(torch_params)            # bf16 weights, packed, padded

    # Fused, chunked T-step rollout.
    hs = ewm_agent_rollout(xs, h0, kparams)
    jax.block_until_ready(hs)
    assert hs.shape == (T, B, hidden_dim)

    # Tight check vs a reference with matching mixed precision (bf16 operands, f32 acc).
    hs_ref_bf16 = ewm_rollout_ref(xs, h0, torch_params, compute_dtype=jnp.bfloat16)
    assert jnp.allclose(hs, hs_ref_bf16, atol=2e-3, rtol=2e-3), \
        "rollout mismatch vs bf16-matched reference"

    # Loose sanity check vs the full-f32 PyTorch-semantics reference.
    hs_ref_f32 = ewm_rollout_ref(xs, h0, torch_params, compute_dtype=jnp.float32)
    assert jnp.allclose(hs, hs_ref_f32, atol=5e-2, rtol=5e-2), \
        "rollout mismatch vs f32 reference"

    # Single-step forward() with a non-trivial hidden state (module semantics).
    h_in = 0.1 * jax.random.normal(k_h, (B, hidden_dim), jnp.float32)
    h1 = ewm_agent_forward(xs[0], h_in, kparams)
    jax.block_until_ready(h1)
    h1_ref = gru_step_ref(xs[0], h_in, torch_params, compute_dtype=jnp.bfloat16)
    assert jnp.allclose(h1, h1_ref, atol=2e-3, rtol=2e-3), \
        "single-step mismatch vs reference"

    # TODO(synk): decision_module (one_hot mask + g_net/f_net bmm) is not part of
    # forward(); not implemented here.
    print("KERNEL_OK")
</pallas_src>

<mosaic_0001>
module attributes {stable_mosaic.version = 11 : i64} {
  func.func @kernel(%arg0: i32, %arg1: i32, %arg2: memref<8x8x32xf32, #tpu.memory_space<vmem>>, %arg3: memref<8x128xf32, #tpu.memory_space<vmem>>, %arg4: memref<32x128xbf16, #tpu.memory_space<vmem>>, %arg5: memref<128x384xbf16, #tpu.memory_space<vmem>>, %arg6: memref<128x384xbf16, #tpu.memory_space<vmem>>, %arg7: memref<1x128xf32, #tpu.memory_space<vmem>>, %arg8: memref<1x384xf32, #tpu.memory_space<vmem>>, %arg9: memref<1x128xf32, #tpu.memory_space<vmem>>, %arg10: memref<8x8x128xf32, #tpu.memory_space<vmem>>, %arg11: memref<8x128xf32, #tpu.memory_space<vmem>>) attributes {dimension_semantics = [#tpu.dimension_semantics<parallel>, #tpu.dimension_semantics<arbitrary>], iteration_bounds = array<i64: 1, 1>, scalar_prefetch = 0 : i64, scratch_operands = 1 : i64, tpu.core_type = #tpu.core_type<tc>, window_params = [{transform_indices = @transform_0, window_bounds = array<i64: 8, 8, 32>}, {transform_indices = @transform_1, window_bounds = array<i64: 8, 128>}, {pipeline_mode = #tpu.pipeline_mode<synchronous>, transform_indices = @transform_2, window_bounds = array<i64: 32, 128>}, {pipeline_mode = #tpu.pipeline_mode<synchronous>, transform_indices = @transform_3, window_bounds = array<i64: 128, 384>}, {pipeline_mode = #tpu.pipeline_mode<synchronous>, transform_indices = @transform_4, window_bounds = array<i64: 128, 384>}, {pipeline_mode = #tpu.pipeline_mode<synchronous>, transform_indices = @transform_5, window_bounds = array<i64: 1, 128>}, {pipeline_mode = #tpu.pipeline_mode<synchronous>, transform_indices = @transform_6, window_bounds = array<i64: 1, 384>}, {pipeline_mode = #tpu.pipeline_mode<synchronous>, transform_indices = @transform_7, window_bounds = array<i64: 1, 128>}, {transform_indices = @transform_8, window_bounds = array<i64: 8, 8, 128>}]} {
    %c0_i32 = arith.constant 0 : i32
    %0 = arith.cmpi eq, %arg1, %c0_i32 : i32
    %1 = arith.extui %0 : i1 to i32
    %c0_i32_0 = arith.constant 0 : i32
    %2 = arith.cmpi ne, %1, %c0_i32_0 : i32
    scf.if %2 {
      %c0_112 = arith.constant 0 : index
      %c0_113 = arith.constant 0 : index
      %353 = vector.load %arg3[%c0_112, %c0_113] : memref<8x128xf32, #tpu.memory_space<vmem>>, vector<8x128xf32>
      %c0_114 = arith.constant 0 : index
      %c0_115 = arith.constant 0 : index
      %354 = vector.load %arg11[%c0_114, %c0_115] : memref<8x128xf32, #tpu.memory_space<vmem>>, vector<8x128xf32>
      tpu.vector_store %arg11[%c0_114, %c0_115], %353 {strides = array<i32>} : memref<8x128xf32, #tpu.memory_space<vmem>>, vector<8x128xf32>,
    } else {
    }
    %c0 = arith.constant 0 : index
    %c0_1 = arith.constant 0 : index
    %3 = vector.load %arg4[%c0, %c0_1] : memref<32x128xbf16, #tpu.memory_space<vmem>>, vector<32x128xbf16>
    %c0_2 = arith.constant 0 : index
    %c0_3 = arith.constant 0 : index
    %4 = vector.load %arg5[%c0_2, %c0_3] : memref<128x384xbf16, #tpu.memory_space<vmem>>, vector<128x384xbf16>
    %c0_4 = arith.constant 0 : index
    %c0_5 = arith.constant 0 : index
    %5 = vector.load %arg6[%c0_4, %c0_5] : memref<128x384xbf16, #tpu.memory_space<vmem>>, vector<128x384xbf16>
    %c0_6 = arith.constant 0 : index
    %c0_7 = arith.constant 0 : index
    %6 = vector.load %arg7[%c0_6, %c0_7] : memref<1x128xf32, #tpu.memory_space<vmem>>, vector<1x128xf32>
    %7 = vector.shape_cast %6 : vector<1x128xf32> to vector<1x128xf32>
    %8 = vector.broadcast %7 : vector<1x128xf32> to vector<8x128xf32>
    %c0_8 = arith.constant 0 : index
    %c0_9 = arith.constant 0 : index
    %9 = vector.load %arg8[%c0_8, %c0_9] : memref<1x384xf32, #tpu.memory_space<vmem>>, vector<1x384xf32>
    %10 = vector.shape_cast %9 : vector<1x384xf32> to vector<1x384xf32>
    %11 = vector.broadcast %10 : vector<1x384xf32> to vector<8x384xf32>
    %c0_10 = arith.constant 0 : index
    %c0_11 = arith.constant 0 : index
    %12 = vector.load %arg9[%c0_10, %c0_11] : memref<1x128xf32, #tpu.memory_space<vmem>>, vector<1x128xf32>
    %13 = vector.shape_cast %12 : vector<1x128xf32> to vector<1x128xf32>
    %14 = vector.broadcast %13 : vector<1x128xf32> to vector<8x128xf32>
    %c0_12 = arith.constant 0 : index
    %c0_13 = arith.constant 0 : index
    %15 = vector.load %arg11[%c0_12, %c0_13] : memref<8x128xf32, #tpu.memory_space<vmem>>, vector<8x128xf32>
    %c0_14 = arith.constant 0 : index
    %c0_15 = arith.constant 0 : index
    %c0_16 = arith.constant 0 : index
    %16 = vector.load %arg2[%c0_14, %c0_15, %c0_16] : memref<8x8x32xf32, #tpu.memory_space<vmem>>, vector<1x8x32xf32>
    %17 = vector.shape_cast %16 : vector<1x8x32xf32> to vector<8x32xf32>
    %18 = arith.truncf %17 : vector<8x32xf32> to vector<8x32xbf16>
    %cst = arith.constant dense<0.000000e+00> : vector<8x128xf32>
    %19 = tpu.matmul %18, %3, %cst {dimension_numbers = #tpu.dot_dimension_numbers<[1], [0], [0], [1], [0, 0, 1, 1], [], []>} : vector<8x32xbf16>, vector<32x128xbf16>, vector<8x128xf32> -> vector<8x128xf32>
    %20 = arith.addf %19, %8 : vector<8x128xf32>
    %cst_17 = arith.constant 0.000000e+00 : f32
    %21 = vector.broadcast %cst_17 : f32 to vector<8x128xf32>
    %22 = arith.maximumf %20, %21 : vector<8x128xf32>
    %23 = arith.truncf %22 : vector<8x128xf32> to vector<8x128xbf16>
    %cst_18 = arith.constant dense<0.000000e+00> : vector<8x384xf32>
    %24 = tpu.matmul %23, %4, %cst_18 {dimension_numbers = #tpu.dot_dimension_numbers<[1], [0], [0], [1], [0, 0, 1, 1], [], []>} : vector<8x128xbf16>, vector<128x384xbf16>, vector<8x384xf32> -> vector<8x384xf32>
    %25 = arith.addf %24, %11 : vector<8x384xf32>
    %26 = arith.truncf %15 : vector<8x128xf32> to vector<8x128xbf16>
    %cst_19 = arith.constant dense<0.000000e+00> : vector<8x384xf32>
    %27 = tpu.matmul %26, %5, %cst_19 {dimension_numbers = #tpu.dot_dimension_numbers<[1], [0], [0], [1], [0, 0, 1, 1], [], []>} : vector<8x128xbf16>, vector<128x384xbf16>, vector<8x384xf32> -> vector<8x384xf32>
    %28 = vector.extract_strided_slice %25 {offsets = [0, 0], sizes = [8, 128], strides = [1, 1]} : vector<8x384xf32> to vector<8x128xf32>
    %29 = vector.extract_strided_slice %27 {offsets = [0, 0], sizes = [8, 128], strides = [1, 1]} : vector<8x384xf32> to vector<8x128xf32>
    %30 = arith.addf %28, %29 : vector<8x128xf32>
    %31 = arith.negf %30 : vector<8x128xf32>
    %32 = math.exp %31 : vector<8x128xf32>
    %cst_20 = arith.constant 1.000000e+00 : f32
    %33 = vector.broadcast %cst_20 : f32 to vector<8x128xf32>
    %34 = arith.addf %33, %32 : vector<8x128xf32>
    %35 = arith.divf %33, %34 : vector<8x128xf32>
    %36 = vector.extract_strided_slice %25 {offsets = [0, 128], sizes = [8, 128], strides = [1, 1]} : vector<8x384xf32> to vector<8x128xf32>
    %37 = vector.extract_strided_slice %27 {offsets = [0, 128], sizes = [8, 128], strides = [1, 1]} : vector<8x384xf32> to vector<8x128xf32>
    %38 = arith.addf %36, %37 : vector<8x128xf32>
    %39 = arith.negf %38 : vector<8x128xf32>
    %40 = math.exp %39 : vector<8x128xf32>
    %cst_21 = arith.constant 1.000000e+00 : f32
    %41 = vector.broadcast %cst_21 : f32 to vector<8x128xf32>
    %42 = arith.addf %41, %40 : vector<8x128xf32>
    %43 = arith.divf %41, %42 : vector<8x128xf32>
    %44 = vector.extract_strided_slice %25 {offsets = [0, 256], sizes = [8, 128], strides = [1, 1]} : vector<8x384xf32> to vector<8x128xf32>
    %45 = vector.extract_strided_slice %27 {offsets = [0, 256], sizes = [8, 128], strides = [1, 1]} : vector<8x384xf32> to vector<8x128xf32>
    %46 = arith.addf %45, %14 : vector<8x128xf32>
    %47 = arith.mulf %35, %46 : vector<8x128xf32>
    %48 = arith.addf %44, %47 : vector<8x128xf32>
    %49 = math.tanh %48 : vector<8x128xf32>
    %cst_22 = arith.constant 1.000000e+00 : f32
    %50 = vector.broadcast %cst_22 : f32 to vector<8x128xf32>
    %51 = arith.subf %50, %43 : vector<8x128xf32>
    %52 = arith.mulf %51, %49 : vector<8x128xf32>
    %53 = arith.mulf %43, %15 : vector<8x128xf32>
    %54 = arith.addf %52, %53 : vector<8x128xf32>
    %c0_23 = arith.constant 0 : index
    %c0_24 = arith.constant 0 : index
    %c0_25 = arith.constant 0 : index
    %55 = vector.load %arg10[%c0_23, %c0_24, %c0_25] : memref<8x8x128xf32, #tpu.memory_space<vmem>>, vector<1x8x128xf32>
    %56 = vector.shape_cast %55 : vector<1x8x128xf32> to vector<8x128xf32>
    %57 = vector.shape_cast %54 : vector<8x128xf32> to vector<1x8x128xf32>
    tpu.vector_store %arg10[%c0_23, %c0_24, %c0_25], %57 {strides = array<i32>} : memref<8x8x128xf32, #tpu.memory_space<vmem>>, vector<1x8x128xf32>,
    %c1 = arith.constant 1 : index
    %c0_26 = arith.constant 0 : index
    %c0_27 = arith.constant 0 : index
    %58 = vector.load %arg2[%c1, %c0_26, %c0_27] : memref<8x8x32xf32, #tpu.memory_space<vmem>>, vector<1x8x32xf32>
    %59 = vector.shape_cast %58 : vector<1x8x32xf32> to vector<8x32xf32>
    %60 = arith.truncf %59 : vector<8x32xf32> to vector<8x32xbf16>
    %cst_28 = arith.constant dense<0.000000e+00> : vector<8x128xf32>
    %61 = tpu.matmul %60, %3, %cst_28 {dimension_numbers = #tpu.dot_dimension_numbers<[1], [0], [0], [1], [0, 0, 1, 1], [], []>} : vector<8x32xbf16>, vector<32x128xbf16>, vector<8x128xf32> -> vector<8x128xf32>
    %62 = arith.addf %61, %8 : vector<8x128xf32>
    %cst_29 = arith.constant 0.000000e+00 : f32
    %63 = vector.broadcast %cst_29 : f32 to vector<8x128xf32>
    %64 = arith.maximumf %62, %63 : vector<8x128xf32>
    %65 = arith.truncf %64 : vector<8x128xf32> to vector<8x128xbf16>
    %cst_30 = arith.constant dense<0.000000e+00> : vector<8x384xf32>
    %66 = tpu.matmul %65, %4, %cst_30 {dimension_numbers = #tpu.dot_dimension_numbers<[1], [0], [0], [1], [0, 0, 1, 1], [], []>} : vector<8x128xbf16>, vector<128x384xbf16>, vector<8x384xf32> -> vector<8x384xf32>
    %67 = arith.addf %66, %11 : vector<8x384xf32>
    %68 = arith.truncf %54 : vector<8x128xf32> to vector<8x128xbf16>
    %cst_31 = arith.constant dense<0.000000e+00> : vector<8x384xf32>
    %69 = tpu.matmul %68, %5, %cst_31 {dimension_numbers = #tpu.dot_dimension_numbers<[1], [0], [0], [1], [0, 0, 1, 1], [], []>} : vector<8x128xbf16>, vector<128x384xbf16>, vector<8x384xf32> -> vector<8x384xf32>
    %70 = vector.extract_strided_slice %67 {offsets = [0, 0], sizes = [8, 128], strides = [1, 1]} : vector<8x384xf32> to vector<8x128xf32>
    %71 = vector.extract_strided_slice %69 {offsets = [0, 0], sizes = [8, 128], strides = [1, 1]} : vector<8x384xf32> to vector<8x128xf32>
    %72 = arith.addf %70, %71 : vector<8x128xf32>
    %73 = arith.negf %72 : vector<8x128xf32>
    %74 = math.exp %73 : vector<8x128xf32>
    %cst_32 = arith.constant 1.000000e+00 : f32
    %75 = vector.broadcast %cst_32 : f32 to vector<8x128xf32>
    %76 = arith.addf %75, %74 : vector<8x128xf32>
    %77 = arith.divf %75, %76 : vector<8x128xf32>
    %78 = vector.extract_strided_slice %67 {offsets = [0, 128], sizes = [8, 128], strides = [1, 1]} : vector<8x384xf32> to vector<8x128xf32>
    %79 = vector.extract_strided_slice %69 {offsets = [0, 128], sizes = [8, 128], strides = [1, 1]} : vector<8x384xf32> to vector<8x128xf32>
    %80 = arith.addf %78, %79 : vector<8x128xf32>
    %81 = arith.negf %80 : vector<8x128xf32>
    %82 = math.exp %81 : vector<8x128xf32>
    %cst_33 = arith.constant 1.000000e+00 : f32
    %83 = vector.broadcast %cst_33 : f32 to vector<8x128xf32>
    %84 = arith.addf %83, %82 : vector<8x128xf32>
    %85 = arith.divf %83, %84 : vector<8x128xf32>
    %86 = vector.extract_strided_slice %67 {offsets = [0, 256], sizes = [8, 128], strides = [1, 1]} : vector<8x384xf32> to vector<8x128xf32>
    %87 = vector.extract_strided_slice %69 {offsets = [0, 256], sizes = [8, 128], strides = [1, 1]} : vector<8x384xf32> to vector<8x128xf32>
    %88 = arith.addf %87, %14 : vector<8x128xf32>
    %89 = arith.mulf %77, %88 : vector<8x128xf32>
    %90 = arith.addf %86, %89 : vector<8x128xf32>
    %91 = math.tanh %90 : vector<8x128xf32>
    %cst_34 = arith.constant 1.000000e+00 : f32
    %92 = vector.broadcast %cst_34 : f32 to vector<8x128xf32>
    %93 = arith.subf %92, %85 : vector<8x128xf32>
    %94 = arith.mulf %93, %91 : vector<8x128xf32>
    %95 = arith.mulf %85, %54 : vector<8x128xf32>
    %96 = arith.addf %94, %95 : vector<8x128xf32>
    %c1_35 = arith.constant 1 : index
    %c0_36 = arith.constant 0 : index
    %c0_37 = arith.constant 0 : index
    %97 = vector.load %arg10[%c1_35, %c0_36, %c0_37] : memref<8x8x128xf32, #tpu.memory_space<vmem>>, vector<1x8x128xf32>
    %98 = vector.shape_cast %97 : vector<1x8x128xf32> to vector<8x128xf32>
    %99 = vector.shape_cast %96 : vector<8x128xf32> to vector<1x8x128xf32>
    tpu.vector_store %arg10[%c1_35, %c0_36, %c0_37], %99 {strides = array<i32>} : memref<8x8x128xf32, #tpu.memory_space<vmem>>, vector<1x8x128xf32>,
    %c2 = arith.constant 2 : index
    %c0_38 = arith.constant 0 : index
    %c0_39 = arith.constant 0 : index
    %100 = vector.load %arg2[%c2, %c0_38, %c0_39] : memref<8x8x32xf32, #tpu.memory_space<vmem>>, vector<1x8x32xf32>
    %101 = vector.shape_cast %100 : vector<1x8x32xf32> to vector<8x32xf32>
    %102 = arith.truncf %101 : vector<8x32xf32> to vector<8x32xbf16>
    %cst_40 = arith.constant dense<0.000000e+00> : vector<8x128xf32>
    %103 = tpu.matmul %102, %3, %cst_40 {dimension_numbers = #tpu.dot_dimension_numbers<[1], [0], [0], [1], [0, 0, 1, 1], [], []>} : vector<8x32xbf16>, vector<32x128xbf16>, vector<8x128xf32> -> vector<8x128xf32>
    %104 = arith.addf %103, %8 : vector<8x128xf32>
    %cst_41 = arith.constant 0.000000e+00 : f32
    %105 = vector.broadcast %cst_41 : f32 to vector<8x128xf32>
    %106 = arith.maximumf %104, %105 : vector<8x128xf32>
    %107 = arith.truncf %106 : vector<8x128xf32> to vector<8x128xbf16>
    %cst_42 = arith.constant dense<0.000000e+00> : vector<8x384xf32>
    %108 = tpu.matmul %107, %4, %cst_42 {dimension_numbers = #tpu.dot_dimension_numbers<[1], [0], [0], [1], [0, 0, 1, 1], [], []>} : vector<8x128xbf16>, vector<128x384xbf16>, vector<8x384xf32> -> vector<8x384xf32>
    %109 = arith.addf %108, %11 : vector<8x384xf32>
    %110 = arith.truncf %96 : vector<8x128xf32> to vector<8x128xbf16>
    %cst_43 = arith.constant dense<0.000000e+00> : vector<8x384xf32>
    %111 = tpu.matmul %110, %5, %cst_43 {dimension_numbers = #tpu.dot_dimension_numbers<[1], [0], [0], [1], [0, 0, 1, 1], [], []>} : vector<8x128xbf16>, vector<128x384xbf16>, vector<8x384xf32> -> vector<8x384xf32>
    %112 = vector.extract_strided_slice %109 {offsets = [0, 0], sizes = [8, 128], strides = [1, 1]} : vector<8x384xf32> to vector<8x128xf32>
    %113 = vector.extract_strided_slice %111 {offsets = [0, 0], sizes = [8, 128], strides = [1, 1]} : vector<8x384xf32> to vector<8x128xf32>
    %114 = arith.addf %112, %113 : vector<8x128xf32>
    %115 = arith.negf %114 : vector<8x128xf32>
    %116 = math.exp %115 : vector<8x128xf32>
    %cst_44 = arith.constant 1.000000e+00 : f32
    %117 = vector.broadcast %cst_44 : f32 to vector<8x128xf32>
    %118 = arith.addf %117, %116 : vector<8x128xf32>
    %119 = arith.divf %117, %118 : vector<8x128xf32>
    %120 = vector.extract_strided_slice %109 {offsets = [0, 128], sizes = [8, 128], strides = [1, 1]} : vector<8x384xf32> to vector<8x128xf32>
    %121 = vector.extract_strided_slice %111 {offsets = [0, 128], sizes = [8, 128], strides = [1, 1]} : vector<8x384xf32> to vector<8x128xf32>
    %122 = arith.addf %120, %121 : vector<8x128xf32>
    %123 = arith.negf %122 : vector<8x128xf32>
    %124 = math.exp %123 : vector<8x128xf32>
    %cst_45 = arith.constant 1.000000e+00 : f32
    %125 = vector.broadcast %cst_45 : f32 to vector<8x128xf32>
    %126 = arith.addf %125, %124 : vector<8x128xf32>
    %127 = arith.divf %125, %126 : vector<8x128xf32>
    %128 = vector.extract_strided_slice %109 {offsets = [0, 256], sizes = [8, 128], strides = [1, 1]} : vector<8x384xf32> to vector<8x128xf32>
    %129 = vector.extract_strided_slice %111 {offsets = [0, 256], sizes = [8, 128], strides = [1, 1]} : vector<8x384xf32> to vector<8x128xf32>
    %130 = arith.addf %129, %14 : vector<8x128xf32>
    %131 = arith.mulf %119, %130 : vector<8x128xf32>
    %132 = arith.addf %128, %131 : vector<8x128xf32>
    %133 = math.tanh %132 : vector<8x128xf32>
    %cst_46 = arith.constant 1.000000e+00 : f32
    %134 = vector.broadcast %cst_46 : f32 to vector<8x128xf32>
    %135 = arith.subf %134, %127 : vector<8x128xf32>
    %136 = arith.mulf %135, %133 : vector<8x128xf32>
    %137 = arith.mulf %127, %96 : vector<8x128xf32>
    %138 = arith.addf %136, %137 : vector<8x128xf32>
    %c2_47 = arith.constant 2 : index
    %c0_48 = arith.constant 0 : index
    %c0_49 = arith.constant 0 : index
    %139 = vector.load %arg10[%c2_47, %c0_48, %c0_49] : memref<8x8x128xf32, #tpu.memory_space<vmem>>, vector<1x8x128xf32>
    %140 = vector.shape_cast %139 : vector<1x8x128xf32> to vector<8x128xf32>
    %141 = vector.shape_cast %138 : vector<8x128xf32> to vector<1x8x128xf32>
    tpu.vector_store %arg10[%c2_47, %c0_48, %c0_49], %141 {strides = array<i32>} : memref<8x8x128xf32, #tpu.memory_space<vmem>>, vector<1x8x128xf32>,
    %c3 = arith.constant 3 : index
    %c0_50 = arith.constant 0 : index
    %c0_51 = arith.constant 0 : index
    %142 = vector.load %arg2[%c3, %c0_50, %c0_51] : memref<8x8x32xf32, #tpu.memory_space<vmem>>, vector<1x8x32xf32>
    %143 = vector.shape_cast %142 : vector<1x8x32xf32> to vector<8x32xf32>
    %144 = arith.truncf %143 : vector<8x32xf32> to vector<8x32xbf16>
    %cst_52 = arith.constant dense<0.000000e+00> : vector<8x128xf32>
    %145 = tpu.matmul %144, %3, %cst_52 {dimension_numbers = #tpu.dot_dimension_numbers<[1], [0], [0], [1], [0, 0, 1, 1], [], []>} : vector<8x32xbf16>, vector<32x128xbf16>, vector<8x128xf32> -> vector<8x128xf32>
    %146 = arith.addf %145, %8 : vector<8x128xf32>
    %cst_53 = arith.constant 0.000000e+00 : f32
    %147 = vector.broadcast %cst_53 : f32 to vector<8x128xf32>
    %148 = arith.maximumf %146, %147 : vector<8x128xf32>
    %149 = arith.truncf %148 : vector<8x128xf32> to vector<8x128xbf16>
    %cst_54 = arith.constant dense<0.000000e+00> : vector<8x384xf32>
    %150 = tpu.matmul %149, %4, %cst_54 {dimension_numbers = #tpu.dot_dimension_numbers<[1], [0], [0], [1], [0, 0, 1, 1], [], []>} : vector<8x128xbf16>, vector<128x384xbf16>, vector<8x384xf32> -> vector<8x384xf32>
    %151 = arith.addf %150, %11 : vector<8x384xf32>
    %152 = arith.truncf %138 : vector<8x128xf32> to vector<8x128xbf16>
    %cst_55 = arith.constant dense<0.000000e+00> : vector<8x384xf32>
    %153 = tpu.matmul %152, %5, %cst_55 {dimension_numbers = #tpu.dot_dimension_numbers<[1], [0], [0], [1], [0, 0, 1, 1], [], []>} : vector<8x128xbf16>, vector<128x384xbf16>, vector<8x384xf32> -> vector<8x384xf32>
    %154 = vector.extract_strided_slice %151 {offsets = [0, 0], sizes = [8, 128], strides = [1, 1]} : vector<8x384xf32> to vector<8x128xf32>
    %155 = vector.extract_strided_slice %153 {offsets = [0, 0], sizes = [8, 128], strides = [1, 1]} : vector<8x384xf32> to vector<8x128xf32>
    %156 = arith.addf %154, %155 : vector<8x128xf32>
    %157 = arith.negf %156 : vector<8x128xf32>
    %158 = math.exp %157 : vector<8x128xf32>
    %cst_56 = arith.constant 1.000000e+00 : f32
    %159 = vector.broadcast %cst_56 : f32 to vector<8x128xf32>
    %160 = arith.addf %159, %158 : vector<8x128xf32>
    %161 = arith.divf %159, %160 : vector<8x128xf32>
    %162 = vector.extract_strided_slice %151 {offsets = [0, 128], sizes = [8, 128], strides = [1, 1]} : vector<8x384xf32> to vector<8x128xf32>
    %163 = vector.extract_strided_slice %153 {offsets = [0, 128], sizes = [8, 128], strides = [1, 1]} : vector<8x384xf32> to vector<8x128xf32>
    %164 = arith.addf %162, %163 : vector<8x128xf32>
    %165 = arith.negf %164 : vector<8x128xf32>
    %166 = math.exp %165 : vector<8x128xf32>
    %cst_57 = arith.constant 1.000000e+00 : f32
    %167 = vector.broadcast %cst_57 : f32 to vector<8x128xf32>
    %168 = arith.addf %167, %166 : vector<8x128xf32>
    %169 = arith.divf %167, %168 : vector<8x128xf32>
    %170 = vector.extract_strided_slice %151 {offsets = [0, 256], sizes = [8, 128], strides = [1, 1]} : vector<8x384xf32> to vector<8x128xf32>
    %171 = vector.extract_strided_slice %153 {offsets = [0, 256], sizes = [8, 128], strides = [1, 1]} : vector<8x384xf32> to vector<8x128xf32>
    %172 = arith.addf %171, %14 : vector<8x128xf32>
    %173 = arith.mulf %161, %172 : vector<8x128xf32>
    %174 = arith.addf %170, %173 : vector<8x128xf32>
    %175 = math.tanh %174 : vector<8x128xf32>
    %cst_58 = arith.constant 1.000000e+00 : f32
    %176 = vector.broadcast %cst_58 : f32 to vector<8x128xf32>
    %177 = arith.subf %176, %169 : vector<8x128xf32>
    %178 = arith.mulf %177, %175 : vector<8x128xf32>
    %179 = arith.mulf %169, %138 : vector<8x128xf32>
    %180 = arith.addf %178, %179 : vector<8x128xf32>
    %c3_59 = arith.constant 3 : index
    %c0_60 = arith.constant 0 : index
    %c0_61 = arith.constant 0 : index
    %181 = vector.load %arg10[%c3_59, %c0_60, %c0_61] : memref<8x8x128xf32, #tpu.memory_space<vmem>>, vector<1x8x128xf32>
    %182 = vector.shape_cast %181 : vector<1x8x128xf32> to vector<8x128xf32>
    %183 = vector.shape_cast %180 : vector<8x128xf32> to vector<1x8x128xf32>
    tpu.vector_store %arg10[%c3_59, %c0_60, %c0_61], %183 {strides = array<i32>} : memref<8x8x128xf32, #tpu.memory_space<vmem>>, vector<1x8x128xf32>,
    %c4 = arith.constant 4 : index
    %c0_62 = arith.constant 0 : index
    %c0_63 = arith.constant 0 : index
    %184 = vector.load %arg2[%c4, %c0_62, %c0_63] : memref<8x8x32xf32, #tpu.memory_space<vmem>>, vector<1x8x32xf32>
    %185 = vector.shape_cast %184 : vector<1x8x32xf32> to vector<8x32xf32>
    %186 = arith.truncf %185 : vector<8x32xf32> to vector<8x32xbf16>
    %cst_64 = arith.constant dense<0.000000e+00> : vector<8x128xf32>
    %187 = tpu.matmul %186, %3, %cst_64 {dimension_numbers = #tpu.dot_dimension_numbers<[1], [0], [0], [1], [0, 0, 1, 1], [], []>} : vector<8x32xbf16>, vector<32x128xbf16>, vector<8x128xf32> -> vector<8x128xf32>
    %188 = arith.addf %187, %8 : vector<8x128xf32>
    %cst_65 = arith.constant 0.000000e+00 : f32
    %189 = vector.broadcast %cst_65 : f32 to vector<8x128xf32>
    %190 = arith.maximumf %188, %189 : vector<8x128xf32>
    %191 = arith.truncf %190 : vector<8x128xf32> to vector<8x128xbf16>
    %cst_66 = arith.constant dense<0.000000e+00> : vector<8x384xf32>
    %192 = tpu.matmul %191, %4, %cst_66 {dimension_numbers = #tpu.dot_dimension_numbers<[1], [0], [0], [1], [0, 0, 1, 1], [], []>} : vector<8x128xbf16>, vector<128x384xbf16>, vector<8x384xf32> -> vector<8x384xf32>
    %193 = arith.addf %192, %11 : vector<8x384xf32>
    %194 = arith.truncf %180 : vector<8x128xf32> to vector<8x128xbf16>
    %cst_67 = arith.constant dense<0.000000e+00> : vector<8x384xf32>
    %195 = tpu.matmul %194, %5, %cst_67 {dimension_numbers = #tpu.dot_dimension_numbers<[1], [0], [0], [1], [0, 0, 1, 1], [], []>} : vector<8x128xbf16>, vector<128x384xbf16>, vector<8x384xf32> -> vector<8x384xf32>
    %196 = vector.extract_strided_slice %193 {offsets = [0, 0], sizes = [8, 128], strides = [1, 1]} : vector<8x384xf32> to vector<8x128xf32>
    %197 = vector.extract_strided_slice %195 {offsets = [0, 0], sizes = [8, 128], strides = [1, 1]} : vector<8x384xf32> to vector<8x128xf32>
    %198 = arith.addf %196, %197 : vector<8x128xf32>
    %199 = arith.negf %198 : vector<8x128xf32>
    %200 = math.exp %199 : vector<8x128xf32>
    %cst_68 = arith.constant 1.000000e+00 : f32
    %201 = vector.broadcast %cst_68 : f32 to vector<8x128xf32>
    %202 = arith.addf %201, %200 : vector<8x128xf32>
    %203 = arith.divf %201, %202 : vector<8x128xf32>
    %204 = vector.extract_strided_slice %193 {offsets = [0, 128], sizes = [8, 128], strides = [1, 1]} : vector<8x384xf32> to vector<8x128xf32>
    %205 = vector.extract_strided_slice %195 {offsets = [0, 128], sizes = [8, 128], strides = [1, 1]} : vector<8x384xf32> to vector<8x128xf32>
    %206 = arith.addf %204, %205 : vector<8x128xf32>
    %207 = arith.negf %206 : vector<8x128xf32>
    %208 = math.exp %207 : vector<8x128xf32>
    %cst_69 = arith.constant 1.000000e+00 : f32
    %209 = vector.broadcast %cst_69 : f32 to vector<8x128xf32>
    %210 = arith.addf %209, %208 : vector<8x128xf32>
    %211 = arith.divf %209, %210 : vector<8x128xf32>
    %212 = vector.extract_strided_slice %193 {offsets = [0, 256], sizes = [8, 128], strides = [1, 1]} : vector<8x384xf32> to vector<8x128xf32>
    %213 = vector.extract_strided_slice %195 {offsets = [0, 256], sizes = [8, 128], strides = [1, 1]} : vector<8x384xf32> to vector<8x128xf32>
    %214 = arith.addf %213, %14 : vector<8x128xf32>
    %215 = arith.mulf %203, %214 : vector<8x128xf32>
    %216 = arith.addf %212, %215 : vector<8x128xf32>
    %217 = math.tanh %216 : vector<8x128xf32>
    %cst_70 = arith.constant 1.000000e+00 : f32
    %218 = vector.broadcast %cst_70 : f32 to vector<8x128xf32>
    %219 = arith.subf %218, %211 : vector<8x128xf32>
    %220 = arith.mulf %219, %217 : vector<8x128xf32>
    %221 = arith.mulf %211, %180 : vector<8x128xf32>
    %222 = arith.addf %220, %221 : vector<8x128xf32>
    %c4_71 = arith.constant 4 : index
    %c0_72 = arith.constant 0 : index
    %c0_73 = arith.constant 0 : index
    %223 = vector.load %arg10[%c4_71, %c0_72, %c0_73] : memref<8x8x128xf32, #tpu.memory_space<vmem>>, vector<1x8x128xf32>
    %224 = vector.shape_cast %223 : vector<1x8x128xf32> to vector<8x128xf32>
    %225 = vector.shape_cast %222 : vector<8x128xf32> to vector<1x8x128xf32>
    tpu.vector_store %arg10[%c4_71, %c0_72, %c0_73], %225 {strides = array<i32>} : memref<8x8x128xf32, #tpu.memory_space<vmem>>, vector<1x8x128xf32>,
    %c5 = arith.constant 5 : index
    %c0_74 = arith.constant 0 : index
    %c0_75 = arith.constant 0 : index
    %226 = vector.load %arg2[%c5, %c0_74, %c0_75] : memref<8x8x32xf32, #tpu.memory_space<vmem>>, vector<1x8x32xf32>
    %227 = vector.shape_cast %226 : vector<1x8x32xf32> to vector<8x32xf32>
    %228 = arith.truncf %227 : vector<8x32xf32> to vector<8x32xbf16>
    %cst_76 = arith.constant dense<0.000000e+00> : vector<8x128xf32>
    %229 = tpu.matmul %228, %3, %cst_76 {dimension_numbers = #tpu.dot_dimension_numbers<[1], [0], [0], [1], [0, 0, 1, 1], [], []>} : vector<8x32xbf16>, vector<32x128xbf16>, vector<8x128xf32> -> vector<8x128xf32>
    %230 = arith.addf %229, %8 : vector<8x128xf32>
    %cst_77 = arith.constant 0.000000e+00 : f32
    %231 = vector.broadcast %cst_77 : f32 to vector<8x128xf32>
    %232 = arith.maximumf %230, %231 : vector<8x128xf32>
    %233 = arith.truncf %232 : vector<8x128xf32> to vector<8x128xbf16>
    %cst_78 = arith.constant dense<0.000000e+00> : vector<8x384xf32>
    %234 = tpu.matmul %233, %4, %cst_78 {dimension_numbers = #tpu.dot_dimension_numbers<[1], [0], [0], [1], [0, 0, 1, 1], [], []>} : vector<8x128xbf16>, vector<128x384xbf16>, vector<8x384xf32> -> vector<8x384xf32>
    %235 = arith.addf %234, %11 : vector<8x384xf32>
    %236 = arith.truncf %222 : vector<8x128xf32> to vector<8x128xbf16>
    %cst_79 = arith.constant dense<0.000000e+00> : vector<8x384xf32>
    %237 = tpu.matmul %236, %5, %cst_79 {dimension_numbers = #tpu.dot_dimension_numbers<[1], [0], [0], [1], [0, 0, 1, 1], [], []>} : vector<8x128xbf16>, vector<128x384xbf16>, vector<8x384xf32> -> vector<8x384xf32>
    %238 = vector.extract_strided_slice %235 {offsets = [0, 0], sizes = [8, 128], strides = [1, 1]} : vector<8x384xf32> to vector<8x128xf32>
    %239 = vector.extract_strided_slice %237 {offsets = [0, 0], sizes = [8, 128], strides = [1, 1]} : vector<8x384xf32> to vector<8x128xf32>
    %240 = arith.addf %238, %239 : vector<8x128xf32>
    %241 = arith.negf %240 : vector<8x128xf32>
    %242 = math.exp %241 : vector<8x128xf32>
    %cst_80 = arith.constant 1.000000e+00 : f32
    %243 = vector.broadcast %cst_80 : f32 to vector<8x128xf32>
    %244 = arith.addf %243, %242 : vector<8x128xf32>
    %245 = arith.divf %243, %244 : vector<8x128xf32>
    %246 = vector.extract_strided_slice %235 {offsets = [0, 128], sizes = [8, 128], strides = [1, 1]} : vector<8x384xf32> to vector<8x128xf32>
    %247 = vector.extract_strided_slice %237 {offsets = [0, 128], sizes = [8, 128], strides = [1, 1]} : vector<8x384xf32> to vector<8x128xf32>
    %248 = arith.addf %246, %247 : vector<8x128xf32>
    %249 = arith.negf %248 : vector<8x128xf32>
    %250 = math.exp %249 : vector<8x128xf32>
    %cst_81 = arith.constant 1.000000e+00 : f32
    %251 = vector.broadcast %cst_81 : f32 to vector<8x128xf32>
    %252 = arith.addf %251, %250 : vector<8x128xf32>
    %253 = arith.divf %251, %252 : vector<8x128xf32>
    %254 = vector.extract_strided_slice %235 {offsets = [0, 256], sizes = [8, 128], strides = [1, 1]} : vector<8x384xf32> to vector<8x128xf32>
    %255 = vector.extract_strided_slice %237 {offsets = [0, 256], sizes = [8, 128], strides = [1, 1]} : vector<8x384xf32> to vector<8x128xf32>
    %256 = arith.addf %255, %14 : vector<8x128xf32>
    %257 = arith.mulf %245, %256 : vector<8x128xf32>
    %258 = arith.addf %254, %257 : vector<8x128xf32>
    %259 = math.tanh %258 : vector<8x128xf32>
    %cst_82 = arith.constant 1.000000e+00 : f32
    %260 = vector.broadcast %cst_82 : f32 to vector<8x128xf32>
    %261 = arith.subf %260, %253 : vector<8x128xf32>
    %262 = arith.mulf %261, %259 : vector<8x128xf32>
    %263 = arith.mulf %253, %222 : vector<8x128xf32>
    %264 = arith.addf %262, %263 : vector<8x128xf32>
    %c5_83 = arith.constant 5 : index
    %c0_84 = arith.constant 0 : index
    %c0_85 = arith.constant 0 : index
    %265 = vector.load %arg10[%c5_83, %c0_84, %c0_85] : memref<8x8x128xf32, #tpu.memory_space<vmem>>, vector<1x8x128xf32>
    %266 = vector.shape_cast %265 : vector<1x8x128xf32> to vector<8x128xf32>
    %267 = vector.shape_cast %264 : vector<8x128xf32> to vector<1x8x128xf32>
    tpu.vector_store %arg10[%c5_83, %c0_84, %c0_85], %267 {strides = array<i32>} : memref<8x8x128xf32, #tpu.memory_space<vmem>>, vector<1x8x128xf32>,
    %c6 = arith.constant 6 : index
    %c0_86 = arith.constant 0 : index
    %c0_87 = arith.constant 0 : index
    %268 = vector.load %arg2[%c6, %c0_86, %c0_87] : memref<8x8x32xf32, #tpu.memory_space<vmem>>, vector<1x8x32xf32>
    %269 = vector.shape_cast %268 : vector<1x8x32xf32> to vector<8x32xf32>
    %270 = arith.truncf %269 : vector<8x32xf32> to vector<8x32xbf16>
    %cst_88 = arith.constant dense<0.000000e+00> : vector<8x128xf32>
    %271 = tpu.matmul %270, %3, %cst_88 {dimension_numbers = #tpu.dot_dimension_numbers<[1], [0], [0], [1], [0, 0, 1, 1], [], []>} : vector<8x32xbf16>, vector<32x128xbf16>, vector<8x128xf32> -> vector<8x128xf32>
    %272 = arith.addf %271, %8 : vector<8x128xf32>
    %cst_89 = arith.constant 0.000000e+00 : f32
    %273 = vector.broadcast %cst_89 : f32 to vector<8x128xf32>
    %274 = arith.maximumf %272, %273 : vector<8x128xf32>
    %275 = arith.truncf %274 : vector<8x128xf32> to vector<8x128xbf16>
    %cst_90 = arith.constant dense<0.000000e+00> : vector<8x384xf32>
    %276 = tpu.matmul %275, %4, %cst_90 {dimension_numbers = #tpu.dot_dimension_numbers<[1], [0], [0], [1], [0, 0, 1, 1], [], []>} : vector<8x128xbf16>, vector<128x384xbf16>, vector<8x384xf32> -> vector<8x384xf32>
    %277 = arith.addf %276, %11 : vector<8x384xf32>
    %278 = arith.truncf %264 : vector<8x128xf32> to vector<8x128xbf16>
    %cst_91 = arith.constant dense<0.000000e+00> : vector<8x384xf32>
    %279 = tpu.matmul %278, %5, %cst_91 {dimension_numbers = #tpu.dot_dimension_numbers<[1], [0], [0], [1], [0, 0, 1, 1], [], []>} : vector<8x128xbf16>, vector<128x384xbf16>, vector<8x384xf32> -> vector<8x384xf32>
    %280 = vector.extract_strided_slice %277 {offsets = [0, 0], sizes = [8, 128], strides = [1, 1]} : vector<8x384xf32> to vector<8x128xf32>
    %281 = vector.extract_strided_slice %279 {offsets = [0, 0], sizes = [8, 128], strides = [1, 1]} : vector<8x384xf32> to vector<8x128xf32>
    %282 = arith.addf %280, %281 : vector<8x128xf32>
    %283 = arith.negf %282 : vector<8x128xf32>
    %284 = math.exp %283 : vector<8x128xf32>
    %cst_92 = arith.constant 1.000000e+00 : f32
    %285 = vector.broadcast %cst_92 : f32 to vector<8x128xf32>
    %286 = arith.addf %285, %284 : vector<8x128xf32>
    %287 = arith.divf %285, %286 : vector<8x128xf32>
    %288 = vector.extract_strided_slice %277 {offsets = [0, 128], sizes = [8, 128], strides = [1, 1]} : vector<8x384xf32> to vector<8x128xf32>
    %289 = vector.extract_strided_slice %279 {offsets = [0, 128], sizes = [8, 128], strides = [1, 1]} : vector<8x384xf32> to vector<8x128xf32>
    %290 = arith.addf %288, %289 : vector<8x128xf32>
    %291 = arith.negf %290 : vector<8x128xf32>
    %292 = math.exp %291 : vector<8x128xf32>
    %cst_93 = arith.constant 1.000000e+00 : f32
    %293 = vector.broadcast %cst_93 : f32 to vector<8x128xf32>
    %294 = arith.addf %293, %292 : vector<8x128xf32>
    %295 = arith.divf %293, %294 : vector<8x128xf32>
    %296 = vector.extract_strided_slice %277 {offsets = [0, 256], sizes = [8, 128], strides = [1, 1]} : vector<8x384xf32> to vector<8x128xf32>
    %297 = vector.extract_strided_slice %279 {offsets = [0, 256], sizes = [8, 128], strides = [1, 1]} : vector<8x384xf32> to vector<8x128xf32>
    %298 = arith.addf %297, %14 : vector<8x128xf32>
    %299 = arith.mulf %287, %298 : vector<8x128xf32>
    %300 = arith.addf %296, %299 : vector<8x128xf32>
    %301 = math.tanh %300 : vector<8x128xf32>
    %cst_94 = arith.constant 1.000000e+00 : f32
    %302 = vector.broadcast %cst_94 : f32 to vector<8x128xf32>
    %303 = arith.subf %302, %295 : vector<8x128xf32>
    %304 = arith.mulf %303, %301 : vector<8x128xf32>
    %305 = arith.mulf %295, %264 : vector<8x128xf32>
    %306 = arith.addf %304, %305 : vector<8x128xf32>
    %c6_95 = arith.constant 6 : index
    %c0_96 = arith.constant 0 : index
    %c0_97 = arith.constant 0 : index
    %307 = vector.load %arg10[%c6_95, %c0_96, %c0_97] : memref<8x8x128xf32, #tpu.memory_space<vmem>>, vector<1x8x128xf32>
    %308 = vector.shape_cast %307 : vector<1x8x128xf32> to vector<8x128xf32>
    %309 = vector.shape_cast %306 : vector<8x128xf32> to vector<1x8x128xf32>
    tpu.vector_store %arg10[%c6_95, %c0_96, %c0_97], %309 {strides = array<i32>} : memref<8x8x128xf32, #tpu.memory_space<vmem>>, vector<1x8x128xf32>,
    %c7 = arith.constant 7 : index
    %c0_98 = arith.constant 0 : index
    %c0_99 = arith.constant 0 : index
    %310 = vector.load %arg2[%c7, %c0_98, %c0_99] : memref<8x8x32xf32, #tpu.memory_space<vmem>>, vector<1x8x32xf32>
    %311 = vector.shape_cast %310 : vector<1x8x32xf32> to vector<8x32xf32>
    %312 = arith.truncf %311 : vector<8x32xf32> to vector<8x32xbf16>
    %cst_100 = arith.constant dense<0.000000e+00> : vector<8x128xf32>
    %313 = tpu.matmul %312, %3, %cst_100 {dimension_numbers = #tpu.dot_dimension_numbers<[1], [0], [0], [1], [0, 0, 1, 1], [], []>} : vector<8x32xbf16>, vector<32x128xbf16>, vector<8x128xf32> -> vector<8x128xf32>
    %314 = arith.addf %313, %8 : vector<8x128xf32>
    %cst_101 = arith.constant 0.000000e+00 : f32
    %315 = vector.broadcast %cst_101 : f32 to vector<8x128xf32>
    %316 = arith.maximumf %314, %315 : vector<8x128xf32>
    %317 = arith.truncf %316 : vector<8x128xf32> to vector<8x128xbf16>
    %cst_102 = arith.constant dense<0.000000e+00> : vector<8x384xf32>
    %318 = tpu.matmul %317, %4, %cst_102 {dimension_numbers = #tpu.dot_dimension_numbers<[1], [0], [0], [1], [0, 0, 1, 1], [], []>} : vector<8x128xbf16>, vector<128x384xbf16>, vector<8x384xf32> -> vector<8x384xf32>
    %319 = arith.addf %318, %11 : vector<8x384xf32>
    %320 = arith.truncf %306 : vector<8x128xf32> to vector<8x128xbf16>
    %cst_103 = arith.constant dense<0.000000e+00> : vector<8x384xf32>
    %321 = tpu.matmul %320, %5, %cst_103 {dimension_numbers = #tpu.dot_dimension_numbers<[1], [0], [0], [1], [0, 0, 1, 1], [], []>} : vector<8x128xbf16>, vector<128x384xbf16>, vector<8x384xf32> -> vector<8x384xf32>
    %322 = vector.extract_strided_slice %319 {offsets = [0, 0], sizes = [8, 128], strides = [1, 1]} : vector<8x384xf32> to vector<8x128xf32>
    %323 = vector.extract_strided_slice %321 {offsets = [0, 0], sizes = [8, 128], strides = [1, 1]} : vector<8x384xf32> to vector<8x128xf32>
    %324 = arith.addf %322, %323 : vector<8x128xf32>
    %325 = arith.negf %324 : vector<8x128xf32>
    %326 = math.exp %325 : vector<8x128xf32>
    %cst_104 = arith.constant 1.000000e+00 : f32
    %327 = vector.broadcast %cst_104 : f32 to vector<8x128xf32>
    %328 = arith.addf %327, %326 : vector<8x128xf32>
    %329 = arith.divf %327, %328 : vector<8x128xf32>
    %330 = vector.extract_strided_slice %319 {offsets = [0, 128], sizes = [8, 128], strides = [1, 1]} : vector<8x384xf32> to vector<8x128xf32>
    %331 = vector.extract_strided_slice %321 {offsets = [0, 128], sizes = [8, 128], strides = [1, 1]} : vector<8x384xf32> to vector<8x128xf32>
    %332 = arith.addf %330, %331 : vector<8x128xf32>
    %333 = arith.negf %332 : vector<8x128xf32>
    %334 = math.exp %333 : vector<8x128xf32>
    %cst_105 = arith.constant 1.000000e+00 : f32
    %335 = vector.broadcast %cst_105 : f32 to vector<8x128xf32>
    %336 = arith.addf %335, %334 : vector<8x128xf32>
    %337 = arith.divf %335, %336 : vector<8x128xf32>
    %338 = vector.extract_strided_slice %319 {offsets = [0, 256], sizes = [8, 128], strides = [1, 1]} : vector<8x384xf32> to vector<8x128xf32>
    %339 = vector.extract_strided_slice %321 {offsets = [0, 256], sizes = [8, 128], strides = [1, 1]} : vector<8x384xf32> to vector<8x128xf32>
    %340 = arith.addf %339, %14 : vector<8x128xf32>
    %341 = arith.mulf %329, %340 : vector<8x128xf32>
    %342 = arith.addf %338, %341 : vector<8x128xf32>
    %343 = math.tanh %342 : vector<8x128xf32>
    %cst_106 = arith.constant 1.000000e+00 : f32
    %344 = vector.broadcast %cst_106 : f32 to vector<8x128xf32>
    %345 = arith.subf %344, %337 : vector<8x128xf32>
    %346 = arith.mulf %345, %343 : vector<8x128xf32>
    %347 = arith.mulf %337, %306 : vector<8x128xf32>
    %348 = arith.addf %346, %347 : vector<8x128xf32>
    %c7_107 = arith.constant 7 : index
    %c0_108 = arith.constant 0 : index
    %c0_109 = arith.constant 0 : index
    %349 = vector.load %arg10[%c7_107, %c0_108, %c0_109] : memref<8x8x128xf32, #tpu.memory_space<vmem>>, vector<1x8x128xf32>
    %350 = vector.shape_cast %349 : vector<1x8x128xf32> to vector<8x128xf32>
    %351 = vector.shape_cast %348 : vector<8x128xf32> to vector<1x8x128xf32>
    tpu.vector_store %arg10[%c7_107, %c0_108, %c0_109], %351 {strides = array<i32>} : memref<8x8x128xf32, #tpu.memory_space<vmem>>, vector<1x8x128xf32>,
    %c0_110 = arith.constant 0 : index
    %c0_111 = arith.constant 0 : index
    %352 = vector.load %arg11[%c0_110, %c0_111] : memref<8x128xf32, #tpu.memory_space<vmem>>, vector<8x128xf32>
    tpu.vector_store %arg11[%c0_110, %c0_111], %348 {strides = array<i32>} : memref<8x128xf32, #tpu.memory_space<vmem>>, vector<8x128xf32>,
    return
  }
  func.func @transform_0(%arg0: i32, %arg1: i32) -> (i32, i32, i32) {
    %c0_i32 = arith.constant 0 : i32
    %c0_i32_0 = arith.constant 0 : i32
    return %arg1, %arg0, %c0_i32 : i32, i32, i32
  }
  func.func @transform_1(%arg0: i32, %arg1: i32) -> (i32, i32) {
    %c0_i32 = arith.constant 0 : i32
    %c0_i32_0 = arith.constant 0 : i32
    return %arg0, %c0_i32 : i32, i32
  }
  func.func @transform_2(%arg0: i32, %arg1: i32) -> (i32, i32) {
    %c0_i32 = arith.constant 0 : i32
    %c0_i32_0 = arith.constant 0 : i32
    %c0_i32_1 = arith.constant 0 : i32
    return %c0_i32, %c0_i32_0 : i32, i32
  }
  func.func @transform_3(%arg0: i32, %arg1: i32) -> (i32, i32) {
    %c0_i32 = arith.constant 0 : i32
    %c0_i32_0 = arith.constant 0 : i32
    %c0_i32_1 = arith.constant 0 : i32
    return %c0_i32, %c0_i32_0 : i32, i32
  }
  func.func @transform_4(%arg0: i32, %arg1: i32) -> (i32, i32) {
    %c0_i32 = arith.constant 0 : i32
    %c0_i32_0 = arith.constant 0 : i32
    %c0_i32_1 = arith.constant 0 : i32
    return %c0_i32, %c0_i32_0 : i32, i32
  }
  func.func @transform_5(%arg0: i32, %arg1: i32) -> (i32, i32) {
    %c0_i32 = arith.constant 0 : i32
    %c0_i32_0 = arith.constant 0 : i32
    %c0_i32_1 = arith.constant 0 : i32
    return %c0_i32, %c0_i32_0 : i32, i32
  }
  func.func @transform_6(%arg0: i32, %arg1: i32) -> (i32, i32) {
    %c0_i32 = arith.constant 0 : i32
    %c0_i32_0 = arith.constant 0 : i32
    %c0_i32_1 = arith.constant 0 : i32
    return %c0_i32, %c0_i32_0 : i32, i32
  }
  func.func @transform_7(%arg0: i32, %arg1: i32) -> (i32, i32) {
    %c0_i32 = arith.constant 0 : i32
    %c0_i32_0 = arith.constant 0 : i32
    %c0_i32_1 = arith.constant 0 : i32
    return %c0_i32, %c0_i32_0 : i32, i32
  }
  func.func @transform_8(%arg0: i32, %arg1: i32) -> (i32, i32, i32) {
    %c0_i32 = arith.constant 0 : i32
    %c0_i32_0 = arith.constant 0 : i32
    return %arg1, %arg0, %c0_i32 : i32, i32, i32
  }
}

</mosaic_0001>

<llo_original>
// kernel: tpu_custom_call.1
$region0: #{tpu_custom_call.1}
  #allocation0 [shape = 'u32[]', space=smem, size = 0x4, offset = 0x4, fixed_abs, tag = 'smem constant byte address 0x4 - core index']
  #allocation1 [shape = 'u32[144,128]{1,0:T(1,128)}', space=vmem, size = 0x12000, scoped, tag = 'internal scratch']
  #allocation2 [shape = 'f32[8,128]{1,0:T(8,128)}', space=vmem, size = 0x1000, scoped, tag = 'scratch operand']
  %s0 = inlined_call_operand.hbm [shape: f32[8,8,32], index: 0, kind: input, shape index: {}]
  %s1 = inlined_call_operand.hbm [shape: f32[8,128], index: 1, kind: input, shape index: {}]
  %s2 = inlined_call_operand.hbm [shape: bf16[32,128], index: 2, kind: input, shape index: {}]
  %s3 = inlined_call_operand.hbm [shape: bf16[128,384], index: 3, kind: input, shape index: {}]
  %s4 = inlined_call_operand.hbm [shape: bf16[128,384], index: 4, kind: input, shape index: {}]
  %s5 = inlined_call_operand.vmem [shape: f32[1,128], index: 5, kind: input, shape index: {}]
  %s6 = inlined_call_operand.vmem [shape: f32[1,384], index: 6, kind: input, shape index: {}]
  %s7 = inlined_call_operand.vmem [shape: f32[1,128], index: 7, kind: input, shape index: {}]
  %s8 = inlined_call_operand.hbm [shape: f32[8,8,128], index: 8, kind: output, shape index: {}]
  %s9 = sld [smem:[#allocation0]]
  $region66: #{tpu_custom_call.1} parent=0
    _
  %s11 = ssub.s32 1, %s9
  %s12 = scalar_select 0, %s11, %s9
  $region1: #{tpu_custom_call.1} parent=0
    #allocation3 [shape = 'u8[32768]{0}', space=vmem, size = 0x8000, scoped, tag = 'input window, operand 0, single buffered']
    #allocation4 [shape = 's32[1]{0}', space=sflag, size = 0x4, scoped, tag = 'scoped memory for tpu_custom_call.1']
    #allocation5 [shape = 's32[1]{0}', space=sflag, size = 0x4, scoped, tag = 'scoped memory for tpu_custom_call.1']
    #allocation6 [shape = 'u8[4096]{0}', space=vmem, size = 0x1000, scoped, tag = 'input window, operand 1, single buffered']
    #allocation7 [shape = 's32[1]{0}', space=sflag, size = 0x4, scoped, tag = 'scoped memory for tpu_custom_call.1']
    #allocation8 [shape = 'u8[8192]{0}', space=vmem, size = 0x2000, scoped, tag = 'input window, operand 2, single buffered']
    #allocation9 [shape = 'u8[98304]{0}', space=vmem, size = 0x18000, scoped, tag = 'input window, operand 3, single buffered']
    #allocation10 [shape = 's32[1]{0}', space=sflag, size = 0x4, scoped, tag = 'scoped memory for tpu_custom_call.1']
    #allocation11 [shape = 'u8[98304]{0}', space=vmem, size = 0x18000, scoped, tag = 'input window, operand 4, single buffered']
    #allocation12 [shape = 'u8[32768]{0}', space=vmem, size = 0x8000, scoped, tag = 'output window, operand 0, single buffered']
    %13 = vsyncpa [#allocation4], 0
    %14 = vsyncpa [#allocation7], 0
    %15 = vsyncpa [#allocation10], 0
    %16 = vsyncpa [#allocation5], 0
    // Predicated region
    $region2: #{tpu_custom_call.1} parent=1 // pred_check
      _
    $region3: #{tpu_custom_call.1} parent=1 // pred_check_branch
      %18 = sbr.rel (0) target = $region5
    $region4: #{tpu_custom_call.1} parent=1 // pred_region
      %s20 = ssub.s32 1024, 1024
      %21 = vsyncadd [#allocation4], %s20
      %s22 = sshll.u32 [#allocation3], 4
      %s23 = int_to_ptr.vmem [resolvable:$true] %s22
      %28 = dma.hbm_to_vmem [thread:$0]  %s0, 1024, %s23, [#allocation4], 128, 128, 8
    $region5: #{tpu_custom_call.1} parent=1 // pred_fallthru
      _
    // Predicated region
    $region6: #{tpu_custom_call.1} parent=1 // pred_check
      _
    $region7: #{tpu_custom_call.1} parent=1 // pred_check_branch
      %30 = sbr.rel (0) target = $region9
    $region8: #{tpu_custom_call.1} parent=1 // pred_region
      %s32 = ssub.s32 128, 128
      %33 = vsyncadd [#allocation7], %s32
      %s35 = sshll.u32 [#allocation6], 4
      %s36 = int_to_ptr.vmem [resolvable:$true] %s35
      %38 = dma.hbm_to_vmem [thread:$0]  %s1, 128, %s36, [#allocation7]
    $region9: #{tpu_custom_call.1} parent=1 // pred_fallthru
      _
    // Predicated region
    $region10: #{tpu_custom_call.1} parent=1 // pred_check
      _
    $region11: #{tpu_custom_call.1} parent=1 // pred_check_branch
      %40 = sbr.rel (0) target = $region13
    $region12: #{tpu_custom_call.1} parent=1 // pred_region
      %s42 = ssub.s32 256, 256
      %43 = vsyncadd [#allocation7], %s42
      %s44 = sshll.u32 [#allocation8], 4
      %s45 = int_to_ptr.vmem [resolvable:$true] %s44
      %50 = dma.hbm_to_vmem [thread:$0]  %s2, 256, %s45, [#allocation7], 64, 64, 4
    $region13: #{tpu_custom_call.1} parent=1 // pred_fallthru
      _
    // Predicated region
    $region14: #{tpu_custom_call.1} parent=1 // pred_check
      _
    $region15: #{tpu_custom_call.1} parent=1 // pred_check_branch
      %52 = sbr.rel (0) target = $region17
    $region16: #{tpu_custom_call.1} parent=1 // pred_region
      %s54 = ssub.s32 3072, 3072
      %55 = vsyncadd [#allocation10], %s54
      %s56 = sshll.u32 [#allocation9], 4
      %s57 = int_to_ptr.vmem [resolvable:$true] %s56
      %62 = dma.hbm_to_vmem [thread:$0]  %s3, 3072, %s57, [#allocation10], 192, 192, 12
    $region17: #{tpu_custom_call.1} parent=1 // pred_fallthru
      _
    // Predicated region
    $region18: #{tpu_custom_call.1} parent=1 // pred_check
      _
    $region19: #{tpu_custom_call.1} parent=1 // pred_check_branch
      %64 = sbr.rel (0) target = $region21
    $region20: #{tpu_custom_call.1} parent=1 // pred_region
      %s66 = ssub.s32 3072, 3072
      %67 = vsyncadd [#allocation10], %s66
      %s68 = sshll.u32 [#allocation11], 4
      %s69 = int_to_ptr.vmem [resolvable:$true] %s68
      %74 = dma.hbm_to_vmem [thread:$0]  %s4, 3072, %s69, [#allocation10], 192, 192, 12
    $region21: #{tpu_custom_call.1} parent=1 // pred_fallthru
      _
    // Predicated region
    $region22: #{tpu_custom_call.1} parent=1 // pred_check
      _
    $region23: #{tpu_custom_call.1} parent=1 // pred_check_branch
      %76 = sbr.rel (0) target = $region25
    $region24: #{tpu_custom_call.1} parent=1 // pred_region
      _
    $region25: #{tpu_custom_call.1} parent=1 // pred_fallthru
      _
    // Predicated region
    $region26: #{tpu_custom_call.1} parent=1 // pred_check
      _
    $region27: #{tpu_custom_call.1} parent=1 // pred_check_branch
      %78 = sbr.rel (0) target = $region29
    $region28: #{tpu_custom_call.1} parent=1 // pred_region
      _
    $region29: #{tpu_custom_call.1} parent=1 // pred_fallthru
      _
    // Predicated region
    $region30: #{tpu_custom_call.1} parent=1 // pred_check
      _
    $region31: #{tpu_custom_call.1} parent=1 // pred_check_branch
      %80 = sbr.rel (0) target = $region33
    $region32: #{tpu_custom_call.1} parent=1 // pred_region
      _
    $region33: #{tpu_custom_call.1} parent=1 // pred_fallthru
      _
    // Predicated region
    $region34: #{tpu_custom_call.1} parent=1 // pred_check
      _
    $region35: #{tpu_custom_call.1} parent=1 // pred_check_branch
      %82 = sbr.rel (0) target = $region37
    $region36: #{tpu_custom_call.1} parent=1 // pred_region
      %83 = dma.done [#allocation4], 1024
    $region37: #{tpu_custom_call.1} parent=1 // pred_fallthru
      _
    // Predicated region
    $region38: #{tpu_custom_call.1} parent=1 // pred_check
      _
    $region39: #{tpu_custom_call.1} parent=1 // pred_check_branch
      %85 = sbr.rel (0) target = $region41
    $region40: #{tpu_custom_call.1} parent=1 // pred_region
      %86 = dma.done [#allocation7], 128
    $region41: #{tpu_custom_call.1} parent=1 // pred_fallthru
      _
    // Predicated region
    $region42: #{tpu_custom_call.1} parent=1 // pred_check
      _
    $region43: #{tpu_custom_call.1} parent=1 // pred_check_branch
      %88 = sbr.rel (0) target = $region45
    $region44: #{tpu_custom_call.1} parent=1 // pred_region
      %89 = dma.done [#allocation7], 256
    $region45: #{tpu_custom_call.1} parent=1 // pred_fallthru
      _
    // Predicated region
    $region46: #{tpu_custom_call.1} parent=1 // pred_check
      _
    $region47: #{tpu_custom_call.1} parent=1 // pred_check_branch
      %91 = sbr.rel (0) target = $region49
    $region48: #{tpu_custom_call.1} parent=1 // pred_region
      %92 = dma.done [#allocation10], 3072
    $region49: #{tpu_custom_call.1} parent=1 // pred_fallthru
      _
    // Predicated region
    $region50: #{tpu_custom_call.1} parent=1 // pred_check
      _
    $region51: #{tpu_custom_call.1} parent=1 // pred_check_branch
      %94 = sbr.rel (0) target = $region53
    $region52: #{tpu_custom_call.1} parent=1 // pred_region
      %95 = dma.done [#allocation10], 3072
    $region53: #{tpu_custom_call.1} parent=1 // pred_fallthru
      _
    %p97 = scmp.eq.s32.totalorder 0, 0
    // Predicated region
    $region54: #{tpu_custom_call.1} parent=1 // pred_check
      %p98 = pneg %p97
    $region55: #{tpu_custom_call.1} parent=1 // pred_check_branch
      %100 = sbr.rel (%p98) target = $region57
    $region56: #{tpu_custom_call.1} parent=1 // pred_region
      %v101 = vld [vmem:[#allocation6] sm:$0xff]
      %102 = vst [vmem:[#allocation2] sm:$0xff] %v101
    $region57: #{tpu_custom_call.1} parent=1 // pred_fallthru
      _
    %v103 = vld [vmem:[#allocation8] sm:$0xf]
    %v104 = vld [vmem:[#allocation8 + $0x4] sm:$0xf]
    %v105 = vld [vmem:[#allocation8 + $0x8] sm:$0xf]
    %v106 = vld [vmem:[#allocation8 + $0xc] sm:$0xf]
    %v107 = vld [vmem:[#allocation9] sm:$0xff]
    %v108 = vld [vmem:[#allocation9 + $0x8] sm:$0xf]
    %v109 = vld [vmem:[#allocation9 + $0xc] sm:$0xff]
    %v110 = vld [vmem:[#allocation9 + $0x14] sm:$0xf]
    %v111 = vld [vmem:[#allocation9 + $0x18] sm:$0xff]
    %v112 = vld [vmem:[#allocation9 + $0x20] sm:$0xf]
    %v113 = vld [vmem:[#allocation9 + $0x24] sm:$0xff]
    %v114 = vld [vmem:[#allocation9 + $0x2c] sm:$0xf]
    %v115 = vld [vmem:[#allocation9 + $0x30] sm:$0xff]
    %v116 = vld [vmem:[#allocation9 + $0x38] sm:$0xf]
    %v117 = vld [vmem:[#allocation9 + $0x3c] sm:$0xff]
    %v118 = vld [vmem:[#allocation9 + $0x44] sm:$0xf]
    %v119 = vld [vmem:[#allocation9 + $0x48] sm:$0xff]
    %v120 = vld [vmem:[#allocation9 + $0x50] sm:$0xf]
    %v121 = vld [vmem:[#allocation9 + $0x54] sm:$0xff]
    %v122 = vld [vmem:[#allocation9 + $0x5c] sm:$0xf]
    %v123 = vld [vmem:[#allocation9 + $0x60] sm:$0xff]
    %v124 = vld [vmem:[#allocation9 + $0x68] sm:$0xf]
    %v125 = vld [vmem:[#allocation9 + $0x6c] sm:$0xff]
    %v126 = vld [vmem:[#allocation9 + $0x74] sm:$0xf]
    %v127 = vld [vmem:[#allocation9 + $0x78] sm:$0xff]
    %v128 = vld [vmem:[#allocation9 + $0x80] sm:$0xf]
    %v129 = vld [vmem:[#allocation9 + $0x84] sm:$0xff]
    %v130 = vld [vmem:[#allocation9 + $0x8c] sm:$0xf]
    %v131 = vld [vmem:[#allocation9 + $0x90] sm:$0xff]
    %v132 = vld [vmem:[#allocation9 + $0x98] sm:$0xf]
    %v133 = vld [vmem:[#allocation9 + $0x9c] sm:$0xff]
    %v134 = vld [vmem:[#allocation9 + $0xa4] sm:$0xf]
    %v135 = vld [vmem:[#allocation9 + $0xa8] sm:$0xff]
    %v136 = vld [vmem:[#allocation9 + $0xb0] sm:$0xf]
    %v137 = vld [vmem:[#allocation9 + $0xb4] sm:$0xff]
    %v138 = vld [vmem:[#allocation9 + $0xbc] sm:$0xf]
    %v139 = vld [vmem:[#allocation11] sm:$0xff]
    %v140 = vld [vmem:[#allocation11 + $0x8] sm:$0xf]
    %v141 = vld [vmem:[#allocation11 + $0xc] sm:$0xff]
    %v142 = vld [vmem:[#allocation11 + $0x14] sm:$0xf]
    %v143 = vld [vmem:[#allocation11 + $0x18] sm:$0xff]
    %v144 = vld [vmem:[#allocation11 + $0x20] sm:$0xf]
    %v145 = vld [vmem:[#allocation11 + $0x24] sm:$0xff]
    %v146 = vld [vmem:[#allocation11 + $0x2c] sm:$0xf]
    %v147 = vld [vmem:[#allocation11 + $0x30] sm:$0xff]
    %v148 = vld [vmem:[#allocation11 + $0x38] sm:$0xf]
    %v149 = vld [vmem:[#allocation11 + $0x3c] sm:$0xff]
    %v150 = vld [vmem:[#allocation11 + $0x44] sm:$0xf]
    %v151 = vld [vmem:[#allocation11 + $0x48] sm:$0xff]
    %v152 = vld [vmem:[#allocation11 + $0x50] sm:$0xf]
    %v153 = vld [vmem:[#allocation11 + $0x54] sm:$0xff]
    %v154 = vld [vmem:[#allocation11 + $0x5c] sm:$0xf]
    %v155 = vld [vmem:[#allocation11 + $0x60] sm:$0xff]
    %v156 = vld [vmem:[#allocation11 + $0x68] sm:$0xf]
    %v157 = vld [vmem:[#allocation11 + $0x6c] sm:$0xff]
    %v158 = vld [vmem:[#allocation11 + $0x74] sm:$0xf]
    %v159 = vld [vmem:[#allocation11 + $0x78] sm:$0xff]
    %v160 = vld [vmem:[#allocation11 + $0x80] sm:$0xf]
    %v161 = vld [vmem:[#allocation11 + $0x84] sm:$0xff]
    %v162 = vld [vmem:[#allocation11 + $0x8c] sm:$0xf]
    %v163 = vld [vmem:[#allocation11 + $0x90] sm:$0xff]
    %v164 = vld [vmem:[#allocation11 + $0x98] sm:$0xf]
    %v165 = vld [vmem:[#allocation11 + $0x9c] sm:$0xff]
    %v166 = vld [vmem:[#allocation11 + $0xa4] sm:$0xf]
    %v167 = vld [vmem:[#allocation11 + $0xa8] sm:$0xff]
    %v168 = vld [vmem:[#allocation11 + $0xb0] sm:$0xf]
    %v169 = vld [vmem:[#allocation11 + $0xb4] sm:$0xff]
    %v170 = vld [vmem:[#allocation11 + $0xbc] sm:$0xf]
    %v171 = vld [vmem:[%s5] sm:$0x1]
    %v173 = vlaneseq
    %v174 = vshrl.u32 %v173, 7
    %v175 = vsub.s32 0, %v174
    %v176 = vrot.slane %v171, %v175
    %v178 = vld [vmem:[%s6] sm:$0x7]
    %v180 = vlaneseq
    %v181 = vshrl.u32 %v180, 7
    %v182 = vsub.s32 0, %v181
    %v183 = vrot.slane %v178, %v182
    %v184 = vlaneseq
    %v185 = vshrl.u32 %v184, 7
    %v186 = vsub.s32 1, %v185
    %v187 = vrot.slane %v178, %v186
    %v188 = vlaneseq
    %v189 = vshrl.u32 %v188, 7
    %v190 = vsub.s32 2, %v189
    %v191 = vrot.slane %v178, %v190
    %v195 = vld [vmem:[%s7] sm:$0x1]
    %v197 = vlaneseq
    %v198 = vshrl.u32 %v197, 7
    %v199 = vsub.s32 0, %v198
    %v200 = vrot.slane %v195, %v199
    %v202 = vld [vmem:[#allocation2] sm:$0xff]
    %v203 = vld [vmem:[#allocation3] sm:$0xff]
    %v204 = vpack.c.bf16 %v203, %v203
    %v209 = vunpack.c.l.b16 %v103
    %v210 = vunpack.c.l.b16 %v104
    %v211 = vunpack.c.l.b16 %v105
    %v212 = vunpack.c.l.b16 %v106
    %v213 = vpack.c.b16 %v210, %v209
    %v214 = vpack.c.b16 %v212, %v211
    %vm217 = vcmask 261120
    %v219 = vsel %vm217, %v204, 0
    %221 = vmatprep.subr.bf16.mxu0 0
    %222 = vmatpush1.bf16.msra.mxu0 0
    %223 = vmatprep.subr.bf16.mxu0 0
    %224 = vmatpush1.bf16.msra.mxu0 0
    %225 = vmatprep.subr.bf16.mxu0 0
    %226 = vmatpush1.bf16.msra.mxu0 0
    %227 = vmatprep.subr.bf16.mxu0 0
    %228 = vmatpush1.bf16.msra.mxu0 0
    %229 = vmatprep.subr.bf16.mxu0 0
    %230 = vmatpush1.bf16.msra.mxu0 0
    %231 = vmatprep.subr.bf16.mxu0 0
    %232 = vmatpush1.bf16.msra.mxu0 0
    %233 = vmatprep.subr.bf16.mxu0 0
    %234 = vmatpush1.bf16.msra.mxu0 %v214
    %235 = vmatprep.subr.bf16.mxu0 0
    %236 = vmatpush1.bf16.msra.mxu0 %v213
    %237 = vmatprep.subr.bf16.mxu0 0
    %238 = vmatpush2.bf16.msra.mxu0 0
    %239 = vmatprep.subr.bf16.mxu0 0
    %240 = vmatpush2.bf16.msra.mxu0 0
    %241 = vmatprep.subr.bf16.mxu0 0
    %242 = vmatpush2.bf16.msra.mxu0 0
    %243 = vmatprep.subr.bf16.mxu0 0
    %244 = vmatpush2.bf16.msra.mxu0 0
    %245 = vmatprep.subr.bf16.mxu0 0
    %246 = vmatpush2.bf16.msra.mxu0 0
    %247 = vmatprep.subr.bf16.mxu0 0
    %248 = vmatpush2.bf16.msra.mxu0 0
    %249 = vmatprep.subr.bf16.mxu0 0
    %250 = vmatpush2.bf16.msra.mxu0 0
    %251 = vmatprep.subr.bf16.mxu0 0
    %252 = vmatpush2.bf16.msra.mxu0 0
    %253 = vmatprep.mubr.bf16.mxu0 0
    %254 = vmatmul.mubr.bf16.gmra.mxu0 %v219
    %v255 = vpop.f32.mrf.mxu0
    %v256 = vadd.f32 %v176, %v255
    %v257 = vpop.f32.mrf.mxu0
    %v258 = vpop.f32.mrf.mxu0
    %v259 = vpop.f32.mrf.mxu0
    %260 = vdwg.mxu0
    %v261 = vmax.f32 %v256, 0.0
    %v262 = vpack.c.bf16 %v261, %v261
    %v295 = vunpack.c.l.b16 %v107
    %v296 = vunpack.c.h.b16 %v107
    %v297 = vunpack.c.l.b16 %v108
    %v298 = vunpack.c.l.b16 %v109
    %v299 = vunpack.c.h.b16 %v109
    %v300 = vunpack.c.l.b16 %v110
    %v301 = vunpack.c.l.b16 %v111
    %v302 = vunpack.c.h.b16 %v111
    %v303 = vunpack.c.l.b16 %v112
    %v304 = vunpack.c.l.b16 %v113
    %v305 = vunpack.c.h.b16 %v113
    %v306 = vunpack.c.l.b16 %v114
    %v307 = vunpack.c.l.b16 %v115
    %v308 = vunpack.c.h.b16 %v115
    %v309 = vunpack.c.l.b16 %v116
    %v310 = vunpack.c.l.b16 %v117
    %v311 = vunpack.c.h.b16 %v117
    %v312 = vunpack.c.l.b16 %v118
    %v313 = vunpack.c.l.b16 %v119
    %v314 = vunpack.c.h.b16 %v119
    %v315 = vunpack.c.l.b16 %v120
    %v316 = vunpack.c.l.b16 %v121
    %v317 = vunpack.c.h.b16 %v121
    %v318 = vunpack.c.l.b16 %v122
    %v319 = vunpack.c.l.b16 %v123
    %v320 = vunpack.c.h.b16 %v123
    %v321 = vunpack.c.l.b16 %v124
    %v322 = vunpack.c.l.b16 %v125
    %v323 = vunpack.c.h.b16 %v125
    %v324 = vunpack.c.l.b16 %v126
    %v325 = vunpack.c.l.b16 %v127
    %v326 = vunpack.c.h.b16 %v127
    %v327 = vunpack.c.l.b16 %v128
    %v328 = vunpack.c.l.b16 %v129
    %v329 = vunpack.c.h.b16 %v129
    %v330 = vunpack.c.l.b16 %v130
    %v331 = vunpack.c.l.b16 %v131
    %v332 = vunpack.c.h.b16 %v131
    %v333 = vunpack.c.l.b16 %v132
    %v334 = vunpack.c.l.b16 %v133
    %v335 = vunpack.c.h.b16 %v133
    %v336 = vunpack.c.l.b16 %v134
    %v337 = vunpack.c.l.b16 %v135
    %v338 = vunpack.c.h.b16 %v135
    %v339 = vunpack.c.l.b16 %v136
    %v340 = vunpack.c.l.b16 %v137
    %v341 = vunpack.c.h.b16 %v137
    %v342 = vunpack.c.l.b16 %v138
    %v343 = vpack.c.b16 %v298, %v295
    %v344 = vpack.c.b16 %v299, %v296
    %v345 = vpack.c.b16 %v300, %v297
    %v346 = vpack.c.b16 %v304, %v301
    %v347 = vpack.c.b16 %v305, %v302
    %v348 = vpack.c.b16 %v306, %v303
    %v349 = vpack.c.b16 %v310, %v307
    %v350 = vpack.c.b16 %v311, %v308
    %v351 = vpack.c.b16 %v312, %v309
    %v352 = vpack.c.b16 %v316, %v313
    %v353 = vpack.c.b16 %v317, %v314
    %v354 = vpack.c.b16 %v318, %v315
    %v355 = vpack.c.b16 %v322, %v319
    %v356 = vpack.c.b16 %v323, %v320
    %v357 = vpack.c.b16 %v324, %v321
    %v358 = vpack.c.b16 %v328, %v325
    %v359 = vpack.c.b16 %v329, %v326
    %v360 = vpack.c.b16 %v330, %v327
    %v361 = vpack.c.b16 %v334, %v331
    %v362 = vpack.c.b16 %v335, %v332
    %v363 = vpack.c.b16 %v336, %v333
    %v364 = vpack.c.b16 %v340, %v337
    %v365 = vpack.c.b16 %v341, %v338
    %v366 = vpack.c.b16 %v342, %v339
    %391 = vmatprep.subr.bf16.mxu0 %v365
    %392 = vmatpush1.bf16.msra.mxu0 %v364
    %393 = vmatprep.subr.bf16.mxu0 %v362
    %394 = vmatpush1.bf16.msra.mxu0 %v361
    %395 = vmatprep.subr.bf16.mxu0 %v359
    %396 = vmatpush1.bf16.msra.mxu0 %v358
    %397 = vmatprep.subr.bf16.mxu0 %v356
    %398 = vmatpush1.bf16.msra.mxu0 %v355
    %399 = vmatprep.subr.bf16.mxu0 %v353
    %400 = vmatpush1.bf16.msra.mxu0 %v352
    %401 = vmatprep.subr.bf16.mxu0 %v350
    %402 = vmatpush1.bf16.msra.mxu0 %v349
    %403 = vmatprep.subr.bf16.mxu0 %v347
    %404 = vmatpush1.bf16.msra.mxu0 %v346
    %405 = vmatprep.subr.bf16.mxu0 %v344
    %406 = vmatpush1.bf16.msra.mxu0 %v343
    %407 = vmatprep.subr.bf16.mxu0 0
    %408 = vmatpush2.bf16.msra.mxu0 0
    %409 = vmatprep.subr.bf16.mxu0 0
    %410 = vmatpush2.bf16.msra.mxu0 0
    %411 = vmatprep.subr.bf16.mxu0 0
    %412 = vmatpush2.bf16.msra.mxu0 0
    %413 = vmatprep.subr.bf16.mxu0 0
    %414 = vmatpush2.bf16.msra.mxu0 0
    %415 = vmatprep.subr.bf16.mxu0 0
    %416 = vmatpush2.bf16.msra.mxu0 0
    %417 = vmatprep.subr.bf16.mxu0 0
    %418 = vmatpush2.bf16.msra.mxu0 0
    %419 = vmatprep.subr.bf16.mxu0 0
    %420 = vmatpush2.bf16.msra.mxu0 0
    %421 = vmatprep.subr.bf16.mxu0 0
    %422 = vmatpush2.bf16.msra.mxu0 0
    %423 = vmatprep.mubr.bf16.mxu0 0
    %424 = vmatmul.mubr.bf16.gmra.mxu0 %v262
    %v425 = vpop.f32.mrf.mxu0
    %v426 = vadd.f32 %v183, %v425
    %v427 = vpop.f32.mrf.mxu0
    %v428 = vadd.f32 %v187, %v427
    %v429 = vpop.f32.mrf.mxu0
    %v430 = vpop.f32.mrf.mxu0
    %431 = vdwg.mxu0
    %432 = vmatprep.subr.bf16.mxu0 0
    %433 = vmatpush1.bf16.msra.mxu0 %v366
    %434 = vmatprep.subr.bf16.mxu0 0
    %435 = vmatpush1.bf16.msra.mxu0 %v363
    %436 = vmatprep.subr.bf16.mxu0 0
    %437 = vmatpush1.bf16.msra.mxu0 %v360
    %438 = vmatprep.subr.bf16.mxu0 0
    %439 = vmatpush1.bf16.msra.mxu0 %v357
    %440 = vmatprep.subr.bf16.mxu0 0
    %441 = vmatpush1.bf16.msra.mxu0 %v354
    %442 = vmatprep.subr.bf16.mxu0 0
    %443 = vmatpush1.bf16.msra.mxu0 %v351
    %444 = vmatprep.subr.bf16.mxu0 0
    %445 = vmatpush1.bf16.msra.mxu0 %v348
    %446 = vmatprep.subr.bf16.mxu0 0
    %447 = vmatpush1.bf16.msra.mxu0 %v345
    %448 = vmatprep.subr.bf16.mxu0 0
    %449 = vmatpush2.bf16.msra.mxu0 0
    %450 = vmatprep.subr.bf16.mxu0 0
    %451 = vmatpush2.bf16.msra.mxu0 0
    %452 = vmatprep.subr.bf16.mxu0 0
    %453 = vmatpush2.bf16.msra.mxu0 0
    %454 = vmatprep.subr.bf16.mxu0 0
    %455 = vmatpush2.bf16.msra.mxu0 0
    %456 = vmatprep.subr.bf16.mxu0 0
    %457 = vmatpush2.bf16.msra.mxu0 0
    %458 = vmatprep.subr.bf16.mxu0 0
    %459 = vmatpush2.bf16.msra.mxu0 0
    %460 = vmatprep.subr.bf16.mxu0 0
    %461 = vmatpush2.bf16.msra.mxu0 0
    %462 = vmatprep.subr.bf16.mxu0 0
    %463 = vmatpush2.bf16.msra.mxu0 0
    %464 = vmatprep.mubr.bf16.mxu0 0
    %465 = vmatmul.mubr.bf16.gmra.mxu0 %v262
    %v466 = vpop.f32.mrf.mxu0
    %v467 = vadd.f32 %v191, %v466
    %v468 = vpop.f32.mrf.mxu0
    %v469 = vpop.f32.mrf.mxu0
    %v470 = vpop.f32.mrf.mxu0
    %471 = vdwg.mxu0
    %v472 = vpack.c.bf16 %v202, %v202
    %v505 = vunpack.c.l.b16 %v139
    %v506 = vunpack.c.h.b16 %v139
    %v507 = vunpack.c.l.b16 %v140
    %v508 = vunpack.c.l.b16 %v141
    %v509 = vunpack.c.h.b16 %v141
    %v510 = vunpack.c.l.b16 %v142
    %v511 = vunpack.c.l.b16 %v143
    %v512 = vunpack.c.h.b16 %v143
    %v513 = vunpack.c.l.b16 %v144
    %v514 = vunpack.c.l.b16 %v145
    %v515 = vunpack.c.h.b16 %v145
    %v516 = vunpack.c.l.b16 %v146
    %v517 = vunpack.c.l.b16 %v147
    %v518 = vunpack.c.h.b16 %v147
    %v519 = vunpack.c.l.b16 %v148
    %v520 = vunpack.c.l.b16 %v149
    %v521 = vunpack.c.h.b16 %v149
    %v522 = vunpack.c.l.b16 %v150
    %v523 = vunpack.c.l.b16 %v151
    %v524 = vunpack.c.h.b16 %v151
    %v525 = vunpack.c.l.b16 %v152
    %v526 = vunpack.c.l.b16 %v153
    %v527 = vunpack.c.h.b16 %v153
    %v528 = vunpack.c.l.b16 %v154
    %v529 = vunpack.c.l.b16 %v155
    %v530 = vunpack.c.h.b16 %v155
    %v531 = vunpack.c.l.b16 %v156
    %v532 = vunpack.c.l.b16 %v157
    %v533 = vunpack.c.h.b16 %v157
    %v534 = vunpack.c.l.b16 %v158
    %v535 = vunpack.c.l.b16 %v159
    %v536 = vunpack.c.h.b16 %v159
    %v537 = vunpack.c.l.b16 %v160
    %v538 = vunpack.c.l.b16 %v161
    %v539 = vunpack.c.h.b16 %v161
    %v540 = vunpack.c.l.b16 %v162
    %v541 = vunpack.c.l.b16 %v163
    %v542 = vunpack.c.h.b16 %v163
    %v543 = vunpack.c.l.b16 %v164
    %v544 = vunpack.c.l.b16 %v165
    %v545 = vunpack.c.h.b16 %v165
    %v546 = vunpack.c.l.b16 %v166
    %v547 = vunpack.c.l.b16 %v167
    %v548 = vunpack.c.h.b16 %v167
    %v549 = vunpack.c.l.b16 %v168
    %v550 = vunpack.c.l.b16 %v169
    %v551 = vunpack.c.h.b16 %v169
    %v552 = vunpack.c.l.b16 %v170
    %v553 = vpack.c.b16 %v508, %v505
    %v554 = vpack.c.b16 %v509, %v506
    %v555 = vpack.c.b16 %v510, %v507
    %v556 = vpack.c.b16 %v514, %v511
    %v557 = vpack.c.b16 %v515, %v512
    %v558 = vpack.c.b16 %v516, %v513
    %v559 = vpack.c.b16 %v520, %v517
    %v560 = vpack.c.b16 %v521, %v518
    %v561 = vpack.c.b16 %v522, %v519
    %v562 = vpack.c.b16 %v526, %v523
    %v563 = vpack.c.b16 %v527, %v524
    %v564 = vpack.c.b16 %v528, %v525
    %v565 = vpack.c.b16 %v532, %v529
    %v566 = vpack.c.b16 %v533, %v530
    %v567 = vpack.c.b16 %v534, %v531
    %v568 = vpack.c.b16 %v538, %v535
    %v569 = vpack.c.b16 %v539, %v536
    %v570 = vpack.c.b16 %v540, %v537
    %v571 = vpack.c.b16 %v544, %v541
    %v572 = vpack.c.b16 %v545, %v542
    %v573 = vpack.c.b16 %v546, %v543
    %v574 = vpack.c.b16 %v550, %v547
    %v575 = vpack.c.b16 %v551, %v548
    %v576 = vpack.c.b16 %v552, %v549
    %601 = vmatprep.subr.bf16.mxu0 %v575
    %602 = vmatpush1.bf16.msra.mxu0 %v574
    %603 = vmatprep.subr.bf16.mxu0 %v572
    %604 = vmatpush1.bf16.msra.mxu0 %v571
    %605 = vmatprep.subr.bf16.mxu0 %v569
    %606 = vmatpush1.bf16.msra.mxu0 %v568
    %607 = vmatprep.subr.bf16.mxu0 %v566
    %608 = vmatpush1.bf16.msra.mxu0 %v565
    %609 = vmatprep.subr.bf16.mxu0 %v563
    %610 = vmatpush1.bf16.msra.mxu0 %v562
    %611 = vmatprep.subr.bf16.mxu0 %v560
    %612 = vmatpush1.bf16.msra.mxu0 %v559
    %613 = vmatprep.subr.bf16.mxu0 %v557
    %614 = vmatpush1.bf16.msra.mxu0 %v556
    %615 = vmatprep.subr.bf16.mxu0 %v554
    %616 = vmatpush1.bf16.msra.mxu0 %v553
    %617 = vmatprep.subr.bf16.mxu0 0
    %618 = vmatpush2.bf16.msra.mxu0 0
    %619 = vmatprep.subr.bf16.mxu0 0
    %620 = vmatpush2.bf16.msra.mxu0 0
    %621 = vmatprep.subr.bf16.mxu0 0
    %622 = vmatpush2.bf16.msra.mxu0 0
    %623 = vmatprep.subr.bf16.mxu0 0
    %624 = vmatpush2.bf16.msra.mxu0 0
    %625 = vmatprep.subr.bf16.mxu0 0
    %626 = vmatpush2.bf16.msra.mxu0 0
    %627 = vmatprep.subr.bf16.mxu0 0
    %628 = vmatpush2.bf16.msra.mxu0 0
    %629 = vmatprep.subr.bf16.mxu0 0
    %630 = vmatpush2.bf16.msra.mxu0 0
    %631 = vmatprep.subr.bf16.mxu0 0
    %632 = vmatpush2.bf16.msra.mxu0 0
    %633 = vmatprep.mubr.bf16.mxu0 0
    %634 = vmatmul.mubr.bf16.gmra.mxu0 %v472
    %v635 = vpop.f32.mrf.mxu0
    %v636 = vadd.f32 0.0, %v635
    %v637 = vpop.f32.mrf.mxu0
    %v638 = vadd.f32 0.0, %v637
    %v639 = vpop.f32.mrf.mxu0
    %v640 = vpop.f32.mrf.mxu0
    %641 = vdwg.mxu0
    %642 = vmatprep.subr.bf16.mxu0 0
    %643 = vmatpush1.bf16.msra.mxu0 %v576
    %644 = vmatprep.subr.bf16.mxu0 0
    %645 = vmatpush1.bf16.msra.mxu0 %v573
    %646 = vmatprep.subr.bf16.mxu0 0
    %647 = vmatpush1.bf16.msra.mxu0 %v570
    %648 = vmatprep.subr.bf16.mxu0 0
    %649 = vmatpush1.bf16.msra.mxu0 %v567
    %650 = vmatprep.subr.bf16.mxu0 0
    %651 = vmatpush1.bf16.msra.mxu0 %v564
    %652 = vmatprep.subr.bf16.mxu0 0
    %653 = vmatpush1.bf16.msra.mxu0 %v561
    %654 = vmatprep.subr.bf16.mxu0 0
    %655 = vmatpush1.bf16.msra.mxu0 %v558
    %656 = vmatprep.subr.bf16.mxu0 0
    %657 = vmatpush1.bf16.msra.mxu0 %v555
    %658 = vmatprep.subr.bf16.mxu0 0
    %659 = vmatpush2.bf16.msra.mxu0 0
    %660 = vmatprep.subr.bf16.mxu0 0
    %661 = vmatpush2.bf16.msra.mxu0 0
    %662 = vmatprep.subr.bf16.mxu0 0
    %663 = vmatpush2.bf16.msra.mxu0 0
    %664 = vmatprep.subr.bf16.mxu0 0
    %665 = vmatpush2.bf16.msra.mxu0 0
    %666 = vmatprep.subr.bf16.mxu0 0
    %667 = vmatpush2.bf16.msra.mxu0 0
    %668 = vmatprep.subr.bf16.mxu0 0
    %669 = vmatpush2.bf16.msra.mxu0 0
    %670 = vmatprep.subr.bf16.mxu0 0
    %671 = vmatpush2.bf16.msra.mxu0 0
    %672 = vmatprep.subr.bf16.mxu0 0
    %673 = vmatpush2.bf16.msra.mxu0 0
    %674 = vmatprep.mubr.bf16.mxu0 0
    %675 = vmatmul.mubr.bf16.gmra.mxu0 %v472
    %v676 = vpop.f32.mrf.mxu0
    %v677 = vadd.f32 0.0, %v676
    %v678 = vpop.f32.mrf.mxu0
    %v679 = vpop.f32.mrf.mxu0
    %v680 = vpop.f32.mrf.mxu0
    %681 = vdwg.mxu0
    %v682 = vadd.f32 %v426, %v636
    %v683 = vxor.u32 %v682, 2147483648
    %v684 = vmul.f32 %v683, 1.442695
    %v685 = vpow.pop %v684
    %v686 = vadd.f32 %v685, 1.0
    %v687 = vrcp.pop %v686
    %v688 = vmul.f32 1.0, %v687
    %v689 = vadd.f32 %v428, %v638
    %v690 = vxor.u32 %v689, 2147483648
    %v691 = vmul.f32 %v690, 1.442695
    %v692 = vpow.pop %v691
    %v693 = vadd.f32 %v692, 1.0
    %v694 = vrcp.pop %v693
    %v695 = vmul.f32 1.0, %v694
    %v696 = vadd.f32 %v677, %v200
    %v697 = vmul.f32 %v688, %v696
    %v698 = vadd.f32 %v467, %v697
    %v699 = vtanh.pop %v698
    %v700 = vsub.f32 1.0, %v695
    %v701 = vmul.f32 %v700, %v699
    %v702 = vmul.f32 %v695, %v202
    %v703 = vadd.f32 %v701, %v702
    %704 = vst [vmem:[#allocation12] sm:$0xff] %v703
    %s705 = scalar_lea.vmem [#allocation3], 8
    %v706 = vld [vmem:[%s705] sm:$0xff]
    %v707 = vpack.c.bf16 %v706, %v706
    %v709 = vsel %vm217, %v707, 0
    %711 = vmatprep.subr.bf16.mxu0 0
    %712 = vmatpush1.bf16.msra.mxu0 0
    %713 = vmatprep.subr.bf16.mxu0 0
    %714 = vmatpush1.bf16.msra.mxu0 0
    %715 = vmatprep.subr.bf16.mxu0 0
    %716 = vmatpush1.bf16.msra.mxu0 0
    %717 = vmatprep.subr.bf16.mxu0 0
    %718 = vmatpush1.bf16.msra.mxu0 0
    %719 = vmatprep.subr.bf16.mxu0 0
    %720 = vmatpush1.bf16.msra.mxu0 0
    %721 = vmatprep.subr.bf16.mxu0 0
    %722 = vmatpush1.bf16.msra.mxu0 0
    %723 = vmatprep.subr.bf16.mxu0 0
    %724 = vmatpush1.bf16.msra.mxu0 %v214
    %725 = vmatprep.subr.bf16.mxu0 0
    %726 = vmatpush1.bf16.msra.mxu0 %v213
    %727 = vmatprep.subr.bf16.mxu0 0
    %728 = vmatpush2.bf16.msra.mxu0 0
    %729 = vmatprep.subr.bf16.mxu0 0
    %730 = vmatpush2.bf16.msra.mxu0 0
    %731 = vmatprep.subr.bf16.mxu0 0
    %732 = vmatpush2.bf16.msra.mxu0 0
    %733 = vmatprep.subr.bf16.mxu0 0
    %734 = vmatpush2.bf16.msra.mxu0 0
    %735 = vmatprep.subr.bf16.mxu0 0
    %736 = vmatpush2.bf16.msra.mxu0 0
    %737 = vmatprep.subr.bf16.mxu0 0
    %738 = vmatpush2.bf16.msra.mxu0 0
    %739 = vmatprep.subr.bf16.mxu0 0
    %740 = vmatpush2.bf16.msra.mxu0 0
    %741 = vmatprep.subr.bf16.mxu0 0
    %742 = vmatpush2.bf16.msra.mxu0 0
    %743 = vmatprep.mubr.bf16.mxu0 0
    %744 = vmatmul.mubr.bf16.gmra.mxu0 %v709
    %v745 = vpop.f32.mrf.mxu0
    %v746 = vadd.f32 %v176, %v745
    %v747 = vpop.f32.mrf.mxu0
    %v748 = vpop.f32.mrf.mxu0
    %v749 = vpop.f32.mrf.mxu0
    %750 = vdwg.mxu0
    %v751 = vmax.f32 %v746, 0.0
    %v752 = vpack.c.bf16 %v751, %v751
    %753 = vmatprep.subr.bf16.mxu0 %v365
    %754 = vmatpush1.bf16.msra.mxu0 %v364
    %755 = vmatprep.subr.bf16.mxu0 %v362
    %756 = vmatpush1.bf16.msra.mxu0 %v361
    %757 = vmatprep.subr.bf16.mxu0 %v359
    %758 = vmatpush1.bf16.msra.mxu0 %v358
    %759 = vmatprep.subr.bf16.mxu0 %v356
    %760 = vmatpush1.bf16.msra.mxu0 %v355
    %761 = vmatprep.subr.bf16.mxu0 %v353
    %762 = vmatpush1.bf16.msra.mxu0 %v352
    %763 = vmatprep.subr.bf16.mxu0 %v350
    %764 = vmatpush1.bf16.msra.mxu0 %v349
    %765 = vmatprep.subr.bf16.mxu0 %v347
    %766 = vmatpush1.bf16.msra.mxu0 %v346
    %767 = vmatprep.subr.bf16.mxu0 %v344
    %768 = vmatpush1.bf16.msra.mxu0 %v343
    %769 = vmatprep.subr.bf16.mxu0 0
    %770 = vmatpush2.bf16.msra.mxu0 0
    %771 = vmatprep.subr.bf16.mxu0 0
    %772 = vmatpush2.bf16.msra.mxu0 0
    %773 = vmatprep.subr.bf16.mxu0 0
    %774 = vmatpush2.bf16.msra.mxu0 0
    %775 = vmatprep.subr.bf16.mxu0 0
    %776 = vmatpush2.bf16.msra.mxu0 0
    %777 = vmatprep.subr.bf16.mxu0 0
    %778 = vmatpush2.bf16.msra.mxu0 0
    %779 = vmatprep.subr.bf16.mxu0 0
    %780 = vmatpush2.bf16.msra.mxu0 0
    %781 = vmatprep.subr.bf16.mxu0 0
    %782 = vmatpush2.bf16.msra.mxu0 0
    %783 = vmatprep.subr.bf16.mxu0 0
    %784 = vmatpush2.bf16.msra.mxu0 0
    %785 = vmatprep.mubr.bf16.mxu0 0
    %786 = vmatmul.mubr.bf16.gmra.mxu0 %v752
    %v787 = vpop.f32.mrf.mxu0
    %v788 = vadd.f32 %v183, %v787
    %v789 = vpop.f32.mrf.mxu0
    %v790 = vadd.f32 %v187, %v789
    %v791 = vpop.f32.mrf.mxu0
    %v792 = vpop.f32.mrf.mxu0
    %793 = vdwg.mxu0
    %794 = vmatprep.subr.bf16.mxu0 0
    %795 = vmatpush1.bf16.msra.mxu0 %v366
    %796 = vmatprep.subr.bf16.mxu0 0
    %797 = vmatpush1.bf16.msra.mxu0 %v363
    %798 = vmatprep.subr.bf16.mxu0 0
    %799 = vmatpush1.bf16.msra.mxu0 %v360
    %800 = vmatprep.subr.bf16.mxu0 0
    %801 = vmatpush1.bf16.msra.mxu0 %v357
    %802 = vmatprep.subr.bf16.mxu0 0
    %803 = vmatpush1.bf16.msra.mxu0 %v354
    %804 = vmatprep.subr.bf16.mxu0 0
    %805 = vmatpush1.bf16.msra.mxu0 %v351
    %806 = vmatprep.subr.bf16.mxu0 0
    %807 = vmatpush1.bf16.msra.mxu0 %v348
    %808 = vmatprep.subr.bf16.mxu0 0
    %809 = vmatpush1.bf16.msra.mxu0 %v345
    %810 = vmatprep.subr.bf16.mxu0 0
    %811 = vmatpush2.bf16.msra.mxu0 0
    %812 = vmatprep.subr.bf16.mxu0 0
    %813 = vmatpush2.bf16.msra.mxu0 0
    %814 = vmatprep.subr.bf16.mxu0 0
    %815 = vmatpush2.bf16.msra.mxu0 0
    %816 = vmatprep.subr.bf16.mxu0 0
    %817 = vmatpush2.bf16.msra.mxu0 0
    %818 = vmatprep.subr.bf16.mxu0 0
    %819 = vmatpush2.bf16.msra.mxu0 0
    %820 = vmatprep.subr.bf16.mxu0 0
    %821 = vmatpush2.bf16.msra.mxu0 0
    %822 = vmatprep.subr.bf16.mxu0 0
    %823 = vmatpush2.bf16.msra.mxu0 0
    %824 = vmatprep.subr.bf16.mxu0 0
    %825 = vmatpush2.bf16.msra.mxu0 0
    %826 = vmatprep.mubr.bf16.mxu0 0
    %827 = vmatmul.mubr.bf16.gmra.mxu0 %v752
    %v828 = vpop.f32.mrf.mxu0
    %v829 = vadd.f32 %v191, %v828
    %v830 = vpop.f32.mrf.mxu0
    %v831 = vpop.f32.mrf.mxu0
    %v832 = vpop.f32.mrf.mxu0
    %833 = vdwg.mxu0
    %v834 = vpack.c.bf16 %v703, %v703
    %835 = vmatprep.subr.bf16.mxu0 %v575
    %836 = vmatpush1.bf16.msra.mxu0 %v574
    %837 = vmatprep.subr.bf16.mxu0 %v572
    %838 = vmatpush1.bf16.msra.mxu0 %v571
    %839 = vmatprep.subr.bf16.mxu0 %v569
    %840 = vmatpush1.bf16.msra.mxu0 %v568
    %841 = vmatprep.subr.bf16.mxu0 %v566
    %842 = vmatpush1.bf16.msra.mxu0 %v565
    %843 = vmatprep.subr.bf16.mxu0 %v563
    %844 = vmatpush1.bf16.msra.mxu0 %v562
    %845 = vmatprep.subr.bf16.mxu0 %v560
    %846 = vmatpush1.bf16.msra.mxu0 %v559
    %847 = vmatprep.subr.bf16.mxu0 %v557
    %848 = vmatpush1.bf16.msra.mxu0 %v556
    %849 = vmatprep.subr.bf16.mxu0 %v554
    %850 = vmatpush1.bf16.msra.mxu0 %v553
    %851 = vmatprep.subr.bf16.mxu0 0
    %852 = vmatpush2.bf16.msra.mxu0 0
    %853 = vmatprep.subr.bf16.mxu0 0
    %854 = vmatpush2.bf16.msra.mxu0 0
    %855 = vmatprep.subr.bf16.mxu0 0
    %856 = vmatpush2.bf16.msra.mxu0 0
    %857 = vmatprep.subr.bf16.mxu0 0
    %858 = vmatpush2.bf16.msra.mxu0 0
    %859 = vmatprep.subr.bf16.mxu0 0
    %860 = vmatpush2.bf16.msra.mxu0 0
    %861 = vmatprep.subr.bf16.mxu0 0
    %862 = vmatpush2.bf16.msra.mxu0 0
    %863 = vmatprep.subr.bf16.mxu0 0
    %864 = vmatpush2.bf16.msra.mxu0 0
    %865 = vmatprep.subr.bf16.mxu0 0
    %866 = vmatpush2.bf16.msra.mxu0 0
    %867 = vmatprep.mubr.bf16.mxu0 0
    %868 = vmatmul.mubr.bf16.gmra.mxu0 %v834
    %v869 = vpop.f32.mrf.mxu0
    %v870 = vadd.f32 0.0, %v869
    %v871 = vpop.f32.mrf.mxu0
    %v872 = vadd.f32 0.0, %v871
    %v873 = vpop.f32.mrf.mxu0
    %v874 = vpop.f32.mrf.mxu0
    %875 = vdwg.mxu0
    %876 = vmatprep.subr.bf16.mxu0 0
    %877 = vmatpush1.bf16.msra.mxu0 %v576
    %878 = vmatprep.subr.bf16.mxu0 0
    %879 = vmatpush1.bf16.msra.mxu0 %v573
    %880 = vmatprep.subr.bf16.mxu0 0
    %881 = vmatpush1.bf16.msra.mxu0 %v570
    %882 = vmatprep.subr.bf16.mxu0 0
    %883 = vmatpush1.bf16.msra.mxu0 %v567
    %884 = vmatprep.subr.bf16.mxu0 0
    %885 = vmatpush1.bf16.msra.mxu0 %v564
    %886 = vmatprep.subr.bf16.mxu0 0
    %887 = vmatpush1.bf16.msra.mxu0 %v561
    %888 = vmatprep.subr.bf16.mxu0 0
    %889 = vmatpush1.bf16.msra.mxu0 %v558
    %890 = vmatprep.subr.bf16.mxu0 0
    %891 = vmatpush1.bf16.msra.mxu0 %v555
    %892 = vmatprep.subr.bf16.mxu0 0
    %893 = vmatpush2.bf16.msra.mxu0 0
    %894 = vmatprep.subr.bf16.mxu0 0
    %895 = vmatpush2.bf16.msra.mxu0 0
    %896 = vmatprep.subr.bf16.mxu0 0
    %897 = vmatpush2.bf16.msra.mxu0 0
    %898 = vmatprep.subr.bf16.mxu0 0
    %899 = vmatpush2.bf16.msra.mxu0 0
    %900 = vmatprep.subr.bf16.mxu0 0
    %901 = vmatpush2.bf16.msra.mxu0 0
    %902 = vmatprep.subr.bf16.mxu0 0
    %903 = vmatpush2.bf16.msra.mxu0 0
    %904 = vmatprep.subr.bf16.mxu0 0
    %905 = vmatpush2.bf16.msra.mxu0 0
    %906 = vmatprep.subr.bf16.mxu0 0
    %907 = vmatpush2.bf16.msra.mxu0 0
    %908 = vmatprep.mubr.bf16.mxu0 0
    %909 = vmatmul.mubr.bf16.gmra.mxu0 %v834
    %v910 = vpop.f32.mrf.mxu0
    %v911 = vadd.f32 0.0, %v910
    %v912 = vpop.f32.mrf.mxu0
    %v913 = vpop.f32.mrf.mxu0
    %v914 = vpop.f32.mrf.mxu0
    %915 = vdwg.mxu0
    %v916 = vadd.f32 %v788, %v870
    %v917 = vxor.u32 %v916, 2147483648
    %v918 = vmul.f32 %v917, 1.442695
    %v919 = vpow.pop %v918
    %v920 = vadd.f32 %v919, 1.0
    %v921 = vrcp.pop %v920
    %v922 = vmul.f32 1.0, %v921
    %v923 = vadd.f32 %v790, %v872
    %v924 = vxor.u32 %v923, 2147483648
    %v925 = vmul.f32 %v924, 1.442695
    %v926 = vpow.pop %v925
    %v927 = vadd.f32 %v926, 1.0
    %v928 = vrcp.pop %v927
    %v929 = vmul.f32 1.0, %v928
    %v930 = vadd.f32 %v911, %v200
    %v931 = vmul.f32 %v922, %v930
    %v932 = vadd.f32 %v829, %v931
    %v933 = vtanh.pop %v932
    %v934 = vsub.f32 1.0, %v929
    %v935 = vmul.f32 %v934, %v933
    %v936 = vmul.f32 %v929, %v703
    %v937 = vadd.f32 %v935, %v936
    %s938 = scalar_lea.vmem [#allocation12], 8
    %939 = vst [vmem:[%s938] sm:$0xff] %v937
    %s940 = scalar_lea.vmem [#allocation3], 16
    %v941 = vld [vmem:[%s940] sm:$0xff]
    %v942 = vpack.c.bf16 %v941, %v941
    %v944 = vsel %vm217, %v942, 0
    %946 = vmatprep.subr.bf16.mxu0 0
    %947 = vmatpush1.bf16.msra.mxu0 0
    %948 = vmatprep.subr.bf16.mxu0 0
    %949 = vmatpush1.bf16.msra.mxu0 0
    %950 = vmatprep.subr.bf16.mxu0 0
    %951 = vmatpush1.bf16.msra.mxu0 0
    %952 = vmatprep.subr.bf16.mxu0 0
    %953 = vmatpush1.bf16.msra.mxu0 0
    %954 = vmatprep.subr.bf16.mxu0 0
    %955 = vmatpush1.bf16.msra.mxu0 0
    %956 = vmatprep.subr.bf16.mxu0 0
    %957 = vmatpush1.bf16.msra.mxu0 0
    %958 = vmatprep.subr.bf16.mxu0 0
    %959 = vmatpush1.bf16.msra.mxu0 %v214
    %960 = vmatprep.subr.bf16.mxu0 0
    %961 = vmatpush1.bf16.msra.mxu0 %v213
    %962 = vmatprep.subr.bf16.mxu0 0
    %963 = vmatpush2.bf16.msra.mxu0 0
    %964 = vmatprep.subr.bf16.mxu0 0
    %965 = vmatpush2.bf16.msra.mxu0 0
    %966 = vmatprep.subr.bf16.mxu0 0
    %967 = vmatpush2.bf16.msra.mxu0 0
    %968 = vmatprep.subr.bf16.mxu0 0
    %969 = vmatpush2.bf16.msra.mxu0 0
    %970 = vmatprep.subr.bf16.mxu0 0
    %971 = vmatpush2.bf16.msra.mxu0 0
    %972 = vmatprep.subr.bf16.mxu0 0
    %973 = vmatpush2.bf16.msra.mxu0 0
    %974 = vmatprep.subr.bf16.mxu0 0
    %975 = vmatpush2.bf16.msra.mxu0 0
    %976 = vmatprep.subr.bf16.mxu0 0
    %977 = vmatpush2.bf16.msra.mxu0 0
    %978 = vmatprep.mubr.bf16.mxu0 0
    %979 = vmatmul.mubr.bf16.gmra.mxu0 %v944
    %v980 = vpop.f32.mrf.mxu0
    %v981 = vadd.f32 %v176, %v980
    %v982 = vpop.f32.mrf.mxu0
    %v983 = vpop.f32.mrf.mxu0
    %v984 = vpop.f32.mrf.mxu0
    %985 = vdwg.mxu0
    %v986 = vmax.f32 %v981, 0.0
    %v987 = vpack.c.bf16 %v986, %v986
    %988 = vmatprep.subr.bf16.mxu0 %v365
    %989 = vmatpush1.bf16.msra.mxu0 %v364
    %990 = vmatprep.subr.bf16.mxu0 %v362
    %991 = vmatpush1.bf16.msra.mxu0 %v361
    %992 = vmatprep.subr.bf16.mxu0 %v359
    %993 = vmatpush1.bf16.msra.mxu0 %v358
    %994 = vmatprep.subr.bf16.mxu0 %v356
    %995 = vmatpush1.bf16.msra.mxu0 %v355
    %996 = vmatprep.subr.bf16.mxu0 %v353
    %997 = vmatpush1.bf16.msra.mxu0 %v352
    %998 = vmatprep.subr.bf16.mxu0 %v350
    %999 = vmatpush1.bf16.msra.mxu0 %v349
    %1000 = vmatprep.subr.bf16.mxu0 %v347
    %1001 = vmatpush1.bf16.msra.mxu0 %v346
    %1002 = vmatprep.subr.bf16.mxu0 %v344
    %1003 = vmatpush1.bf16.msra.mxu0 %v343
    %1004 = vmatprep.subr.bf16.mxu0 0
    %1005 = vmatpush2.bf16.msra.mxu0 0
    %1006 = vmatprep.subr.bf16.mxu0 0
    %1007 = vmatpush2.bf16.msra.mxu0 0
    %1008 = vmatprep.subr.bf16.mxu0 0
    %1009 = vmatpush2.bf16.msra.mxu0 0
    %1010 = vmatprep.subr.bf16.mxu0 0
    %1011 = vmatpush2.bf16.msra.mxu0 0
    %1012 = vmatprep.subr.bf16.mxu0 0
    %1013 = vmatpush2.bf16.msra.mxu0 0
    %1014 = vmatprep.subr.bf16.mxu0 0
    %1015 = vmatpush2.bf16.msra.mxu0 0
    %1016 = vmatprep.subr.bf16.mxu0 0
    %1017 = vmatpush2.bf16.msra.mxu0 0
    %1018 = vmatprep.subr.bf16.mxu0 0
    %1019 = vmatpush2.bf16.msra.mxu0 0
    %1020 = vmatprep.mubr.bf16.mxu0 0
    %1021 = vmatmul.mubr.bf16.gmra.mxu0 %v987
    %v1022 = vpop.f32.mrf.mxu0
    %v1023 = vadd.f32 %v183, %v1022
    %v1024 = vpop.f32.mrf.mxu0
    %v1025 = vadd.f32 %v187, %v1024
    %v1026 = vpop.f32.mrf.mxu0
    %v1027 = vpop.f32.mrf.mxu0
    %1028 = vdwg.mxu0
    %1029 = vmatprep.subr.bf16.mxu0 0
    %1030 = vmatpush1.bf16.msra.mxu0 %v366
    %1031 = vmatprep.subr.bf16.mxu0 0
    %1032 = vmatpush1.bf16.msra.mxu0 %v363
    %1033 = vmatprep.subr.bf16.mxu0 0
    %1034 = vmatpush1.bf16.msra.mxu0 %v360
    %1035 = vmatprep.subr.bf16.mxu0 0
    %1036 = vmatpush1.bf16.msra.mxu0 %v357
    %1037 = vmatprep.subr.bf16.mxu0 0
    %1038 = vmatpush1.bf16.msra.mxu0 %v354
    %1039 = vmatprep.subr.bf16.mxu0 0
    %1040 = vmatpush1.bf16.msra.mxu0 %v351
    %1041 = vmatprep.subr.bf16.mxu0 0
    %1042 = vmatpush1.bf16.msra.mxu0 %v348
    %1043 = vmatprep.subr.bf16.mxu0 0
    %1044 = vmatpush1.bf16.msra.mxu0 %v345
    %1045 = vmatprep.subr.bf16.mxu0 0
    %1046 = vmatpush2.bf16.msra.mxu0 0
    %1047 = vmatprep.subr.bf16.mxu0 0
    %1048 = vmatpush2.bf16.msra.mxu0 0
    %1049 = vmatprep.subr.bf16.mxu0 0
    %1050 = vmatpush2.bf16.msra.mxu0 0
    %1051 = vmatprep.subr.bf16.mxu0 0
    %1052 = vmatpush2.bf16.msra.mxu0 0
    %1053 = vmatprep.subr.bf16.mxu0 0
    %1054 = vmatpush2.bf16.msra.mxu0 0
    %1055 = vmatprep.subr.bf16.mxu0 0
    %1056 = vmatpush2.bf16.msra.mxu0 0
    %1057 = vmatprep.subr.bf16.mxu0 0
    %1058 = vmatpush2.bf16.msra.mxu0 0
    %1059 = vmatprep.subr.bf16.mxu0 0
    %1060 = vmatpush2.bf16.msra.mxu0 0
    %1061 = vmatprep.mubr.bf16.mxu0 0
    %1062 = vmatmul.mubr.bf16.gmra.mxu0 %v987
    %v1063 = vpop.f32.mrf.mxu0
    %v1064 = vadd.f32 %v191, %v1063
    %v1065 = vpop.f32.mrf.mxu0
    %v1066 = vpop.f32.mrf.mxu0
    %v1067 = vpop.f32.mrf.mxu0
    %1068 = vdwg.mxu0
    %v1069 = vpack.c.bf16 %v937, %v937
    %1070 = vmatprep.subr.bf16.mxu0 %v575
    %1071 = vmatpush1.bf16.msra.mxu0 %v574
    %1072 = vmatprep.subr.bf16.mxu0 %v572
    %1073 = vmatpush1.bf16.msra.mxu0 %v571
    %1074 = vmatprep.subr.bf16.mxu0 %v569
    %1075 = vmatpush1.bf16.msra.mxu0 %v568
    %1076 = vmatprep.subr.bf16.mxu0 %v566
    %1077 = vmatpush1.bf16.msra.mxu0 %v565
    %1078 = vmatprep.subr.bf16.mxu0 %v563
    %1079 = vmatpush1.bf16.msra.mxu0 %v562
    %1080 = vmatprep.subr.bf16.mxu0 %v560
    %1081 = vmatpush1.bf16.msra.mxu0 %v559
    %1082 = vmatprep.subr.bf16.mxu0 %v557
    %1083 = vmatpush1.bf16.msra.mxu0 %v556
    %1084 = vmatprep.subr.bf16.mxu0 %v554
    %1085 = vmatpush1.bf16.msra.mxu0 %v553
    %1086 = vmatprep.subr.bf16.mxu0 0
    %1087 = vmatpush2.bf16.msra.mxu0 0
    %1088 = vmatprep.subr.bf16.mxu0 0
    %1089 = vmatpush2.bf16.msra.mxu0 0
    %1090 = vmatprep.subr.bf16.mxu0 0
    %1091 = vmatpush2.bf16.msra.mxu0 0
    %1092 = vmatprep.subr.bf16.mxu0 0
    %1093 = vmatpush2.bf16.msra.mxu0 0
    %1094 = vmatprep.subr.bf16.mxu0 0
    %1095 = vmatpush2.bf16.msra.mxu0 0
    %1096 = vmatprep.subr.bf16.mxu0 0
    %1097 = vmatpush2.bf16.msra.mxu0 0
    %1098 = vmatprep.subr.bf16.mxu0 0
    %1099 = vmatpush2.bf16.msra.mxu0 0
    %1100 = vmatprep.subr.bf16.mxu0 0
    %1101 = vmatpush2.bf16.msra.mxu0 0
    %1102 = vmatprep.mubr.bf16.mxu0 0
    %1103 = vmatmul.mubr.bf16.gmra.mxu0 %v1069
    %v1104 = vpop.f32.mrf.mxu0
    %v1105 = vadd.f32 0.0, %v1104
    %v1106 = vpop.f32.mrf.mxu0
    %v1107 = vadd.f32 0.0, %v1106
    %v1108 = vpop.f32.mrf.mxu0
    %v1109 = vpop.f32.mrf.mxu0
    %1110 = vdwg.mxu0
    %1111 = vmatprep.subr.bf16.mxu0 0
    %1112 = vmatpush1.bf16.msra.mxu0 %v576
    %1113 = vmatprep.subr.bf16.mxu0 0
    %1114 = vmatpush1.bf16.msra.mxu0 %v573
    %1115 = vmatprep.subr.bf16.mxu0 0
    %1116 = vmatpush1.bf16.msra.mxu0 %v570
    %1117 = vmatprep.subr.bf16.mxu0 0
    %1118 = vmatpush1.bf16.msra.mxu0 %v567
    %1119 = vmatprep.subr.bf16.mxu0 0
    %1120 = vmatpush1.bf16.msra.mxu0 %v564
    %1121 = vmatprep.subr.bf16.mxu0 0
    %1122 = vmatpush1.bf16.msra.mxu0 %v561
    %1123 = vmatprep.subr.bf16.mxu0 0
    %1124 = vmatpush1.bf16.msra.mxu0 %v558
    %1125 = vmatprep.subr.bf16.mxu0 0
    %1126 = vmatpush1.bf16.msra.mxu0 %v555
    %1127 = vmatprep.subr.bf16.mxu0 0
    %1128 = vmatpush2.bf16.msra.mxu0 0
    %1129 = vmatprep.subr.bf16.mxu0 0
    %1130 = vmatpush2.bf16.msra.mxu0 0
    %1131 = vmatprep.subr.bf16.mxu0 0
    %1132 = vmatpush2.bf16.msra.mxu0 0
    %1133 = vmatprep.subr.bf16.mxu0 0
    %1134 = vmatpush2.bf16.msra.mxu0 0
    %1135 = vmatprep.subr.bf16.mxu0 0
    %1136 = vmatpush2.bf16.msra.mxu0 0
    %1137 = vmatprep.subr.bf16.mxu0 0
    %1138 = vmatpush2.bf16.msra.mxu0 0
    %1139 = vmatprep.subr.bf16.mxu0 0
    %1140 = vmatpush2.bf16.msra.mxu0 0
    %1141 = vmatprep.subr.bf16.mxu0 0
    %1142 = vmatpush2.bf16.msra.mxu0 0
    %1143 = vmatprep.mubr.bf16.mxu0 0
    %1144 = vmatmul.mubr.bf16.gmra.mxu0 %v1069
    %v1145 = vpop.f32.mrf.mxu0
    %v1146 = vadd.f32 0.0, %v1145
    %v1147 = vpop.f32.mrf.mxu0
    %v1148 = vpop.f32.mrf.mxu0
    %v1149 = vpop.f32.mrf.mxu0
    %1150 = vdwg.mxu0
    %v1151 = vadd.f32 %v1023, %v1105
    %v1152 = vxor.u32 %v1151, 2147483648
    %v1153 = vmul.f32 %v1152, 1.442695
    %v1154 = vpow.pop %v1153
    %v1155 = vadd.f32 %v1154, 1.0
    %v1156 = vrcp.pop %v1155
    %v1157 = vmul.f32 1.0, %v1156
    %v1158 = vadd.f32 %v1025, %v1107
    %v1159 = vxor.u32 %v1158, 2147483648
    %v1160 = vmul.f32 %v1159, 1.442695
    %v1161 = vpow.pop %v1160
    %v1162 = vadd.f32 %v1161, 1.0
    %v1163 = vrcp.pop %v1162
    %v1164 = vmul.f32 1.0, %v1163
    %v1165 = vadd.f32 %v1146, %v200
    %v1166 = vmul.f32 %v1157, %v1165
    %v1167 = vadd.f32 %v1064, %v1166
    %v1168 = vtanh.pop %v1167
    %v1169 = vsub.f32 1.0, %v1164
    %v1170 = vmul.f32 %v1169, %v1168
    %v1171 = vmul.f32 %v1164, %v937
    %v1172 = vadd.f32 %v1170, %v1171
    %s1173 = scalar_lea.vmem [#allocation12], 16
    %1174 = vst [vmem:[%s1173] sm:$0xff] %v1172
    %s1175 = scalar_lea.vmem [#allocation3], 24
    %v1176 = vld [vmem:[%s1175] sm:$0xff]
    %v1177 = vpack.c.bf16 %v1176, %v1176
    %v1179 = vsel %vm217, %v1177, 0
    %1181 = vmatprep.subr.bf16.mxu0 0
    %1182 = vmatpush1.bf16.msra.mxu0 0
    %1183 = vmatprep.subr.bf16.mxu0 0
    %1184 = vmatpush1.bf16.msra.mxu0 0
    %1185 = vmatprep.subr.bf16.mxu0 0
    %1186 = vmatpush1.bf16.msra.mxu0 0
    %1187 = vmatprep.subr.bf16.mxu0 0
    %1188 = vmatpush1.bf16.msra.mxu0 0
    %1189 = vmatprep.subr.bf16.mxu0 0
    %1190 = vmatpush1.bf16.msra.mxu0 0
    %1191 = vmatprep.subr.bf16.mxu0 0
    %1192 = vmatpush1.bf16.msra.mxu0 0
    %1193 = vmatprep.subr.bf16.mxu0 0
    %1194 = vmatpush1.bf16.msra.mxu0 %v214
    %1195 = vmatprep.subr.bf16.mxu0 0
    %1196 = vmatpush1.bf16.msra.mxu0 %v213
    %1197 = vmatprep.subr.bf16.mxu0 0
    %1198 = vmatpush2.bf16.msra.mxu0 0
    %1199 = vmatprep.subr.bf16.mxu0 0
    %1200 = vmatpush2.bf16.msra.mxu0 0
    %1201 = vmatprep.subr.bf16.mxu0 0
    %1202 = vmatpush2.bf16.msra.mxu0 0
    %1203 = vmatprep.subr.bf16.mxu0 0
    %1204 = vmatpush2.bf16.msra.mxu0 0
    %1205 = vmatprep.subr.bf16.mxu0 0
    %1206 = vmatpush2.bf16.msra.mxu0 0
    %1207 = vmatprep.subr.bf16.mxu0 0
    %1208 = vmatpush2.bf16.msra.mxu0 0
    %1209 = vmatprep.subr.bf16.mxu0 0
    %1210 = vmatpush2.bf16.msra.mxu0 0
    %1211 = vmatprep.subr.bf16.mxu0 0
    %1212 = vmatpush2.bf16.msra.mxu0 0
    %1213 = vmatprep.mubr.bf16.mxu0 0
    %1214 = vmatmul.mubr.bf16.gmra.mxu0 %v1179
    %v1215 = vpop.f32.mrf.mxu0
    %v1216 = vadd.f32 %v176, %v1215
    %v1217 = vpop.f32.mrf.mxu0
    %v1218 = vpop.f32.mrf.mxu0
    %v1219 = vpop.f32.mrf.mxu0
    %1220 = vdwg.mxu0
    %v1221 = vmax.f32 %v1216, 0.0
    %v1222 = vpack.c.bf16 %v1221, %v1221
    %1223 = vmatprep.subr.bf16.mxu0 %v365
    %1224 = vmatpush1.bf16.msra.mxu0 %v364
    %1225 = vmatprep.subr.bf16.mxu0 %v362
    %1226 = vmatpush1.bf16.msra.mxu0 %v361
    %1227 = vmatprep.subr.bf16.mxu0 %v359
    %1228 = vmatpush1.bf16.msra.mxu0 %v358
    %1229 = vmatprep.subr.bf16.mxu0 %v356
    %1230 = vmatpush1.bf16.msra.mxu0 %v355
    %1231 = vmatprep.subr.bf16.mxu0 %v353
    %1232 = vmatpush1.bf16.msra.mxu0 %v352
    %1233 = vmatprep.subr.bf16.mxu0 %v350
    %1234 = vmatpush1.bf16.msra.mxu0 %v349
    %1235 = vmatprep.subr.bf16.mxu0 %v347
    %1236 = vmatpush1.bf16.msra.mxu0 %v346
    %1237 = vmatprep.subr.bf16.mxu0 %v344
    %1238 = vmatpush1.bf16.msra.mxu0 %v343
    %1239 = vmatprep.subr.bf16.mxu0 0
    %1240 = vmatpush2.bf16.msra.mxu0 0
    %1241 = vmatprep.subr.bf16.mxu0 0
    %1242 = vmatpush2.bf16.msra.mxu0 0
    %1243 = vmatprep.subr.bf16.mxu0 0
    %1244 = vmatpush2.bf16.msra.mxu0 0
    %1245 = vmatprep.subr.bf16.mxu0 0
    %1246 = vmatpush2.bf16.msra.mxu0 0
    %1247 = vmatprep.subr.bf16.mxu0 0
    %1248 = vmatpush2.bf16.msra.mxu0 0
    %1249 = vmatprep.subr.bf16.mxu0 0
    %1250 = vmatpush2.bf16.msra.mxu0 0
    %1251 = vmatprep.subr.bf16.mxu0 0
    %1252 = vmatpush2.bf16.msra.mxu0 0
    %1253 = vmatprep.subr.bf16.mxu0 0
    %1254 = vmatpush2.bf16.msra.mxu0 0
    %1255 = vmatprep.mubr.bf16.mxu0 0
    %1256 = vmatmul.mubr.bf16.gmra.mxu0 %v1222
    %v1257 = vpop.f32.mrf.mxu0
    %v1258 = vadd.f32 %v183, %v1257
    %v1259 = vpop.f32.mrf.mxu0
    %v1260 = vadd.f32 %v187, %v1259
    %v1261 = vpop.f32.mrf.mxu0
    %v1262 = vpop.f32.mrf.mxu0
    %1263 = vdwg.mxu0
    %1264 = vmatprep.subr.bf16.mxu0 0
    %1265 = vmatpush1.bf16.msra.mxu0 %v366
    %1266 = vmatprep.subr.bf16.mxu0 0
    %1267 = vmatpush1.bf16.msra.mxu0 %v363
    %1268 = vmatprep.subr.bf16.mxu0 0
    %1269 = vmatpush1.bf16.msra.mxu0 %v360
    %1270 = vmatprep.subr.bf16.mxu0 0
    %1271 = vmatpush1.bf16.msra.mxu0 %v357
    %1272 = vmatprep.subr.bf16.mxu0 0
    %1273 = vmatpush1.bf16.msra.mxu0 %v354
    %1274 = vmatprep.subr.bf16.mxu0 0
    %1275 = vmatpush1.bf16.msra.mxu0 %v351
    %1276 = vmatprep.subr.bf16.mxu0 0
    %1277 = vmatpush1.bf16.msra.mxu0 %v348
    %1278 = vmatprep.subr.bf16.mxu0 0
    %1279 = vmatpush1.bf16.msra.mxu0 %v345
    %1280 = vmatprep.subr.bf16.mxu0 0
    %1281 = vmatpush2.bf16.msra.mxu0 0
    %1282 = vmatprep.subr.bf16.mxu0 0
    %1283 = vmatpush2.bf16.msra.mxu0 0
    %1284 = vmatprep.subr.bf16.mxu0 0
    %1285 = vmatpush2.bf16.msra.mxu0 0
    %1286 = vmatprep.subr.bf16.mxu0 0
    %1287 = vmatpush2.bf16.msra.mxu0 0
    %1288 = vmatprep.subr.bf16.mxu0 0
    %1289 = vmatpush2.bf16.msra.mxu0 0
    %1290 = vmatprep.subr.bf16.mxu0 0
    %1291 = vmatpush2.bf16.msra.mxu0 0
    %1292 = vmatprep.subr.bf16.mxu0 0
    %1293 = vmatpush2.bf16.msra.mxu0 0
    %1294 = vmatprep.subr.bf16.mxu0 0
    %1295 = vmatpush2.bf16.msra.mxu0 0
    %1296 = vmatprep.mubr.bf16.mxu0 0
    %1297 = vmatmul.mubr.bf16.gmra.mxu0 %v1222
    %v1298 = vpop.f32.mrf.mxu0
    %v1299 = vadd.f32 %v191, %v1298
    %v1300 = vpop.f32.mrf.mxu0
    %v1301 = vpop.f32.mrf.mxu0
    %v1302 = vpop.f32.mrf.mxu0
    %1303 = vdwg.mxu0
    %v1304 = vpack.c.bf16 %v1172, %v1172
    %1305 = vmatprep.subr.bf16.mxu0 %v575
    %1306 = vmatpush1.bf16.msra.mxu0 %v574
    %1307 = vmatprep.subr.bf16.mxu0 %v572
    %1308 = vmatpush1.bf16.msra.mxu0 %v571
    %1309 = vmatprep.subr.bf16.mxu0 %v569
    %1310 = vmatpush1.bf16.msra.mxu0 %v568
    %1311 = vmatprep.subr.bf16.mxu0 %v566
    %1312 = vmatpush1.bf16.msra.mxu0 %v565
    %1313 = vmatprep.subr.bf16.mxu0 %v563
    %1314 = vmatpush1.bf16.msra.mxu0 %v562
    %1315 = vmatprep.subr.bf16.mxu0 %v560
    %1316 = vmatpush1.bf16.msra.mxu0 %v559
    %1317 = vmatprep.subr.bf16.mxu0 %v557
    %1318 = vmatpush1.bf16.msra.mxu0 %v556
    %1319 = vmatprep.subr.bf16.mxu0 %v554
    %1320 = vmatpush1.bf16.msra.mxu0 %v553
    %1321 = vmatprep.subr.bf16.mxu0 0
    %1322 = vmatpush2.bf16.msra.mxu0 0
    %1323 = vmatprep.subr.bf16.mxu0 0
    %1324 = vmatpush2.bf16.msra.mxu0 0
    %1325 = vmatprep.subr.bf16.mxu0 0
    %1326 = vmatpush2.bf16.msra.mxu0 0
    %1327 = vmatprep.subr.bf16.mxu0 0
    %1328 = vmatpush2.bf16.msra.mxu0 0
    %1329 = vmatprep.subr.bf16.mxu0 0
    %1330 = vmatpush2.bf16.msra.mxu0 0
    %1331 = vmatprep.subr.bf16.mxu0 0
    %1332 = vmatpush2.bf16.msra.mxu0 0
    %1333 = vmatprep.subr.bf16.mxu0 0
    %1334 = vmatpush2.bf16.msra.mxu0 0
    %1335 = vmatprep.subr.bf16.mxu0 0
    %1336 = vmatpush2.bf16.msra.mxu0 0
    %1337 = vmatprep.mubr.bf16.mxu0 0
    %1338 = vmatmul.mubr.bf16.gmra.mxu0 %v1304
    %v1339 = vpop.f32.mrf.mxu0
    %v1340 = vadd.f32 0.0, %v1339
    %v1341 = vpop.f32.mrf.mxu0
    %v1342 = vadd.f32 0.0, %v1341
    %v1343 = vpop.f32.mrf.mxu0
    %v1344 = vpop.f32.mrf.mxu0
    %1345 = vdwg.mxu0
    %1346 = vmatprep.subr.bf16.mxu0 0
    %1347 = vmatpush1.bf16.msra.mxu0 %v576
    %1348 = vmatprep.subr.bf16.mxu0 0
    %1349 = vmatpush1.bf16.msra.mxu0 %v573
    %1350 = vmatprep.subr.bf16.mxu0 0
    %1351 = vmatpush1.bf16.msra.mxu0 %v570
    %1352 = vmatprep.subr.bf16.mxu0 0
    %1353 = vmatpush1.bf16.msra.mxu0 %v567
    %1354 = vmatprep.subr.bf16.mxu0 0
    %1355 = vmatpush1.bf16.msra.mxu0 %v564
    %1356 = vmatprep.subr.bf16.mxu0 0
    %1357 = vmatpush1.bf16.msra.mxu0 %v561
    %1358 = vmatprep.subr.bf16.mxu0 0
    %1359 = vmatpush1.bf16.msra.mxu0 %v558
    %1360 = vmatprep.subr.bf16.mxu0 0
    %1361 = vmatpush1.bf16.msra.mxu0 %v555
    %1362 = vmatprep.subr.bf16.mxu0 0
    %1363 = vmatpush2.bf16.msra.mxu0 0
    %1364 = vmatprep.subr.bf16.mxu0 0
    %1365 = vmatpush2.bf16.msra.mxu0 0
    %1366 = vmatprep.subr.bf16.mxu0 0
    %1367 = vmatpush2.bf16.msra.mxu0 0
    %1368 = vmatprep.subr.bf16.mxu0 0
    %1369 = vmatpush2.bf16.msra.mxu0 0
    %1370 = vmatprep.subr.bf16.mxu0 0
    %1371 = vmatpush2.bf16.msra.mxu0 0
    %1372 = vmatprep.subr.bf16.mxu0 0
    %1373 = vmatpush2.bf16.msra.mxu0 0
    %1374 = vmatprep.subr.bf16.mxu0 0
    %1375 = vmatpush2.bf16.msra.mxu0 0
    %1376 = vmatprep.subr.bf16.mxu0 0
    %1377 = vmatpush2.bf16.msra.mxu0 0
    %1378 = vmatprep.mubr.bf16.mxu0 0
    %1379 = vmatmul.mubr.bf16.gmra.mxu0 %v1304
    %v1380 = vpop.f32.mrf.mxu0
    %v1381 = vadd.f32 0.0, %v1380
    %v1382 = vpop.f32.mrf.mxu0
    %v1383 = vpop.f32.mrf.mxu0
    %v1384 = vpop.f32.mrf.mxu0
    %1385 = vdwg.mxu0
    %v1386 = vadd.f32 %v1258, %v1340
    %v1387 = vxor.u32 %v1386, 2147483648
    %v1388 = vmul.f32 %v1387, 1.442695
    %v1389 = vpow.pop %v1388
    %v1390 = vadd.f32 %v1389, 1.0
    %v1391 = vrcp.pop %v1390
    %v1392 = vmul.f32 1.0, %v1391
    %v1393 = vadd.f32 %v1260, %v1342
    %v1394 = vxor.u32 %v1393, 2147483648
    %v1395 = vmul.f32 %v1394, 1.442695
    %v1396 = vpow.pop %v1395
    %v1397 = vadd.f32 %v1396, 1.0
    %v1398 = vrcp.pop %v1397
    %v1399 = vmul.f32 1.0, %v1398
    %v1400 = vadd.f32 %v1381, %v200
    %v1401 = vmul.f32 %v1392, %v1400
    %v1402 = vadd.f32 %v1299, %v1401
    %v1403 = vtanh.pop %v1402
    %v1404 = vsub.f32 1.0, %v1399
    %v1405 = vmul.f32 %v1404, %v1403
    %v1406 = vmul.f32 %v1399, %v1172
    %v1407 = vadd.f32 %v1405, %v1406
    %s1408 = scalar_lea.vmem [#allocation12], 24
    %1409 = vst [vmem:[%s1408] sm:$0xff] %v1407
    %s1410 = scalar_lea.vmem [#allocation3], 32
    %v1411 = vld [vmem:[%s1410] sm:$0xff]
    %v1412 = vpack.c.bf16 %v1411, %v1411
    %v1414 = vsel %vm217, %v1412, 0
    %1416 = vmatprep.subr.bf16.mxu0 0
    %1417 = vmatpush1.bf16.msra.mxu0 0
    %1418 = vmatprep.subr.bf16.mxu0 0
    %1419 = vmatpush1.bf16.msra.mxu0 0
    %1420 = vmatprep.subr.bf16.mxu0 0
    %1421 = vmatpush1.bf16.msra.mxu0 0
    %1422 = vmatprep.subr.bf16.mxu0 0
    %1423 = vmatpush1.bf16.msra.mxu0 0
    %1424 = vmatprep.subr.bf16.mxu0 0
    %1425 = vmatpush1.bf16.msra.mxu0 0
    %1426 = vmatprep.subr.bf16.mxu0 0
    %1427 = vmatpush1.bf16.msra.mxu0 0
    %1428 = vmatprep.subr.bf16.mxu0 0
    %1429 = vmatpush1.bf16.msra.mxu0 %v214
    %1430 = vmatprep.subr.bf16.mxu0 0
    %1431 = vmatpush1.bf16.msra.mxu0 %v213
    %1432 = vmatprep.subr.bf16.mxu0 0
    %1433 = vmatpush2.bf16.msra.mxu0 0
    %1434 = vmatprep.subr.bf16.mxu0 0
    %1435 = vmatpush2.bf16.msra.mxu0 0
    %1436 = vmatprep.subr.bf16.mxu0 0
    %1437 = vmatpush2.bf16.msra.mxu0 0
    %1438 = vmatprep.subr.bf16.mxu0 0
    %1439 = vmatpush2.bf16.msra.mxu0 0
    %1440 = vmatprep.subr.bf16.mxu0 0
    %1441 = vmatpush2.bf16.msra.mxu0 0
    %1442 = vmatprep.subr.bf16.mxu0 0
    %1443 = vmatpush2.bf16.msra.mxu0 0
    %1444 = vmatprep.subr.bf16.mxu0 0
    %1445 = vmatpush2.bf16.msra.mxu0 0
    %1446 = vmatprep.subr.bf16.mxu0 0
    %1447 = vmatpush2.bf16.msra.mxu0 0
    %1448 = vmatprep.mubr.bf16.mxu0 0
    %1449 = vmatmul.mubr.bf16.gmra.mxu0 %v1414
    %v1450 = vpop.f32.mrf.mxu0
    %v1451 = vadd.f32 %v176, %v1450
    %v1452 = vpop.f32.mrf.mxu0
    %v1453 = vpop.f32.mrf.mxu0
    %v1454 = vpop.f32.mrf.mxu0
    %1455 = vdwg.mxu0
    %v1456 = vmax.f32 %v1451, 0.0
    %v1457 = vpack.c.bf16 %v1456, %v1456
    %1458 = vmatprep.subr.bf16.mxu0 %v365
    %1459 = vmatpush1.bf16.msra.mxu0 %v364
    %1460 = vmatprep.subr.bf16.mxu0 %v362
    %1461 = vmatpush1.bf16.msra.mxu0 %v361
    %1462 = vmatprep.subr.bf16.mxu0 %v359
    %1463 = vmatpush1.bf16.msra.mxu0 %v358
    %1464 = vmatprep.subr.bf16.mxu0 %v356
    %1465 = vmatpush1.bf16.msra.mxu0 %v355
    %1466 = vmatprep.subr.bf16.mxu0 %v353
    %1467 = vmatpush1.bf16.msra.mxu0 %v352
    %1468 = vmatprep.subr.bf16.mxu0 %v350
    %1469 = vmatpush1.bf16.msra.mxu0 %v349
    %1470 = vmatprep.subr.bf16.mxu0 %v347
    %1471 = vmatpush1.bf16.msra.mxu0 %v346
    %1472 = vmatprep.subr.bf16.mxu0 %v344
    %1473 = vmatpush1.bf16.msra.mxu0 %v343
    %1474 = vmatprep.subr.bf16.mxu0 0
    %1475 = vmatpush2.bf16.msra.mxu0 0
    %1476 = vmatprep.subr.bf16.mxu0 0
    %1477 = vmatpush2.bf16.msra.mxu0 0
    %1478 = vmatprep.subr.bf16.mxu0 0
    %1479 = vmatpush2.bf16.msra.mxu0 0
    %1480 = vmatprep.subr.bf16.mxu0 0
    %1481 = vmatpush2.bf16.msra.mxu0 0
    %1482 = vmatprep.subr.bf16.mxu0 0
    %1483 = vmatpush2.bf16.msra.mxu0 0
    %1484 = vmatprep.subr.bf16.mxu0 0
    %1485 = vmatpush2.bf16.msra.mxu0 0
    %1486 = vmatprep.subr.bf16.mxu0 0
    %1487 = vmatpush2.bf16.msra.mxu0 0
    %1488 = vmatprep.subr.bf16.mxu0 0
    %1489 = vmatpush2.bf16.msra.mxu0 0
    %1490 = vmatprep.mubr.bf16.mxu0 0
    %1491 = vmatmul.mubr.bf16.gmra.mxu0 %v1457
    %v1492 = vpop.f32.mrf.mxu0
    %v1493 = vadd.f32 %v183, %v1492
    %v1494 = vpop.f32.mrf.mxu0
    %v1495 = vadd.f32 %v187, %v1494
    %v1496 = vpop.f32.mrf.mxu0
    %v1497 = vpop.f32.mrf.mxu0
    %1498 = vdwg.mxu0
    %1499 = vmatprep.subr.bf16.mxu0 0
    %1500 = vmatpush1.bf16.msra.mxu0 %v366
    %1501 = vmatprep.subr.bf16.mxu0 0
    %1502 = vmatpush1.bf16.msra.mxu0 %v363
    %1503 = vmatprep.subr.bf16.mxu0 0
    %1504 = vmatpush1.bf16.msra.mxu0 %v360
    %1505 = vmatprep.subr.bf16.mxu0 0
    %1506 = vmatpush1.bf16.msra.mxu0 %v357
    %1507 = vmatprep.subr.bf16.mxu0 0
    %1508 = vmatpush1.bf16.msra.mxu0 %v354
    %1509 = vmatprep.subr.bf16.mxu0 0
    %1510 = vmatpush1.bf16.msra.mxu0 %v351
    %1511 = vmatprep.subr.bf16.mxu0 0
    %1512 = vmatpush1.bf16.msra.mxu0 %v348
    %1513 = vmatprep.subr.bf16.mxu0 0
    %1514 = vmatpush1.bf16.msra.mxu0 %v345
    %1515 = vmatprep.subr.bf16.mxu0 0
    %1516 = vmatpush2.bf16.msra.mxu0 0
    %1517 = vmatprep.subr.bf16.mxu0 0
    %1518 = vmatpush2.bf16.msra.mxu0 0
    %1519 = vmatprep.subr.bf16.mxu0 0
    %1520 = vmatpush2.bf16.msra.mxu0 0
    %1521 = vmatprep.subr.bf16.mxu0 0
    %1522 = vmatpush2.bf16.msra.mxu0 0
    %1523 = vmatprep.subr.bf16.mxu0 0
    %1524 = vmatpush2.bf16.msra.mxu0 0
    %1525 = vmatprep.subr.bf16.mxu0 0
    %1526 = vmatpush2.bf16.msra.mxu0 0
    %1527 = vmatprep.subr.bf16.mxu0 0
    %1528 = vmatpush2.bf16.msra.mxu0 0
    %1529 = vmatprep.subr.bf16.mxu0 0
    %1530 = vmatpush2.bf16.msra.mxu0 0
    %1531 = vmatprep.mubr.bf16.mxu0 0
    %1532 = vmatmul.mubr.bf16.gmra.mxu0 %v1457
    %v1533 = vpop.f32.mrf.mxu0
    %v1534 = vadd.f32 %v191, %v1533
    %v1535 = vpop.f32.mrf.mxu0
    %v1536 = vpop.f32.mrf.mxu0
    %v1537 = vpop.f32.mrf.mxu0
    %1538 = vdwg.mxu0
    %v1539 = vpack.c.bf16 %v1407, %v1407
    %1540 = vmatprep.subr.bf16.mxu0 %v575
    %1541 = vmatpush1.bf16.msra.mxu0 %v574
    %1542 = vmatprep.subr.bf16.mxu0 %v572
    %1543 = vmatpush1.bf16.msra.mxu0 %v571
    %1544 = vmatprep.subr.bf16.mxu0 %v569
    %1545 = vmatpush1.bf16.msra.mxu0 %v568
    %1546 = vmatprep.subr.bf16.mxu0 %v566
    %1547 = vmatpush1.bf16.msra.mxu0 %v565
    %1548 = vmatprep.subr.bf16.mxu0 %v563
    %1549 = vmatpush1.bf16.msra.mxu0 %v562
    %1550 = vmatprep.subr.bf16.mxu0 %v560
    %1551 = vmatpush1.bf16.msra.mxu0 %v559
    %1552 = vmatprep.subr.bf16.mxu0 %v557
    %1553 = vmatpush1.bf16.msra.mxu0 %v556
    %1554 = vmatprep.subr.bf16.mxu0 %v554
    %1555 = vmatpush1.bf16.msra.mxu0 %v553
    %1556 = vmatprep.subr.bf16.mxu0 0
    %1557 = vmatpush2.bf16.msra.mxu0 0
    %1558 = vmatprep.subr.bf16.mxu0 0
    %1559 = vmatpush2.bf16.msra.mxu0 0
    %1560 = vmatprep.subr.bf16.mxu0 0
    %1561 = vmatpush2.bf16.msra.mxu0 0
    %1562 = vmatprep.subr.bf16.mxu0 0
    %1563 = vmatpush2.bf16.msra.mxu0 0
    %1564 = vmatprep.subr.bf16.mxu0 0
    %1565 = vmatpush2.bf16.msra.mxu0 0
    %1566 = vmatprep.subr.bf16.mxu0 0
    %1567 = vmatpush2.bf16.msra.mxu0 0
    %1568 = vmatprep.subr.bf16.mxu0 0
    %1569 = vmatpush2.bf16.msra.mxu0 0
    %1570 = vmatprep.subr.bf16.mxu0 0
    %1571 = vmatpush2.bf16.msra.mxu0 0
    %1572 = vmatprep.mubr.bf16.mxu0 0
    %1573 = vmatmul.mubr.bf16.gmra.mxu0 %v1539
    %v1574 = vpop.f32.mrf.mxu0
    %v1575 = vadd.f32 0.0, %v1574
    %v1576 = vpop.f32.mrf.mxu0
    %v1577 = vadd.f32 0.0, %v1576
    %v1578 = vpop.f32.mrf.mxu0
    %v1579 = vpop.f32.mrf.mxu0
    %1580 = vdwg.mxu0
    %1581 = vmatprep.subr.bf16.mxu0 0
    %1582 = vmatpush1.bf16.msra.mxu0 %v576
    %1583 = vmatprep.subr.bf16.mxu0 0
    %1584 = vmatpush1.bf16.msra.mxu0 %v573
    %1585 = vmatprep.subr.bf16.mxu0 0
    %1586 = vmatpush1.bf16.msra.mxu0 %v570
    %1587 = vmatprep.subr.bf16.mxu0 0
    %1588 = vmatpush1.bf16.msra.mxu0 %v567
    %1589 = vmatprep.subr.bf16.mxu0 0
    %1590 = vmatpush1.bf16.msra.mxu0 %v564
    %1591 = vmatprep.subr.bf16.mxu0 0
    %1592 = vmatpush1.bf16.msra.mxu0 %v561
    %1593 = vmatprep.subr.bf16.mxu0 0
    %1594 = vmatpush1.bf16.msra.mxu0 %v558
    %1595 = vmatprep.subr.bf16.mxu0 0
    %1596 = vmatpush1.bf16.msra.mxu0 %v555
    %1597 = vmatprep.subr.bf16.mxu0 0
    %1598 = vmatpush2.bf16.msra.mxu0 0
    %1599 = vmatprep.subr.bf16.mxu0 0
    %1600 = vmatpush2.bf16.msra.mxu0 0
    %1601 = vmatprep.subr.bf16.mxu0 0
    %1602 = vmatpush2.bf16.msra.mxu0 0
    %1603 = vmatprep.subr.bf16.mxu0 0
    %1604 = vmatpush2.bf16.msra.mxu0 0
    %1605 = vmatprep.subr.bf16.mxu0 0
    %1606 = vmatpush2.bf16.msra.mxu0 0
    %1607 = vmatprep.subr.bf16.mxu0 0
    %1608 = vmatpush2.bf16.msra.mxu0 0
    %1609 = vmatprep.subr.bf16.mxu0 0
    %1610 = vmatpush2.bf16.msra.mxu0 0
    %1611 = vmatprep.subr.bf16.mxu0 0
    %1612 = vmatpush2.bf16.msra.mxu0 0
    %1613 = vmatprep.mubr.bf16.mxu0 0
    %1614 = vmatmul.mubr.bf16.gmra.mxu0 %v1539
    %v1615 = vpop.f32.mrf.mxu0
    %v1616 = vadd.f32 0.0, %v1615
    %v1617 = vpop.f32.mrf.mxu0
    %v1618 = vpop.f32.mrf.mxu0
    %v1619 = vpop.f32.mrf.mxu0
    %1620 = vdwg.mxu0
    %v1621 = vadd.f32 %v1493, %v1575
    %v1622 = vxor.u32 %v1621, 2147483648
    %v1623 = vmul.f32 %v1622, 1.442695
    %v1624 = vpow.pop %v1623
    %v1625 = vadd.f32 %v1624, 1.0
    %v1626 = vrcp.pop %v1625
    %v1627 = vmul.f32 1.0, %v1626
    %v1628 = vadd.f32 %v1495, %v1577
    %v1629 = vxor.u32 %v1628, 2147483648
    %v1630 = vmul.f32 %v1629, 1.442695
    %v1631 = vpow.pop %v1630
    %v1632 = vadd.f32 %v1631, 1.0
    %v1633 = vrcp.pop %v1632
    %v1634 = vmul.f32 1.0, %v1633
    %v1635 = vadd.f32 %v1616, %v200
    %v1636 = vmul.f32 %v1627, %v1635
    %v1637 = vadd.f32 %v1534, %v1636
    %v1638 = vtanh.pop %v1637
    %v1639 = vsub.f32 1.0, %v1634
    %v1640 = vmul.f32 %v1639, %v1638
    %v1641 = vmul.f32 %v1634, %v1407
    %v1642 = vadd.f32 %v1640, %v1641
    %s1643 = scalar_lea.vmem [#allocation12], 32
    %1644 = vst [vmem:[%s1643] sm:$0xff] %v1642
    %s1645 = scalar_lea.vmem [#allocation3], 40
    %v1646 = vld [vmem:[%s1645] sm:$0xff]
    %v1647 = vpack.c.bf16 %v1646, %v1646
    %v1649 = vsel %vm217, %v1647, 0
    %1651 = vmatprep.subr.bf16.mxu0 0
    %1652 = vmatpush1.bf16.msra.mxu0 0
    %1653 = vmatprep.subr.bf16.mxu0 0
    %1654 = vmatpush1.bf16.msra.mxu0 0
    %1655 = vmatprep.subr.bf16.mxu0 0
    %1656 = vmatpush1.bf16.msra.mxu0 0
    %1657 = vmatprep.subr.bf16.mxu0 0
    %1658 = vmatpush1.bf16.msra.mxu0 0
    %1659 = vmatprep.subr.bf16.mxu0 0
    %1660 = vmatpush1.bf16.msra.mxu0 0
    %1661 = vmatprep.subr.bf16.mxu0 0
    %1662 = vmatpush1.bf16.msra.mxu0 0
    %1663 = vmatprep.subr.bf16.mxu0 0
    %1664 = vmatpush1.bf16.msra.mxu0 %v214
    %1665 = vmatprep.subr.bf16.mxu0 0
    %1666 = vmatpush1.bf16.msra.mxu0 %v213
    %1667 = vmatprep.subr.bf16.mxu0 0
    %1668 = vmatpush2.bf16.msra.mxu0 0
    %1669 = vmatprep.subr.bf16.mxu0 0
    %1670 = vmatpush2.bf16.msra.mxu0 0
    %1671 = vmatprep.subr.bf16.mxu0 0
    %1672 = vmatpush2.bf16.msra.mxu0 0
    %1673 = vmatprep.subr.bf16.mxu0 0
    %1674 = vmatpush2.bf16.msra.mxu0 0
    %1675 = vmatprep.subr.bf16.mxu0 0
    %1676 = vmatpush2.bf16.msra.mxu0 0
    %1677 = vmatprep.subr.bf16.mxu0 0
    %1678 = vmatpush2.bf16.msra.mxu0 0
    %1679 = vmatprep.subr.bf16.mxu0 0
    %1680 = vmatpush2.bf16.msra.mxu0 0
    %1681 = vmatprep.subr.bf16.mxu0 0
    %1682 = vmatpush2.bf16.msra.mxu0 0
    %1683 = vmatprep.mubr.bf16.mxu0 0
    %1684 = vmatmul.mubr.bf16.gmra.mxu0 %v1649
    %v1685 = vpop.f32.mrf.mxu0
    %v1686 = vadd.f32 %v176, %v1685
    %v1687 = vpop.f32.mrf.mxu0
    %v1688 = vpop.f32.mrf.mxu0
    %v1689 = vpop.f32.mrf.mxu0
    %1690 = vdwg.mxu0
    %v1691 = vmax.f32 %v1686, 0.0
    %v1692 = vpack.c.bf16 %v1691, %v1691
    %1693 = vmatprep.subr.bf16.mxu0 %v365
    %1694 = vmatpush1.bf16.msra.mxu0 %v364
    %1695 = vmatprep.subr.bf16.mxu0 %v362
    %1696 = vmatpush1.bf16.msra.mxu0 %v361
    %1697 = vmatprep.subr.bf16.mxu0 %v359
    %1698 = vmatpush1.bf16.msra.mxu0 %v358
    %1699 = vmatprep.subr.bf16.mxu0 %v356
    %1700 = vmatpush1.bf16.msra.mxu0 %v355
    %1701 = vmatprep.subr.bf16.mxu0 %v353
    %1702 = vmatpush1.bf16.msra.mxu0 %v352
    %1703 = vmatprep.subr.bf16.mxu0 %v350
    %1704 = vmatpush1.bf16.msra.mxu0 %v349
    %1705 = vmatprep.subr.bf16.mxu0 %v347
    %1706 = vmatpush1.bf16.msra.mxu0 %v346
    %1707 = vmatprep.subr.bf16.mxu0 %v344
    %1708 = vmatpush1.bf16.msra.mxu0 %v343
    %1709 = vmatprep.subr.bf16.mxu0 0
    %1710 = vmatpush2.bf16.msra.mxu0 0
    %1711 = vmatprep.subr.bf16.mxu0 0
    %1712 = vmatpush2.bf16.msra.mxu0 0
    %1713 = vmatprep.subr.bf16.mxu0 0
    %1714 = vmatpush2.bf16.msra.mxu0 0
    %1715 = vmatprep.subr.bf16.mxu0 0
    %1716 = vmatpush2.bf16.msra.mxu0 0
    %1717 = vmatprep.subr.bf16.mxu0 0
    %1718 = vmatpush2.bf16.msra.mxu0 0
    %1719 = vmatprep.subr.bf16.mxu0 0
    %1720 = vmatpush2.bf16.msra.mxu0 0
    %1721 = vmatprep.subr.bf16.mxu0 0
    %1722 = vmatpush2.bf16.msra.mxu0 0
    %1723 = vmatprep.subr.bf16.mxu0 0
    %1724 = vmatpush2.bf16.msra.mxu0 0
    %1725 = vmatprep.mubr.bf16.mxu0 0
    %1726 = vmatmul.mubr.bf16.gmra.mxu0 %v1692
    %v1727 = vpop.f32.mrf.mxu0
    %v1728 = vadd.f32 %v183, %v1727
    %v1729 = vpop.f32.mrf.mxu0
    %v1730 = vadd.f32 %v187, %v1729
    %v1731 = vpop.f32.mrf.mxu0
    %v1732 = vpop.f32.mrf.mxu0
    %1733 = vdwg.mxu0
    %1734 = vmatprep.subr.bf16.mxu0 0
    %1735 = vmatpush1.bf16.msra.mxu0 %v366
    %1736 = vmatprep.subr.bf16.mxu0 0
    %1737 = vmatpush1.bf16.msra.mxu0 %v363
    %1738 = vmatprep.subr.bf16.mxu0 0
    %1739 = vmatpush1.bf16.msra.mxu0 %v360
    %1740 = vmatprep.subr.bf16.mxu0 0
    %1741 = vmatpush1.bf16.msra.mxu0 %v357
    %1742 = vmatprep.subr.bf16.mxu0 0
    %1743 = vmatpush1.bf16.msra.mxu0 %v354
    %1744 = vmatprep.subr.bf16.mxu0 0
    %1745 = vmatpush1.bf16.msra.mxu0 %v351
    %1746 = vmatprep.subr.bf16.mxu0 0
    %1747 = vmatpush1.bf16.msra.mxu0 %v348
    %1748 = vmatprep.subr.bf16.mxu0 0
    %1749 = vmatpush1.bf16.msra.mxu0 %v345
    %1750 = vmatprep.subr.bf16.mxu0 0
    %1751 = vmatpush2.bf16.msra.mxu0 0
    %1752 = vmatprep.subr.bf16.mxu0 0
    %1753 = vmatpush2.bf16.msra.mxu0 0
    %1754 = vmatprep.subr.bf16.mxu0 0
    %1755 = vmatpush2.bf16.msra.mxu0 0
    %1756 = vmatprep.subr.bf16.mxu0 0
    %1757 = vmatpush2.bf16.msra.mxu0 0
    %1758 = vmatprep.subr.bf16.mxu0 0
    %1759 = vmatpush2.bf16.msra.mxu0 0
    %1760 = vmatprep.subr.bf16.mxu0 0
    %1761 = vmatpush2.bf16.msra.mxu0 0
    %1762 = vmatprep.subr.bf16.mxu0 0
    %1763 = vmatpush2.bf16.msra.mxu0 0
    %1764 = vmatprep.subr.bf16.mxu0 0
    %1765 = vmatpush2.bf16.msra.mxu0 0
    %1766 = vmatprep.mubr.bf16.mxu0 0
    %1767 = vmatmul.mubr.bf16.gmra.mxu0 %v1692
    %v1768 = vpop.f32.mrf.mxu0
    %v1769 = vadd.f32 %v191, %v1768
    %v1770 = vpop.f32.mrf.mxu0
    %v1771 = vpop.f32.mrf.mxu0
    %v1772 = vpop.f32.mrf.mxu0
    %1773 = vdwg.mxu0
    %v1774 = vpack.c.bf16 %v1642, %v1642
    %1775 = vmatprep.subr.bf16.mxu0 %v575
    %1776 = vmatpush1.bf16.msra.mxu0 %v574
    %1777 = vmatprep.subr.bf16.mxu0 %v572
    %1778 = vmatpush1.bf16.msra.mxu0 %v571
    %1779 = vmatprep.subr.bf16.mxu0 %v569
    %1780 = vmatpush1.bf16.msra.mxu0 %v568
    %1781 = vmatprep.subr.bf16.mxu0 %v566
    %1782 = vmatpush1.bf16.msra.mxu0 %v565
    %1783 = vmatprep.subr.bf16.mxu0 %v563
    %1784 = vmatpush1.bf16.msra.mxu0 %v562
    %1785 = vmatprep.subr.bf16.mxu0 %v560
    %1786 = vmatpush1.bf16.msra.mxu0 %v559
    %1787 = vmatprep.subr.bf16.mxu0 %v557
    %1788 = vmatpush1.bf16.msra.mxu0 %v556
    %1789 = vmatprep.subr.bf16.mxu0 %v554
    %1790 = vmatpush1.bf16.msra.mxu0 %v553
    %1791 = vmatprep.subr.bf16.mxu0 0
    %1792 = vmatpush2.bf16.msra.mxu0 0
    %1793 = vmatprep.subr.bf16.mxu0 0
    %1794 = vmatpush2.bf16.msra.mxu0 0
    %1795 = vmatprep.subr.bf16.mxu0 0
    %1796 = vmatpush2.bf16.msra.mxu0 0
    %1797 = vmatprep.subr.bf16.mxu0 0
    %1798 = vmatpush2.bf16.msra.mxu0 0
    %1799 = vmatprep.subr.bf16.mxu0 0
    %1800 = vmatpush2.bf16.msra.mxu0 0
    %1801 = vmatprep.subr.bf16.mxu0 0
    %1802 = vmatpush2.bf16.msra.mxu0 0
    %1803 = vmatprep.subr.bf16.mxu0 0
    %1804 = vmatpush2.bf16.msra.mxu0 0
    %1805 = vmatprep.subr.bf16.mxu0 0
    %1806 = vmatpush2.bf16.msra.mxu0 0
    %1807 = vmatprep.mubr.bf16.mxu0 0
    %1808 = vmatmul.mubr.bf16.gmra.mxu0 %v1774
    %v1809 = vpop.f32.mrf.mxu0
    %v1810 = vadd.f32 0.0, %v1809
    %v1811 = vpop.f32.mrf.mxu0
    %v1812 = vadd.f32 0.0, %v1811
    %v1813 = vpop.f32.mrf.mxu0
    %v1814 = vpop.f32.mrf.mxu0
    %1815 = vdwg.mxu0
    %1816 = vmatprep.subr.bf16.mxu0 0
    %1817 = vmatpush1.bf16.msra.mxu0 %v576
    %1818 = vmatprep.subr.bf16.mxu0 0
    %1819 = vmatpush1.bf16.msra.mxu0 %v573
    %1820 = vmatprep.subr.bf16.mxu0 0
    %1821 = vmatpush1.bf16.msra.mxu0 %v570
    %1822 = vmatprep.subr.bf16.mxu0 0
    %1823 = vmatpush1.bf16.msra.mxu0 %v567
    %1824 = vmatprep.subr.bf16.mxu0 0
    %1825 = vmatpush1.bf16.msra.mxu0 %v564
    %1826 = vmatprep.subr.bf16.mxu0 0
    %1827 = vmatpush1.bf16.msra.mxu0 %v561
    %1828 = vmatprep.subr.bf16.mxu0 0
    %1829 = vmatpush1.bf16.msra.mxu0 %v558
    %1830 = vmatprep.subr.bf16.mxu0 0
    %1831 = vmatpush1.bf16.msra.mxu0 %v555
    %1832 = vmatprep.subr.bf16.mxu0 0
    %1833 = vmatpush2.bf16.msra.mxu0 0
    %1834 = vmatprep.subr.bf16.mxu0 0
    %1835 = vmatpush2.bf16.msra.mxu0 0
    %1836 = vmatprep.subr.bf16.mxu0 0
    %1837 = vmatpush2.bf16.msra.mxu0 0
    %1838 = vmatprep.subr.bf16.mxu0 0
    %1839 = vmatpush2.bf16.msra.mxu0 0
    %1840 = vmatprep.subr.bf16.mxu0 0
    %1841 = vmatpush2.bf16.msra.mxu0 0
    %1842 = vmatprep.subr.bf16.mxu0 0
    %1843 = vmatpush2.bf16.msra.mxu0 0
    %1844 = vmatprep.subr.bf16.mxu0 0
    %1845 = vmatpush2.bf16.msra.mxu0 0
    %1846 = vmatprep.subr.bf16.mxu0 0
    %1847 = vmatpush2.bf16.msra.mxu0 0
    %1848 = vmatprep.mubr.bf16.mxu0 0
    %1849 = vmatmul.mubr.bf16.gmra.mxu0 %v1774
    %v1850 = vpop.f32.mrf.mxu0
    %v1851 = vadd.f32 0.0, %v1850
    %v1852 = vpop.f32.mrf.mxu0
    %v1853 = vpop.f32.mrf.mxu0
    %v1854 = vpop.f32.mrf.mxu0
    %1855 = vdwg.mxu0
    %v1856 = vadd.f32 %v1728, %v1810
    %v1857 = vxor.u32 %v1856, 2147483648
    %v1858 = vmul.f32 %v1857, 1.442695
    %v1859 = vpow.pop %v1858
    %v1860 = vadd.f32 %v1859, 1.0
    %v1861 = vrcp.pop %v1860
    %v1862 = vmul.f32 1.0, %v1861
    %v1863 = vadd.f32 %v1730, %v1812
    %v1864 = vxor.u32 %v1863, 2147483648
    %v1865 = vmul.f32 %v1864, 1.442695
    %v1866 = vpow.pop %v1865
    %v1867 = vadd.f32 %v1866, 1.0
    %v1868 = vrcp.pop %v1867
    %v1869 = vmul.f32 1.0, %v1868
    %v1870 = vadd.f32 %v1851, %v200
    %v1871 = vmul.f32 %v1862, %v1870
    %v1872 = vadd.f32 %v1769, %v1871
    %v1873 = vtanh.pop %v1872
    %v1874 = vsub.f32 1.0, %v1869
    %v1875 = vmul.f32 %v1874, %v1873
    %v1876 = vmul.f32 %v1869, %v1642
    %v1877 = vadd.f32 %v1875, %v1876
    %s1878 = scalar_lea.vmem [#allocation12], 40
    %1879 = vst [vmem:[%s1878] sm:$0xff] %v1877
    %s1880 = scalar_lea.vmem [#allocation3], 48
    %v1881 = vld [vmem:[%s1880] sm:$0xff]
    %v1882 = vpack.c.bf16 %v1881, %v1881
    %v1884 = vsel %vm217, %v1882, 0
    %1886 = vmatprep.subr.bf16.mxu0 0
    %1887 = vmatpush1.bf16.msra.mxu0 0
    %1888 = vmatprep.subr.bf16.mxu0 0
    %1889 = vmatpush1.bf16.msra.mxu0 0
    %1890 = vmatprep.subr.bf16.mxu0 0
    %1891 = vmatpush1.bf16.msra.mxu0 0
    %1892 = vmatprep.subr.bf16.mxu0 0
    %1893 = vmatpush1.bf16.msra.mxu0 0
    %1894 = vmatprep.subr.bf16.mxu0 0
    %1895 = vmatpush1.bf16.msra.mxu0 0
    %1896 = vmatprep.subr.bf16.mxu0 0
    %1897 = vmatpush1.bf16.msra.mxu0 0
    %1898 = vmatprep.subr.bf16.mxu0 0
    %1899 = vmatpush1.bf16.msra.mxu0 %v214
    %1900 = vmatprep.subr.bf16.mxu0 0
    %1901 = vmatpush1.bf16.msra.mxu0 %v213
    %1902 = vmatprep.subr.bf16.mxu0 0
    %1903 = vmatpush2.bf16.msra.mxu0 0
    %1904 = vmatprep.subr.bf16.mxu0 0
    %1905 = vmatpush2.bf16.msra.mxu0 0
    %1906 = vmatprep.subr.bf16.mxu0 0
    %1907 = vmatpush2.bf16.msra.mxu0 0
    %1908 = vmatprep.subr.bf16.mxu0 0
    %1909 = vmatpush2.bf16.msra.mxu0 0
    %1910 = vmatprep.subr.bf16.mxu0 0
    %1911 = vmatpush2.bf16.msra.mxu0 0
    %1912 = vmatprep.subr.bf16.mxu0 0
    %1913 = vmatpush2.bf16.msra.mxu0 0
    %1914 = vmatprep.subr.bf16.mxu0 0
    %1915 = vmatpush2.bf16.msra.mxu0 0
    %1916 = vmatprep.subr.bf16.mxu0 0
    %1917 = vmatpush2.bf16.msra.mxu0 0
    %1918 = vmatprep.mubr.bf16.mxu0 0
    %1919 = vmatmul.mubr.bf16.gmra.mxu0 %v1884
    %v1920 = vpop.f32.mrf.mxu0
    %v1921 = vadd.f32 %v176, %v1920
    %v1922 = vpop.f32.mrf.mxu0
    %v1923 = vpop.f32.mrf.mxu0
    %v1924 = vpop.f32.mrf.mxu0
    %1925 = vdwg.mxu0
    %v1926 = vmax.f32 %v1921, 0.0
    %v1927 = vpack.c.bf16 %v1926, %v1926
    %1928 = vmatprep.subr.bf16.mxu0 %v365
    %1929 = vmatpush1.bf16.msra.mxu0 %v364
    %1930 = vmatprep.subr.bf16.mxu0 %v362
    %1931 = vmatpush1.bf16.msra.mxu0 %v361
    %1932 = vmatprep.subr.bf16.mxu0 %v359
    %1933 = vmatpush1.bf16.msra.mxu0 %v358
    %1934 = vmatprep.subr.bf16.mxu0 %v356
    %1935 = vmatpush1.bf16.msra.mxu0 %v355
    %1936 = vmatprep.subr.bf16.mxu0 %v353
    %1937 = vmatpush1.bf16.msra.mxu0 %v352
    %1938 = vmatprep.subr.bf16.mxu0 %v350
    %1939 = vmatpush1.bf16.msra.mxu0 %v349
    %1940 = vmatprep.subr.bf16.mxu0 %v347
    %1941 = vmatpush1.bf16.msra.mxu0 %v346
    %1942 = vmatprep.subr.bf16.mxu0 %v344
    %1943 = vmatpush1.bf16.msra.mxu0 %v343
    %1944 = vmatprep.subr.bf16.mxu0 0
    %1945 = vmatpush2.bf16.msra.mxu0 0
    %1946 = vmatprep.subr.bf16.mxu0 0
    %1947 = vmatpush2.bf16.msra.mxu0 0
    %1948 = vmatprep.subr.bf16.mxu0 0
    %1949 = vmatpush2.bf16.msra.mxu0 0
    %1950 = vmatprep.subr.bf16.mxu0 0
    %1951 = vmatpush2.bf16.msra.mxu0 0
    %1952 = vmatprep.subr.bf16.mxu0 0
    %1953 = vmatpush2.bf16.msra.mxu0 0
    %1954 = vmatprep.subr.bf16.mxu0 0
    %1955 = vmatpush2.bf16.msra.mxu0 0
    %1956 = vmatprep.subr.bf16.mxu0 0
    %1957 = vmatpush2.bf16.msra.mxu0 0
    %1958 = vmatprep.subr.bf16.mxu0 0
    %1959 = vmatpush2.bf16.msra.mxu0 0
    %1960 = vmatprep.mubr.bf16.mxu0 0
    %1961 = vmatmul.mubr.bf16.gmra.mxu0 %v1927
    %v1962 = vpop.f32.mrf.mxu0
    %v1963 = vadd.f32 %v183, %v1962
    %v1964 = vpop.f32.mrf.mxu0
    %v1965 = vadd.f32 %v187, %v1964
    %v1966 = vpop.f32.mrf.mxu0
    %v1967 = vpop.f32.mrf.mxu0
    %1968 = vdwg.mxu0
    %1969 = vmatprep.subr.bf16.mxu0 0
    %1970 = vmatpush1.bf16.msra.mxu0 %v366
    %1971 = vmatprep.subr.bf16.mxu0 0
    %1972 = vmatpush1.bf16.msra.mxu0 %v363
    %1973 = vmatprep.subr.bf16.mxu0 0
    %1974 = vmatpush1.bf16.msra.mxu0 %v360
    %1975 = vmatprep.subr.bf16.mxu0 0
    %1976 = vmatpush1.bf16.msra.mxu0 %v357
    %1977 = vmatprep.subr.bf16.mxu0 0
    %1978 = vmatpush1.bf16.msra.mxu0 %v354
    %1979 = vmatprep.subr.bf16.mxu0 0
    %1980 = vmatpush1.bf16.msra.mxu0 %v351
    %1981 = vmatprep.subr.bf16.mxu0 0
    %1982 = vmatpush1.bf16.msra.mxu0 %v348
    %1983 = vmatprep.subr.bf16.mxu0 0
    %1984 = vmatpush1.bf16.msra.mxu0 %v345
    %1985 = vmatprep.subr.bf16.mxu0 0
    %1986 = vmatpush2.bf16.msra.mxu0 0
    %1987 = vmatprep.subr.bf16.mxu0 0
    %1988 = vmatpush2.bf16.msra.mxu0 0
    %1989 = vmatprep.subr.bf16.mxu0 0
    %1990 = vmatpush2.bf16.msra.mxu0 0
    %1991 = vmatprep.subr.bf16.mxu0 0
    %1992 = vmatpush2.bf16.msra.mxu0 0
    %1993 = vmatprep.subr.bf16.mxu0 0
    %1994 = vmatpush2.bf16.msra.mxu0 0
    %1995 = vmatprep.subr.bf16.mxu0 0
    %1996 = vmatpush2.bf16.msra.mxu0 0
    %1997 = vmatprep.subr.bf16.mxu0 0
    %1998 = vmatpush2.bf16.msra.mxu0 0
    %1999 = vmatprep.subr.bf16.mxu0 0
    %2000 = vmatpush2.bf16.msra.mxu0 0
    %2001 = vmatprep.mubr.bf16.mxu0 0
    %2002 = vmatmul.mubr.bf16.gmra.mxu0 %v1927
    %v2003 = vpop.f32.mrf.mxu0
    %v2004 = vadd.f32 %v191, %v2003
    %v2005 = vpop.f32.mrf.mxu0
    %v2006 = vpop.f32.mrf.mxu0
    %v2007 = vpop.f32.mrf.mxu0
    %2008 = vdwg.mxu0
    %v2009 = vpack.c.bf16 %v1877, %v1877
    %2010 = vmatprep.subr.bf16.mxu0 %v575
    %2011 = vmatpush1.bf16.msra.mxu0 %v574
    %2012 = vmatprep.subr.bf16.mxu0 %v572
    %2013 = vmatpush1.bf16.msra.mxu0 %v571
    %2014 = vmatprep.subr.bf16.mxu0 %v569
    %2015 = vmatpush1.bf16.msra.mxu0 %v568
    %2016 = vmatprep.subr.bf16.mxu0 %v566
    %2017 = vmatpush1.bf16.msra.mxu0 %v565
    %2018 = vmatprep.subr.bf16.mxu0 %v563
    %2019 = vmatpush1.bf16.msra.mxu0 %v562
    %2020 = vmatprep.subr.bf16.mxu0 %v560
    %2021 = vmatpush1.bf16.msra.mxu0 %v559
    %2022 = vmatprep.subr.bf16.mxu0 %v557
    %2023 = vmatpush1.bf16.msra.mxu0 %v556
    %2024 = vmatprep.subr.bf16.mxu0 %v554
    %2025 = vmatpush1.bf16.msra.mxu0 %v553
    %2026 = vmatprep.subr.bf16.mxu0 0
    %2027 = vmatpush2.bf16.msra.mxu0 0
    %2028 = vmatprep.subr.bf16.mxu0 0
    %2029 = vmatpush2.bf16.msra.mxu0 0
    %2030 = vmatprep.subr.bf16.mxu0 0
    %2031 = vmatpush2.bf16.msra.mxu0 0
    %2032 = vmatprep.subr.bf16.mxu0 0
    %2033 = vmatpush2.bf16.msra.mxu0 0
    %2034 = vmatprep.subr.bf16.mxu0 0
    %2035 = vmatpush2.bf16.msra.mxu0 0
    %2036 = vmatprep.subr.bf16.mxu0 0
    %2037 = vmatpush2.bf16.msra.mxu0 0
    %2038 = vmatprep.subr.bf16.mxu0 0
    %2039 = vmatpush2.bf16.msra.mxu0 0
    %2040 = vmatprep.subr.bf16.mxu0 0
    %2041 = vmatpush2.bf16.msra.mxu0 0
    %2042 = vmatprep.mubr.bf16.mxu0 0
    %2043 = vmatmul.mubr.bf16.gmra.mxu0 %v2009
    %v2044 = vpop.f32.mrf.mxu0
    %v2045 = vadd.f32 0.0, %v2044
    %v2046 = vpop.f32.mrf.mxu0
    %v2047 = vadd.f32 0.0, %v2046
    %v2048 = vpop.f32.mrf.mxu0
    %v2049 = vpop.f32.mrf.mxu0
    %2050 = vdwg.mxu0
    %2051 = vmatprep.subr.bf16.mxu0 0
    %2052 = vmatpush1.bf16.msra.mxu0 %v576
    %2053 = vmatprep.subr.bf16.mxu0 0
    %2054 = vmatpush1.bf16.msra.mxu0 %v573
    %2055 = vmatprep.subr.bf16.mxu0 0
    %2056 = vmatpush1.bf16.msra.mxu0 %v570
    %2057 = vmatprep.subr.bf16.mxu0 0
    %2058 = vmatpush1.bf16.msra.mxu0 %v567
    %2059 = vmatprep.subr.bf16.mxu0 0
    %2060 = vmatpush1.bf16.msra.mxu0 %v564
    %2061 = vmatprep.subr.bf16.mxu0 0
    %2062 = vmatpush1.bf16.msra.mxu0 %v561
    %2063 = vmatprep.subr.bf16.mxu0 0
    %2064 = vmatpush1.bf16.msra.mxu0 %v558
    %2065 = vmatprep.subr.bf16.mxu0 0
    %2066 = vmatpush1.bf16.msra.mxu0 %v555
    %2067 = vmatprep.subr.bf16.mxu0 0
    %2068 = vmatpush2.bf16.msra.mxu0 0
    %2069 = vmatprep.subr.bf16.mxu0 0
    %2070 = vmatpush2.bf16.msra.mxu0 0
    %2071 = vmatprep.subr.bf16.mxu0 0
    %2072 = vmatpush2.bf16.msra.mxu0 0
    %2073 = vmatprep.subr.bf16.mxu0 0
    %2074 = vmatpush2.bf16.msra.mxu0 0
    %2075 = vmatprep.subr.bf16.mxu0 0
    %2076 = vmatpush2.bf16.msra.mxu0 0
    %2077 = vmatprep.subr.bf16.mxu0 0
    %2078 = vmatpush2.bf16.msra.mxu0 0
    %2079 = vmatprep.subr.bf16.mxu0 0
    %2080 = vmatpush2.bf16.msra.mxu0 0
    %2081 = vmatprep.subr.bf16.mxu0 0
    %2082 = vmatpush2.bf16.msra.mxu0 0
    %2083 = vmatprep.mubr.bf16.mxu0 0
    %2084 = vmatmul.mubr.bf16.gmra.mxu0 %v2009
    %v2085 = vpop.f32.mrf.mxu0
    %v2086 = vadd.f32 0.0, %v2085
    %v2087 = vpop.f32.mrf.mxu0
    %v2088 = vpop.f32.mrf.mxu0
    %v2089 = vpop.f32.mrf.mxu0
    %2090 = vdwg.mxu0
    %v2091 = vadd.f32 %v1963, %v2045
    %v2092 = vxor.u32 %v2091, 2147483648
    %v2093 = vmul.f32 %v2092, 1.442695
    %v2094 = vpow.pop %v2093
    %v2095 = vadd.f32 %v2094, 1.0
    %v2096 = vrcp.pop %v2095
    %v2097 = vmul.f32 1.0, %v2096
    %v2098 = vadd.f32 %v1965, %v2047
    %v2099 = vxor.u32 %v2098, 2147483648
    %v2100 = vmul.f32 %v2099, 1.442695
    %v2101 = vpow.pop %v2100
    %v2102 = vadd.f32 %v2101, 1.0
    %v2103 = vrcp.pop %v2102
    %v2104 = vmul.f32 1.0, %v2103
    %v2105 = vadd.f32 %v2086, %v200
    %v2106 = vmul.f32 %v2097, %v2105
    %v2107 = vadd.f32 %v2004, %v2106
    %v2108 = vtanh.pop %v2107
    %v2109 = vsub.f32 1.0, %v2104
    %v2110 = vmul.f32 %v2109, %v2108
    %v2111 = vmul.f32 %v2104, %v1877
    %v2112 = vadd.f32 %v2110, %v2111
    %s2113 = scalar_lea.vmem [#allocation12], 48
    %2114 = vst [vmem:[%s2113] sm:$0xff] %v2112
    %s2115 = scalar_lea.vmem [#allocation3], 56
    %v2116 = vld [vmem:[%s2115] sm:$0xff]
    %v2117 = vpack.c.bf16 %v2116, %v2116
    %v2119 = vsel %vm217, %v2117, 0
    %2121 = vmatprep.subr.bf16.mxu0 0
    %2122 = vmatpush1.bf16.msra.mxu0 0
    %2123 = vmatprep.subr.bf16.mxu0 0
    %2124 = vmatpush1.bf16.msra.mxu0 0
    %2125 = vmatprep.subr.bf16.mxu0 0
    %2126 = vmatpush1.bf16.msra.mxu0 0
    %2127 = vmatprep.subr.bf16.mxu0 0
    %2128 = vmatpush1.bf16.msra.mxu0 0
    %2129 = vmatprep.subr.bf16.mxu0 0
    %2130 = vmatpush1.bf16.msra.mxu0 0
    %2131 = vmatprep.subr.bf16.mxu0 0
    %2132 = vmatpush1.bf16.msra.mxu0 0
    %2133 = vmatprep.subr.bf16.mxu0 0
    %2134 = vmatpush1.bf16.msra.mxu0 %v214
    %2135 = vmatprep.subr.bf16.mxu0 0
    %2136 = vmatpush1.bf16.msra.mxu0 %v213
    %2137 = vmatprep.subr.bf16.mxu0 0
    %2138 = vmatpush2.bf16.msra.mxu0 0
    %2139 = vmatprep.subr.bf16.mxu0 0
    %2140 = vmatpush2.bf16.msra.mxu0 0
    %2141 = vmatprep.subr.bf16.mxu0 0
    %2142 = vmatpush2.bf16.msra.mxu0 0
    %2143 = vmatprep.subr.bf16.mxu0 0
    %2144 = vmatpush2.bf16.msra.mxu0 0
    %2145 = vmatprep.subr.bf16.mxu0 0
    %2146 = vmatpush2.bf16.msra.mxu0 0
    %2147 = vmatprep.subr.bf16.mxu0 0
    %2148 = vmatpush2.bf16.msra.mxu0 0
    %2149 = vmatprep.subr.bf16.mxu0 0
    %2150 = vmatpush2.bf16.msra.mxu0 0
    %2151 = vmatprep.subr.bf16.mxu0 0
    %2152 = vmatpush2.bf16.msra.mxu0 0
    %2153 = vmatprep.mubr.bf16.mxu0 0
    %2154 = vmatmul.mubr.bf16.gmra.mxu0 %v2119
    %v2155 = vpop.f32.mrf.mxu0
    %v2156 = vadd.f32 %v176, %v2155
    %v2157 = vpop.f32.mrf.mxu0
    %v2158 = vpop.f32.mrf.mxu0
    %v2159 = vpop.f32.mrf.mxu0
    %2160 = vdwg.mxu0
    %v2161 = vmax.f32 %v2156, 0.0
    %v2162 = vpack.c.bf16 %v2161, %v2161
    %2163 = vmatprep.subr.bf16.mxu0 %v365
    %2164 = vmatpush1.bf16.msra.mxu0 %v364
    %2165 = vmatprep.subr.bf16.mxu0 %v362
    %2166 = vmatpush1.bf16.msra.mxu0 %v361
    %2167 = vmatprep.subr.bf16.mxu0 %v359
    %2168 = vmatpush1.bf16.msra.mxu0 %v358
    %2169 = vmatprep.subr.bf16.mxu0 %v356
    %2170 = vmatpush1.bf16.msra.mxu0 %v355
    %2171 = vmatprep.subr.bf16.mxu0 %v353
    %2172 = vmatpush1.bf16.msra.mxu0 %v352
    %2173 = vmatprep.subr.bf16.mxu0 %v350
    %2174 = vmatpush1.bf16.msra.mxu0 %v349
    %2175 = vmatprep.subr.bf16.mxu0 %v347
    %2176 = vmatpush1.bf16.msra.mxu0 %v346
    %2177 = vmatprep.subr.bf16.mxu0 %v344
    %2178 = vmatpush1.bf16.msra.mxu0 %v343
    %2179 = vmatprep.subr.bf16.mxu0 0
    %2180 = vmatpush2.bf16.msra.mxu0 0
    %2181 = vmatprep.subr.bf16.mxu0 0
    %2182 = vmatpush2.bf16.msra.mxu0 0
    %2183 = vmatprep.subr.bf16.mxu0 0
    %2184 = vmatpush2.bf16.msra.mxu0 0
    %2185 = vmatprep.subr.bf16.mxu0 0
    %2186 = vmatpush2.bf16.msra.mxu0 0
    %2187 = vmatprep.subr.bf16.mxu0 0
    %2188 = vmatpush2.bf16.msra.mxu0 0
    %2189 = vmatprep.subr.bf16.mxu0 0
    %2190 = vmatpush2.bf16.msra.mxu0 0
    %2191 = vmatprep.subr.bf16.mxu0 0
    %2192 = vmatpush2.bf16.msra.mxu0 0
    %2193 = vmatprep.subr.bf16.mxu0 0
    %2194 = vmatpush2.bf16.msra.mxu0 0
    %2195 = vmatprep.mubr.bf16.mxu0 0
    %2196 = vmatmul.mubr.bf16.gmra.mxu0 %v2162
    %v2197 = vpop.f32.mrf.mxu0
    %v2198 = vadd.f32 %v183, %v2197
    %v2199 = vpop.f32.mrf.mxu0
    %v2200 = vadd.f32 %v187, %v2199
    %v2201 = vpop.f32.mrf.mxu0
    %v2202 = vpop.f32.mrf.mxu0
    %2203 = vdwg.mxu0
    %2204 = vmatprep.subr.bf16.mxu0 0
    %2205 = vmatpush1.bf16.msra.mxu0 %v366
    %2206 = vmatprep.subr.bf16.mxu0 0
    %2207 = vmatpush1.bf16.msra.mxu0 %v363
    %2208 = vmatprep.subr.bf16.mxu0 0
    %2209 = vmatpush1.bf16.msra.mxu0 %v360
    %2210 = vmatprep.subr.bf16.mxu0 0
    %2211 = vmatpush1.bf16.msra.mxu0 %v357
    %2212 = vmatprep.subr.bf16.mxu0 0
    %2213 = vmatpush1.bf16.msra.mxu0 %v354
    %2214 = vmatprep.subr.bf16.mxu0 0
    %2215 = vmatpush1.bf16.msra.mxu0 %v351
    %2216 = vmatprep.subr.bf16.mxu0 0
    %2217 = vmatpush1.bf16.msra.mxu0 %v348
    %2218 = vmatprep.subr.bf16.mxu0 0
    %2219 = vmatpush1.bf16.msra.mxu0 %v345
    %2220 = vmatprep.subr.bf16.mxu0 0
    %2221 = vmatpush2.bf16.msra.mxu0 0
    %2222 = vmatprep.subr.bf16.mxu0 0
    %2223 = vmatpush2.bf16.msra.mxu0 0
    %2224 = vmatprep.subr.bf16.mxu0 0
    %2225 = vmatpush2.bf16.msra.mxu0 0
    %2226 = vmatprep.subr.bf16.mxu0 0
    %2227 = vmatpush2.bf16.msra.mxu0 0
    %2228 = vmatprep.subr.bf16.mxu0 0
    %2229 = vmatpush2.bf16.msra.mxu0 0
    %2230 = vmatprep.subr.bf16.mxu0 0
    %2231 = vmatpush2.bf16.msra.mxu0 0
    %2232 = vmatprep.subr.bf16.mxu0 0
    %2233 = vmatpush2.bf16.msra.mxu0 0
    %2234 = vmatprep.subr.bf16.mxu0 0
    %2235 = vmatpush2.bf16.msra.mxu0 0
    %2236 = vmatprep.mubr.bf16.mxu0 0
    %2237 = vmatmul.mubr.bf16.gmra.mxu0 %v2162
    %v2238 = vpop.f32.mrf.mxu0
    %v2239 = vadd.f32 %v191, %v2238
    %v2240 = vpop.f32.mrf.mxu0
    %v2241 = vpop.f32.mrf.mxu0
    %v2242 = vpop.f32.mrf.mxu0
    %2243 = vdwg.mxu0
    %v2244 = vpack.c.bf16 %v2112, %v2112
    %2245 = vmatprep.subr.bf16.mxu0 %v575
    %2246 = vmatpush1.bf16.msra.mxu0 %v574
    %2247 = vmatprep.subr.bf16.mxu0 %v572
    %2248 = vmatpush1.bf16.msra.mxu0 %v571
    %2249 = vmatprep.subr.bf16.mxu0 %v569
    %2250 = vmatpush1.bf16.msra.mxu0 %v568
    %2251 = vmatprep.subr.bf16.mxu0 %v566
    %2252 = vmatpush1.bf16.msra.mxu0 %v565
    %2253 = vmatprep.subr.bf16.mxu0 %v563
    %2254 = vmatpush1.bf16.msra.mxu0 %v562
    %2255 = vmatprep.subr.bf16.mxu0 %v560
    %2256 = vmatpush1.bf16.msra.mxu0 %v559
    %2257 = vmatprep.subr.bf16.mxu0 %v557
    %2258 = vmatpush1.bf16.msra.mxu0 %v556
    %2259 = vmatprep.subr.bf16.mxu0 %v554
    %2260 = vmatpush1.bf16.msra.mxu0 %v553
    %2261 = vmatprep.subr.bf16.mxu0 0
    %2262 = vmatpush2.bf16.msra.mxu0 0
    %2263 = vmatprep.subr.bf16.mxu0 0
    %2264 = vmatpush2.bf16.msra.mxu0 0
    %2265 = vmatprep.subr.bf16.mxu0 0
    %2266 = vmatpush2.bf16.msra.mxu0 0
    %2267 = vmatprep.subr.bf16.mxu0 0
    %2268 = vmatpush2.bf16.msra.mxu0 0
    %2269 = vmatprep.subr.bf16.mxu0 0
    %2270 = vmatpush2.bf16.msra.mxu0 0
    %2271 = vmatprep.subr.bf16.mxu0 0
    %2272 = vmatpush2.bf16.msra.mxu0 0
    %2273 = vmatprep.subr.bf16.mxu0 0
    %2274 = vmatpush2.bf16.msra.mxu0 0
    %2275 = vmatprep.subr.bf16.mxu0 0
    %2276 = vmatpush2.bf16.msra.mxu0 0
    %2277 = vmatprep.mubr.bf16.mxu0 0
    %2278 = vmatmul.mubr.bf16.gmra.mxu0 %v2244
    %v2279 = vpop.f32.mrf.mxu0
    %v2280 = vadd.f32 0.0, %v2279
    %v2281 = vpop.f32.mrf.mxu0
    %v2282 = vadd.f32 0.0, %v2281
    %v2283 = vpop.f32.mrf.mxu0
    %v2284 = vpop.f32.mrf.mxu0
    %2285 = vdwg.mxu0
    %2286 = vmatprep.subr.bf16.mxu0 0
    %2287 = vmatpush1.bf16.msra.mxu0 %v576
    %2288 = vmatprep.subr.bf16.mxu0 0
    %2289 = vmatpush1.bf16.msra.mxu0 %v573
    %2290 = vmatprep.subr.bf16.mxu0 0
    %2291 = vmatpush1.bf16.msra.mxu0 %v570
    %2292 = vmatprep.subr.bf16.mxu0 0
    %2293 = vmatpush1.bf16.msra.mxu0 %v567
    %2294 = vmatprep.subr.bf16.mxu0 0
    %2295 = vmatpush1.bf16.msra.mxu0 %v564
    %2296 = vmatprep.subr.bf16.mxu0 0
    %2297 = vmatpush1.bf16.msra.mxu0 %v561
    %2298 = vmatprep.subr.bf16.mxu0 0
    %2299 = vmatpush1.bf16.msra.mxu0 %v558
    %2300 = vmatprep.subr.bf16.mxu0 0
    %2301 = vmatpush1.bf16.msra.mxu0 %v555
    %2302 = vmatprep.subr.bf16.mxu0 0
    %2303 = vmatpush2.bf16.msra.mxu0 0
    %2304 = vmatprep.subr.bf16.mxu0 0
    %2305 = vmatpush2.bf16.msra.mxu0 0
    %2306 = vmatprep.subr.bf16.mxu0 0
    %2307 = vmatpush2.bf16.msra.mxu0 0
    %2308 = vmatprep.subr.bf16.mxu0 0
    %2309 = vmatpush2.bf16.msra.mxu0 0
    %2310 = vmatprep.subr.bf16.mxu0 0
    %2311 = vmatpush2.bf16.msra.mxu0 0
    %2312 = vmatprep.subr.bf16.mxu0 0
    %2313 = vmatpush2.bf16.msra.mxu0 0
    %2314 = vmatprep.subr.bf16.mxu0 0
    %2315 = vmatpush2.bf16.msra.mxu0 0
    %2316 = vmatprep.subr.bf16.mxu0 0
    %2317 = vmatpush2.bf16.msra.mxu0 0
    %2318 = vmatprep.mubr.bf16.mxu0 0
    %2319 = vmatmul.mubr.bf16.gmra.mxu0 %v2244
    %v2320 = vpop.f32.mrf.mxu0
    %v2321 = vadd.f32 0.0, %v2320
    %v2322 = vpop.f32.mrf.mxu0
    %v2323 = vpop.f32.mrf.mxu0
    %v2324 = vpop.f32.mrf.mxu0
    %2325 = vdwg.mxu0
    %v2326 = vadd.f32 %v2198, %v2280
    %v2327 = vxor.u32 %v2326, 2147483648
    %v2328 = vmul.f32 %v2327, 1.442695
    %v2329 = vpow.pop %v2328
    %v2330 = vadd.f32 %v2329, 1.0
    %v2331 = vrcp.pop %v2330
    %v2332 = vmul.f32 1.0, %v2331
    %v2333 = vadd.f32 %v2200, %v2282
    %v2334 = vxor.u32 %v2333, 2147483648
    %v2335 = vmul.f32 %v2334, 1.442695
    %v2336 = vpow.pop %v2335
    %v2337 = vadd.f32 %v2336, 1.0
    %v2338 = vrcp.pop %v2337
    %v2339 = vmul.f32 1.0, %v2338
    %v2340 = vadd.f32 %v2321, %v200
    %v2341 = vmul.f32 %v2332, %v2340
    %v2342 = vadd.f32 %v2239, %v2341
    %v2343 = vtanh.pop %v2342
    %v2344 = vsub.f32 1.0, %v2339
    %v2345 = vmul.f32 %v2344, %v2343
    %v2346 = vmul.f32 %v2339, %v2112
    %v2347 = vadd.f32 %v2345, %v2346
    %s2348 = scalar_lea.vmem [#allocation12], 56
    %2349 = vst [vmem:[%s2348] sm:$0xff] %v2347
    %2350 = vst [vmem:[#allocation2] sm:$0xff] %v2347
    // Predicated region
    $region58: #{tpu_custom_call.1} parent=1 // pred_check
      _
    $region59: #{tpu_custom_call.1} parent=1 // pred_check_branch
      %2352 = sbr.rel (0) target = $region61
    $region60: #{tpu_custom_call.1} parent=1 // pred_region
      %s2354 = ssub.s32 1024, 1024
      %2355 = vsyncadd [#allocation5], %s2354
      %s2356 = sshll.u32 [#allocation12], 4
      %s2357 = int_to_ptr.vmem [resolvable:$true] %s2356
      %2362 = dma.vmem_to_hbm [thread:$0]  %s2357, 1024, %s8, [#allocation5], 128, 128, 8
    $region61: #{tpu_custom_call.1} parent=1 // pred_fallthru
      _
    // Predicated region
    $region62: #{tpu_custom_call.1} parent=1 // pred_check
      _
    $region63: #{tpu_custom_call.1} parent=1 // pred_check_branch
      %2364 = sbr.rel (0) target = $region65
    $region64: #{tpu_custom_call.1} parent=1 // pred_region
      %2365 = dma.done [#allocation5], 1024
    $region65: #{tpu_custom_call.1} parent=1 // pred_fallthru
      _
    %2366 = vsyncpa [#allocation4], 1
    %2367 = vsyncpa [#allocation7], 1
    %2368 = vsyncpa [#allocation10], 1
    %2369 = vsyncpa [#allocation5], 1

</llo_original>
